<compile_context>
chip_gen: v7x
topology: tpu7x:2x2x1
jax: 0.10.0
libtpu: 0.0.40
codegen_flags: <defaults>
</compile_context>

<pallas_src>
import functools

import jax
import jax.numpy as jnp
from jax.experimental import pallas as pl
from jax.experimental.pallas import tpu as pltpu

# encoder: input_dim -> 512 -> 256 -> 128 -> 64   (ReLU after all but the 64 layer)
# decoder: 64 -> 128 -> 256 -> 512 -> input_dim   (ReLU after all but the last layer)
_HIDDEN = (512, 256, 128, 64, 128, 256, 512)
_NUM_LAYERS = 8
_NO_RELU_LAYERS = (3, 7)  # 64-dim code layer and final reconstruction


def _layer_dims(input_dim):
    dims = [input_dim, *_HIDDEN, input_dim]
    return [(dims[i], dims[i + 1]) for i in range(_NUM_LAYERS)]


def init_deep_ae_params(input_dim: int, key):
    """PyTorch-style U(-1/sqrt(fan_in), ..) init.

    Returns a list of (W_t bf16 with shape (in, out), b f32 with shape (1, out)),
    i.e. weights pre-transposed so the kernel computes y = x @ W_t + b
    (== PyTorch's x @ W.T + b).
    """
    params = []
    for i, (d_in, d_out) in enumerate(_layer_dims(input_dim)):
        k_w = jax.random.fold_in(key, 2 * i)
        k_b = jax.random.fold_in(key, 2 * i + 1)
        bound = 1.0 / (d_in ** 0.5)
        w_t = jax.random.uniform(k_w, (d_in, d_out), jnp.float32, -bound, bound)
        b = jax.random.uniform(k_b, (1, d_out), jnp.float32, -bound, bound)
        params.append((w_t.astype(jnp.bfloat16), b))
    return params


def _deep_ae_kernel(x_ref, *refs, relu_flags):
    """Fused forward: N x (bf16 MXU matmul w/ f32 accum + bias [+ bf16 ReLU])."""
    out_ref = refs[-1]
    wb_refs = refs[:-1]  # interleaved: w0, b0, w1, b1, ...
    n = len(relu_flags)

    h = x_ref[...].astype(jnp.bfloat16)  # (tile_b, d_pad)
    for i, do_relu in enumerate(relu_flags):
        w = wb_refs[2 * i][...]      # (in, out) bf16 -> native bf16 MXU path
        b = wb_refs[2 * i + 1][...]  # (1, out) f32
        acc = jnp.dot(h, w, preferred_element_type=jnp.float32) + b
        if i == n - 1:
            h = acc                                       # final layer stays f32
        elif do_relu:
            h = jnp.maximum(acc.astype(jnp.bfloat16), 0)  # downcast then ReLU (bit-identical)
        else:
            h = acc.astype(jnp.bfloat16)
    out_ref[...] = h.astype(out_ref.dtype)


def _pick_tile_b(batch: int) -> int:
    """Batch-tile size: big tiles to amortize per-step overhead, but >= 2 grid
    steps for non-tiny batches so v7x's two TensorCores both get work."""
    granule = 8
    preferred = 512  # v6e/v7x sweet spot; also a multiple of 128 for v5e
    rounded = pl.cdiv(batch, granule) * granule
    if rounded <= 2 * granule:          # tiny batch -> single step
        return max(granule, rounded)
    half = pl.cdiv(pl.cdiv(batch, 2), granule) * granule
    return max(granule, min(preferred, half))


@functools.partial(
    jax.jit,
    static_argnames=("single_buffer_weights", "fold_code_layers", "interpret"),
)
def _forward_impl(x, params, *, single_buffer_weights=True,
                  fold_code_layers=True, interpret=False):
    batch, input_dim = x.shape
    d_pad = pl.cdiv(input_dim, 128) * 128  # lane-dense feature dim

    # --- assemble kernel-side parameters -----------------------------------
    wlist = [w for (w, _) in params]
    blist = [b for (_, b) in params]

    if fold_code_layers:
        # Layers 3 (128->64) and 4 (64->128) have no ReLU between them, so they
        # compose exactly into one well-shaped 128->128 matmul.
        w3 = wlist[3].astype(jnp.float32)
        w4 = wlist[4].astype(jnp.float32)
        w34 = (w3 @ w4).astype(jnp.bfloat16)
        b34 = blist[3] @ w4 + blist[4]
        kw = wlist[:3] + [w34] + wlist[5:]
        kb = blist[:3] + [b34] + blist[5:]
        relu_flags = (True, True, True, True, True, True, False)
    else:
        kw = list(wlist)
        kb = list(blist)
        relu_flags = tuple(i not in _NO_RELU_LAYERS for i in range(_NUM_LAYERS))

    # Feature-axis padding to a multiple of 128 (lane-dense first/last layers).
    if d_pad != input_dim:
        x = jnp.pad(x, ((0, 0), (0, d_pad - input_dim)))
        kw[0] = jnp.pad(kw[0], ((0, d_pad - input_dim), (0, 0)))
        kw[-1] = jnp.pad(kw[-1], ((0, 0), (0, d_pad - input_dim)))
        kb[-1] = jnp.pad(kb[-1], ((0, 0), (0, d_pad - input_dim)))

    # --- grid / specs -------------------------------------------------------
    tile_b = _pick_tile_b(batch)
    grid = (pl.cdiv(batch, tile_b),)  # partial last block handled by Pallas

    def _wb_spec(shape):
        # Constant index_map -> stays VMEM-resident; single-buffered since the
        # block index never changes (never re-fetched after step 0).
        if single_buffer_weights:
            return pl.BlockSpec(shape, lambda i: (0, 0),
                                pipeline_mode=pl.Buffered(1))
        return pl.BlockSpec(shape, lambda i: (0, 0))

    flat_wb, wb_specs = [], []
    for w, b in zip(kw, kb):
        flat_wb += [w, b]
        wb_specs += [_wb_spec(w.shape), _wb_spec(b.shape)]

    act_spec = pl.BlockSpec((tile_b, d_pad), lambda i: (i, 0))

    # --- cost estimate ------------------------------------------------------
    weight_bytes = sum(int(w.size) * 2 for w in kw)   # bf16
    bias_bytes = sum(int(b.size) * 4 for b in kb)     # f32
    flops = 2 * batch * sum(int(w.shape[0]) * int(w.shape[1]) for w in kw)
    cost = pl.CostEstimate(
        flops=flops, transcendentals=0,
        bytes_accessed=weight_bytes + bias_bytes + 2 * batch * d_pad * 4)

    # --- generation-aware VMEM budget ---------------------------------------
    try:
        vmem_cap = int(pltpu.get_tpu_info().vmem_capacity_bytes)
    except Exception:
        vmem_cap = 64 << 20  # conservative (v7x) fallback
    cap = min(int(vmem_cap * 0.8), vmem_cap - (8 << 20))  # ~51 MiB v7x, ~102 MiB v5e/v6e

    param_bytes = (weight_bytes + bias_bytes) * (1 if single_buffer_weights else 2)
    act_bytes = 2 * 2 * tile_b * d_pad * 4          # double-buffered in/out tiles
    inter_bytes = 4 * tile_b * 512 * 4              # slack for intermediates/spills
    needed = param_bytes + act_bytes + inter_bytes
    vmem_limit = int(min(max(needed * 3 // 2, 32 << 20), cap))

    kernel = functools.partial(_deep_ae_kernel, relu_flags=relu_flags)

    out = pl.pallas_call(
        kernel,
        out_shape=jax.ShapeDtypeStruct((batch, d_pad), jnp.float32),
        grid=grid,
        in_specs=[act_spec] + wb_specs,
        out_specs=act_spec,
        compiler_params=pltpu.CompilerParams(
            dimension_semantics=("parallel",),  # shard batch tiles across TCs
            vmem_limit_bytes=vmem_limit,
        ),
        cost_estimate=cost,
        interpret=interpret,
    )(x, *flat_wb)

    if d_pad != input_dim:
        out = out[:, :input_dim]
    return out


def deep_ae_forward(x, params, fold_code_layers=True, interpret=False):
    """x: (batch, input_dim) float32 -> (batch, input_dim) float32."""
    try:
        return _forward_impl(x, params, single_buffer_weights=True,
                             fold_code_layers=fold_code_layers, interpret=interpret)
    except Exception:
        # Fallback if this JAX build rejects single-buffered (Buffered(1)) specs.
        return _forward_impl(x, params, single_buffer_weights=False,
                             fold_code_layers=fold_code_layers, interpret=interpret)


def _reference_forward(x, params):
    """Pure-JAX reference with the module's layer structure (bf16 MXU, f32 accum)."""
    h = x
    for i, (w_t, b) in enumerate(params):
        h = jnp.dot(h.astype(jnp.bfloat16), w_t,
                    preferred_element_type=jnp.float32) + b
        if i not in _NO_RELU_LAYERS:
            h = jnp.maximum(h, 0.0)
    return h


if __name__ == "__main__":
    key = jax.random.PRNGKey(0)

    # Case 1: input_dim multiple of 128; multi-step grid of full tiles.
    input_dim = 256
    params = init_deep_ae_params(input_dim, key)
    x = jax.random.normal(jax.random.fold_in(key, 100), (64, input_dim), jnp.float32)
    out = jax.block_until_ready(deep_ae_forward(x, params))
    ref = _reference_forward(x, params)
    assert out.shape == (64, input_dim), out.shape
    assert out.dtype == jnp.float32, out.dtype
    assert jnp.allclose(out, ref, atol=2e-2, rtol=2e-2), "mismatch (batch=64, folded)"

    # Case 2: batch not a multiple of the tile -> partial final block, no wrapper pad/slice.
    x2 = jax.random.normal(jax.random.fold_in(key, 200), (20, input_dim), jnp.float32)
    out2 = jax.block_until_ready(deep_ae_forward(x2, params))
    ref2 = _reference_forward(x2, params)
    assert out2.shape == (20, input_dim), out2.shape
    assert jnp.allclose(out2, ref2, atol=2e-2, rtol=2e-2), "mismatch (batch=20, folded)"

    # Case 2b: unfolded path (exact layer-by-layer structure).
    out2u = jax.block_until_ready(deep_ae_forward(x2, params, fold_code_layers=False))
    assert jnp.allclose(out2u, ref2, atol=1e-2, rtol=1e-2), "mismatch (batch=20, unfolded)"

    # Case 3: ragged feature dim (not a multiple of 128) -> lane-padding path.
    input_dim3 = 96
    params3 = init_deep_ae_params(input_dim3, jax.random.fold_in(key, 1))
    x3 = jax.random.normal(jax.random.fold_in(key, 300), (16, input_dim3), jnp.float32)
    out3 = jax.block_until_ready(deep_ae_forward(x3, params3))
    ref3 = _reference_forward(x3, params3)
    assert out3.shape == (16, input_dim3), out3.shape
    assert jnp.allclose(out3, ref3, atol=2e-2, rtol=2e-2), "mismatch (input_dim=96)"

    print("KERNEL_OK")
</pallas_src>

<mosaic_0001>
module attributes {stable_mosaic.version = 11 : i64} {
  func.func @_deep_ae_kernel(%arg0: i32, %arg1: memref<32x256xf32, #tpu.memory_space<vmem>>, %arg2: memref<256x512xbf16, #tpu.memory_space<vmem>>, %arg3: memref<1x512xf32, #tpu.memory_space<vmem>>, %arg4: memref<512x256xbf16, #tpu.memory_space<vmem>>, %arg5: memref<1x256xf32, #tpu.memory_space<vmem>>, %arg6: memref<256x128xbf16, #tpu.memory_space<vmem>>, %arg7: memref<1x128xf32, #tpu.memory_space<vmem>>, %arg8: memref<128x128xbf16, #tpu.memory_space<vmem>>, %arg9: memref<1x128xf32, #tpu.memory_space<vmem>>, %arg10: memref<128x256xbf16, #tpu.memory_space<vmem>>, %arg11: memref<1x256xf32, #tpu.memory_space<vmem>>, %arg12: memref<256x512xbf16, #tpu.memory_space<vmem>>, %arg13: memref<1x512xf32, #tpu.memory_space<vmem>>, %arg14: memref<512x256xbf16, #tpu.memory_space<vmem>>, %arg15: memref<1x256xf32, #tpu.memory_space<vmem>>, %arg16: memref<32x256xf32, #tpu.memory_space<vmem>>) attributes {dimension_semantics = [#tpu.dimension_semantics<parallel>], iteration_bounds = array<i64: 2>, scalar_prefetch = 0 : i64, scratch_operands = 0 : i64, tpu.core_type = #tpu.core_type<tc>, window_params = [{transform_indices = @transform_0, window_bounds = array<i64: 32, 256>}, {pipeline_mode = #tpu.pipeline_mode<synchronous>, transform_indices = @transform_1, window_bounds = array<i64: 256, 512>}, {pipeline_mode = #tpu.pipeline_mode<synchronous>, transform_indices = @transform_2, window_bounds = array<i64: 1, 512>}, {pipeline_mode = #tpu.pipeline_mode<synchronous>, transform_indices = @transform_3, window_bounds = array<i64: 512, 256>}, {pipeline_mode = #tpu.pipeline_mode<synchronous>, transform_indices = @transform_4, window_bounds = array<i64: 1, 256>}, {pipeline_mode = #tpu.pipeline_mode<synchronous>, transform_indices = @transform_5, window_bounds = array<i64: 256, 128>}, {pipeline_mode = #tpu.pipeline_mode<synchronous>, transform_indices = @transform_6, window_bounds = array<i64: 1, 128>}, {pipeline_mode = #tpu.pipeline_mode<synchronous>, transform_indices = @transform_7, window_bounds = array<i64: 128, 128>}, {pipeline_mode = #tpu.pipeline_mode<synchronous>, transform_indices = @transform_8, window_bounds = array<i64: 1, 128>}, {pipeline_mode = #tpu.pipeline_mode<synchronous>, transform_indices = @transform_9, window_bounds = array<i64: 128, 256>}, {pipeline_mode = #tpu.pipeline_mode<synchronous>, transform_indices = @transform_10, window_bounds = array<i64: 1, 256>}, {pipeline_mode = #tpu.pipeline_mode<synchronous>, transform_indices = @transform_11, window_bounds = array<i64: 256, 512>}, {pipeline_mode = #tpu.pipeline_mode<synchronous>, transform_indices = @transform_12, window_bounds = array<i64: 1, 512>}, {pipeline_mode = #tpu.pipeline_mode<synchronous>, transform_indices = @transform_13, window_bounds = array<i64: 512, 256>}, {pipeline_mode = #tpu.pipeline_mode<synchronous>, transform_indices = @transform_14, window_bounds = array<i64: 1, 256>}, {transform_indices = @transform_15, window_bounds = array<i64: 32, 256>}]} {
    %c0 = arith.constant 0 : index
    %c0_0 = arith.constant 0 : index
    %0 = vector.load %arg1[%c0, %c0_0] : memref<32x256xf32, #tpu.memory_space<vmem>>, vector<32x256xf32>
    %1 = arith.truncf %0 : vector<32x256xf32> to vector<32x256xbf16>
    %c0_1 = arith.constant 0 : index
    %c0_2 = arith.constant 0 : index
    %2 = vector.load %arg2[%c0_1, %c0_2] : memref<256x512xbf16, #tpu.memory_space<vmem>>, vector<256x512xbf16>
    %c0_3 = arith.constant 0 : index
    %c0_4 = arith.constant 0 : index
    %3 = vector.load %arg3[%c0_3, %c0_4] : memref<1x512xf32, #tpu.memory_space<vmem>>, vector<1x512xf32>
    %cst = arith.constant dense<0.000000e+00> : vector<32x512xf32>
    %4 = tpu.matmul %1, %2, %cst {dimension_numbers = #tpu.dot_dimension_numbers<[1], [0], [0], [1], [0, 0, 1, 1], [], []>} : vector<32x256xbf16>, vector<256x512xbf16>, vector<32x512xf32> -> vector<32x512xf32>
    %5 = vector.broadcast %3 : vector<1x512xf32> to vector<32x512xf32>
    %6 = arith.addf %4, %5 : vector<32x512xf32>
    %7 = arith.truncf %6 : vector<32x512xf32> to vector<32x512xbf16>
    %cst_5 = arith.constant 0.000000e+00 : bf16
    %8 = vector.broadcast %cst_5 : bf16 to vector<32x512xbf16>
    %9 = arith.maximumf %7, %8 : vector<32x512xbf16>
    %c0_6 = arith.constant 0 : index
    %c0_7 = arith.constant 0 : index
    %10 = vector.load %arg4[%c0_6, %c0_7] : memref<512x256xbf16, #tpu.memory_space<vmem>>, vector<512x256xbf16>
    %c0_8 = arith.constant 0 : index
    %c0_9 = arith.constant 0 : index
    %11 = vector.load %arg5[%c0_8, %c0_9] : memref<1x256xf32, #tpu.memory_space<vmem>>, vector<1x256xf32>
    %cst_10 = arith.constant dense<0.000000e+00> : vector<32x256xf32>
    %12 = tpu.matmul %9, %10, %cst_10 {dimension_numbers = #tpu.dot_dimension_numbers<[1], [0], [0], [1], [0, 0, 1, 1], [], []>} : vector<32x512xbf16>, vector<512x256xbf16>, vector<32x256xf32> -> vector<32x256xf32>
    %13 = vector.broadcast %11 : vector<1x256xf32> to vector<32x256xf32>
    %14 = arith.addf %12, %13 : vector<32x256xf32>
    %15 = arith.truncf %14 : vector<32x256xf32> to vector<32x256xbf16>
    %cst_11 = arith.constant 0.000000e+00 : bf16
    %16 = vector.broadcast %cst_11 : bf16 to vector<32x256xbf16>
    %17 = arith.maximumf %15, %16 : vector<32x256xbf16>
    %c0_12 = arith.constant 0 : index
    %c0_13 = arith.constant 0 : index
    %18 = vector.load %arg6[%c0_12, %c0_13] : memref<256x128xbf16, #tpu.memory_space<vmem>>, vector<256x128xbf16>
    %c0_14 = arith.constant 0 : index
    %c0_15 = arith.constant 0 : index
    %19 = vector.load %arg7[%c0_14, %c0_15] : memref<1x128xf32, #tpu.memory_space<vmem>>, vector<1x128xf32>
    %cst_16 = arith.constant dense<0.000000e+00> : vector<32x128xf32>
    %20 = tpu.matmul %17, %18, %cst_16 {dimension_numbers = #tpu.dot_dimension_numbers<[1], [0], [0], [1], [0, 0, 1, 1], [], []>} : vector<32x256xbf16>, vector<256x128xbf16>, vector<32x128xf32> -> vector<32x128xf32>
    %21 = vector.broadcast %19 : vector<1x128xf32> to vector<32x128xf32>
    %22 = arith.addf %20, %21 : vector<32x128xf32>
    %23 = arith.truncf %22 : vector<32x128xf32> to vector<32x128xbf16>
    %cst_17 = arith.constant 0.000000e+00 : bf16
    %24 = vector.broadcast %cst_17 : bf16 to vector<32x128xbf16>
    %25 = arith.maximumf %23, %24 : vector<32x128xbf16>
    %c0_18 = arith.constant 0 : index
    %c0_19 = arith.constant 0 : index
    %26 = vector.load %arg8[%c0_18, %c0_19] : memref<128x128xbf16, #tpu.memory_space<vmem>>, vector<128x128xbf16>
    %c0_20 = arith.constant 0 : index
    %c0_21 = arith.constant 0 : index
    %27 = vector.load %arg9[%c0_20, %c0_21] : memref<1x128xf32, #tpu.memory_space<vmem>>, vector<1x128xf32>
    %cst_22 = arith.constant dense<0.000000e+00> : vector<32x128xf32>
    %28 = tpu.matmul %25, %26, %cst_22 {dimension_numbers = #tpu.dot_dimension_numbers<[1], [0], [0], [1], [0, 0, 1, 1], [], []>} : vector<32x128xbf16>, vector<128x128xbf16>, vector<32x128xf32> -> vector<32x128xf32>
    %29 = vector.broadcast %27 : vector<1x128xf32> to vector<32x128xf32>
    %30 = arith.addf %28, %29 : vector<32x128xf32>
    %31 = arith.truncf %30 : vector<32x128xf32> to vector<32x128xbf16>
    %cst_23 = arith.constant 0.000000e+00 : bf16
    %32 = vector.broadcast %cst_23 : bf16 to vector<32x128xbf16>
    %33 = arith.maximumf %31, %32 : vector<32x128xbf16>
    %c0_24 = arith.constant 0 : index
    %c0_25 = arith.constant 0 : index
    %34 = vector.load %arg10[%c0_24, %c0_25] : memref<128x256xbf16, #tpu.memory_space<vmem>>, vector<128x256xbf16>
    %c0_26 = arith.constant 0 : index
    %c0_27 = arith.constant 0 : index
    %35 = vector.load %arg11[%c0_26, %c0_27] : memref<1x256xf32, #tpu.memory_space<vmem>>, vector<1x256xf32>
    %cst_28 = arith.constant dense<0.000000e+00> : vector<32x256xf32>
    %36 = tpu.matmul %33, %34, %cst_28 {dimension_numbers = #tpu.dot_dimension_numbers<[1], [0], [0], [1], [0, 0, 1, 1], [], []>} : vector<32x128xbf16>, vector<128x256xbf16>, vector<32x256xf32> -> vector<32x256xf32>
    %37 = vector.broadcast %35 : vector<1x256xf32> to vector<32x256xf32>
    %38 = arith.addf %36, %37 : vector<32x256xf32>
    %39 = arith.truncf %38 : vector<32x256xf32> to vector<32x256xbf16>
    %cst_29 = arith.constant 0.000000e+00 : bf16
    %40 = vector.broadcast %cst_29 : bf16 to vector<32x256xbf16>
    %41 = arith.maximumf %39, %40 : vector<32x256xbf16>
    %c0_30 = arith.constant 0 : index
    %c0_31 = arith.constant 0 : index
    %42 = vector.load %arg12[%c0_30, %c0_31] : memref<256x512xbf16, #tpu.memory_space<vmem>>, vector<256x512xbf16>
    %c0_32 = arith.constant 0 : index
    %c0_33 = arith.constant 0 : index
    %43 = vector.load %arg13[%c0_32, %c0_33] : memref<1x512xf32, #tpu.memory_space<vmem>>, vector<1x512xf32>
    %cst_34 = arith.constant dense<0.000000e+00> : vector<32x512xf32>
    %44 = tpu.matmul %41, %42, %cst_34 {dimension_numbers = #tpu.dot_dimension_numbers<[1], [0], [0], [1], [0, 0, 1, 1], [], []>} : vector<32x256xbf16>, vector<256x512xbf16>, vector<32x512xf32> -> vector<32x512xf32>
    %45 = vector.broadcast %43 : vector<1x512xf32> to vector<32x512xf32>
    %46 = arith.addf %44, %45 : vector<32x512xf32>
    %47 = arith.truncf %46 : vector<32x512xf32> to vector<32x512xbf16>
    %cst_35 = arith.constant 0.000000e+00 : bf16
    %48 = vector.broadcast %cst_35 : bf16 to vector<32x512xbf16>
    %49 = arith.maximumf %47, %48 : vector<32x512xbf16>
    %c0_36 = arith.constant 0 : index
    %c0_37 = arith.constant 0 : index
    %50 = vector.load %arg14[%c0_36, %c0_37] : memref<512x256xbf16, #tpu.memory_space<vmem>>, vector<512x256xbf16>
    %c0_38 = arith.constant 0 : index
    %c0_39 = arith.constant 0 : index
    %51 = vector.load %arg15[%c0_38, %c0_39] : memref<1x256xf32, #tpu.memory_space<vmem>>, vector<1x256xf32>
    %cst_40 = arith.constant dense<0.000000e+00> : vector<32x256xf32>
    %52 = tpu.matmul %49, %50, %cst_40 {dimension_numbers = #tpu.dot_dimension_numbers<[1], [0], [0], [1], [0, 0, 1, 1], [], []>} : vector<32x512xbf16>, vector<512x256xbf16>, vector<32x256xf32> -> vector<32x256xf32>
    %53 = vector.broadcast %51 : vector<1x256xf32> to vector<32x256xf32>
    %54 = arith.addf %52, %53 : vector<32x256xf32>
    %c0_41 = arith.constant 0 : index
    %c0_42 = arith.constant 0 : index
    %55 = vector.load %arg16[%c0_41, %c0_42] : memref<32x256xf32, #tpu.memory_space<vmem>>, vector<32x256xf32>
    tpu.vector_store %arg16[%c0_41, %c0_42], %54 {strides = array<i32>} : memref<32x256xf32, #tpu.memory_space<vmem>>, vector<32x256xf32>,
    return
  }
  func.func @transform_0(%arg0: i32) -> (i32, i32) {
    %c0_i32 = arith.constant 0 : i32
    %c0_i32_0 = arith.constant 0 : i32
    return %arg0, %c0_i32 : i32, i32
  }
  func.func @transform_1(%arg0: i32) -> (i32, i32) {
    %c0_i32 = arith.constant 0 : i32
    %c0_i32_0 = arith.constant 0 : i32
    %c0_i32_1 = arith.constant 0 : i32
    return %c0_i32, %c0_i32_0 : i32, i32
  }
  func.func @transform_2(%arg0: i32) -> (i32, i32) {
    %c0_i32 = arith.constant 0 : i32
    %c0_i32_0 = arith.constant 0 : i32
    %c0_i32_1 = arith.constant 0 : i32
    return %c0_i32, %c0_i32_0 : i32, i32
  }
  func.func @transform_3(%arg0: i32) -> (i32, i32) {
    %c0_i32 = arith.constant 0 : i32
    %c0_i32_0 = arith.constant 0 : i32
    %c0_i32_1 = arith.constant 0 : i32
    return %c0_i32, %c0_i32_0 : i32, i32
  }
  func.func @transform_4(%arg0: i32) -> (i32, i32) {
    %c0_i32 = arith.constant 0 : i32
    %c0_i32_0 = arith.constant 0 : i32
    %c0_i32_1 = arith.constant 0 : i32
    return %c0_i32, %c0_i32_0 : i32, i32
  }
  func.func @transform_5(%arg0: i32) -> (i32, i32) {
    %c0_i32 = arith.constant 0 : i32
    %c0_i32_0 = arith.constant 0 : i32
    %c0_i32_1 = arith.constant 0 : i32
    return %c0_i32, %c0_i32_0 : i32, i32
  }
  func.func @transform_6(%arg0: i32) -> (i32, i32) {
    %c0_i32 = arith.constant 0 : i32
    %c0_i32_0 = arith.constant 0 : i32
    %c0_i32_1 = arith.constant 0 : i32
    return %c0_i32, %c0_i32_0 : i32, i32
  }
  func.func @transform_7(%arg0: i32) -> (i32, i32) {
    %c0_i32 = arith.constant 0 : i32
    %c0_i32_0 = arith.constant 0 : i32
    %c0_i32_1 = arith.constant 0 : i32
    return %c0_i32, %c0_i32_0 : i32, i32
  }
  func.func @transform_8(%arg0: i32) -> (i32, i32) {
    %c0_i32 = arith.constant 0 : i32
    %c0_i32_0 = arith.constant 0 : i32
    %c0_i32_1 = arith.constant 0 : i32
    return %c0_i32, %c0_i32_0 : i32, i32
  }
  func.func @transform_9(%arg0: i32) -> (i32, i32) {
    %c0_i32 = arith.constant 0 : i32
    %c0_i32_0 = arith.constant 0 : i32
    %c0_i32_1 = arith.constant 0 : i32
    return %c0_i32, %c0_i32_0 : i32, i32
  }
  func.func @transform_10(%arg0: i32) -> (i32, i32) {
    %c0_i32 = arith.constant 0 : i32
    %c0_i32_0 = arith.constant 0 : i32
    %c0_i32_1 = arith.constant 0 : i32
    return %c0_i32, %c0_i32_0 : i32, i32
  }
  func.func @transform_11(%arg0: i32) -> (i32, i32) {
    %c0_i32 = arith.constant 0 : i32
    %c0_i32_0 = arith.constant 0 : i32
    %c0_i32_1 = arith.constant 0 : i32
    return %c0_i32, %c0_i32_0 : i32, i32
  }
  func.func @transform_12(%arg0: i32) -> (i32, i32) {
    %c0_i32 = arith.constant 0 : i32
    %c0_i32_0 = arith.constant 0 : i32
    %c0_i32_1 = arith.constant 0 : i32
    return %c0_i32, %c0_i32_0 : i32, i32
  }
  func.func @transform_13(%arg0: i32) -> (i32, i32) {
    %c0_i32 = arith.constant 0 : i32
    %c0_i32_0 = arith.constant 0 : i32
    %c0_i32_1 = arith.constant 0 : i32
    return %c0_i32, %c0_i32_0 : i32, i32
  }
  func.func @transform_14(%arg0: i32) -> (i32, i32) {
    %c0_i32 = arith.constant 0 : i32
    %c0_i32_0 = arith.constant 0 : i32
    %c0_i32_1 = arith.constant 0 : i32
    return %c0_i32, %c0_i32_0 : i32, i32
  }
  func.func @transform_15(%arg0: i32) -> (i32, i32) {
    %c0_i32 = arith.constant 0 : i32
    %c0_i32_0 = arith.constant 0 : i32
    return %arg0, %c0_i32 : i32, i32
  }
}

module attributes {stable_mosaic.version = 11 : i64} {
  func.func @_deep_ae_kernel(%arg0: i32, %arg1: memref<32x256xf32, #tpu.memory_space<vmem>>, %arg2: memref<256x512xbf16, #tpu.memory_space<vmem>>, %arg3: memref<1x512xf32, #tpu.memory_space<vmem>>, %arg4: memref<512x256xbf16, #tpu.memory_space<vmem>>, %arg5: memref<1x256xf32, #tpu.memory_space<vmem>>, %arg6: memref<256x128xbf16, #tpu.memory_space<vmem>>, %arg7: memref<1x128xf32, #tpu.memory_space<vmem>>, %arg8: memref<128x128xbf16, #tpu.memory_space<vmem>>, %arg9: memref<1x128xf32, #tpu.memory_space<vmem>>, %arg10: memref<128x256xbf16, #tpu.memory_space<vmem>>, %arg11: memref<1x256xf32, #tpu.memory_space<vmem>>, %arg12: memref<256x512xbf16, #tpu.memory_space<vmem>>, %arg13: memref<1x512xf32, #tpu.memory_space<vmem>>, %arg14: memref<512x256xbf16, #tpu.memory_space<vmem>>, %arg15: memref<1x256xf32, #tpu.memory_space<vmem>>, %arg16: memref<32x256xf32, #tpu.memory_space<vmem>>) attributes {dimension_semantics = [#tpu.dimension_semantics<parallel>], iteration_bounds = array<i64: 2>, scalar_prefetch = 0 : i64, scratch_operands = 0 : i64, tpu.core_type = #tpu.core_type<tc>, window_params = [{transform_indices = @transform_0, window_bounds = array<i64: 32, 256>}, {pipeline_mode = #tpu.pipeline_mode<synchronous>, transform_indices = @transform_1, window_bounds = array<i64: 256, 512>}, {pipeline_mode = #tpu.pipeline_mode<synchronous>, transform_indices = @transform_2, window_bounds = array<i64: 1, 512>}, {pipeline_mode = #tpu.pipeline_mode<synchronous>, transform_indices = @transform_3, window_bounds = array<i64: 512, 256>}, {pipeline_mode = #tpu.pipeline_mode<synchronous>, transform_indices = @transform_4, window_bounds = array<i64: 1, 256>}, {pipeline_mode = #tpu.pipeline_mode<synchronous>, transform_indices = @transform_5, window_bounds = array<i64: 256, 128>}, {pipeline_mode = #tpu.pipeline_mode<synchronous>, transform_indices = @transform_6, window_bounds = array<i64: 1, 128>}, {pipeline_mode = #tpu.pipeline_mode<synchronous>, transform_indices = @transform_7, window_bounds = array<i64: 128, 128>}, {pipeline_mode = #tpu.pipeline_mode<synchronous>, transform_indices = @transform_8, window_bounds = array<i64: 1, 128>}, {pipeline_mode = #tpu.pipeline_mode<synchronous>, transform_indices = @transform_9, window_bounds = array<i64: 128, 256>}, {pipeline_mode = #tpu.pipeline_mode<synchronous>, transform_indices = @transform_10, window_bounds = array<i64: 1, 256>}, {pipeline_mode = #tpu.pipeline_mode<synchronous>, transform_indices = @transform_11, window_bounds = array<i64: 256, 512>}, {pipeline_mode = #tpu.pipeline_mode<synchronous>, transform_indices = @transform_12, window_bounds = array<i64: 1, 512>}, {pipeline_mode = #tpu.pipeline_mode<synchronous>, transform_indices = @transform_13, window_bounds = array<i64: 512, 256>}, {pipeline_mode = #tpu.pipeline_mode<synchronous>, transform_indices = @transform_14, window_bounds = array<i64: 1, 256>}, {transform_indices = @transform_15, window_bounds = array<i64: 32, 256>}]} {
    %c0 = arith.constant 0 : index
    %c0_0 = arith.constant 0 : index
    %0 = vector.load %arg1[%c0, %c0_0] : memref<32x256xf32, #tpu.memory_space<vmem>>, vector<32x256xf32>
    %1 = arith.truncf %0 : vector<32x256xf32> to vector<32x256xbf16>
    %c0_1 = arith.constant 0 : index
    %c0_2 = arith.constant 0 : index
    %2 = vector.load %arg2[%c0_1, %c0_2] : memref<256x512xbf16, #tpu.memory_space<vmem>>, vector<256x512xbf16>
    %c0_3 = arith.constant 0 : index
    %c0_4 = arith.constant 0 : index
    %3 = vector.load %arg3[%c0_3, %c0_4] : memref<1x512xf32, #tpu.memory_space<vmem>>, vector<1x512xf32>
    %cst = arith.constant dense<0.000000e+00> : vector<32x512xf32>
    %4 = tpu.matmul %1, %2, %cst {dimension_numbers = #tpu.dot_dimension_numbers<[1], [0], [0], [1], [0, 0, 1, 1], [], []>} : vector<32x256xbf16>, vector<256x512xbf16>, vector<32x512xf32> -> vector<32x512xf32>
    %5 = vector.broadcast %3 : vector<1x512xf32> to vector<32x512xf32>
    %6 = arith.addf %4, %5 : vector<32x512xf32>
    %7 = arith.truncf %6 : vector<32x512xf32> to vector<32x512xbf16>
    %cst_5 = arith.constant 0.000000e+00 : bf16
    %8 = vector.broadcast %cst_5 : bf16 to vector<32x512xbf16>
    %9 = arith.maximumf %7, %8 : vector<32x512xbf16>
    %c0_6 = arith.constant 0 : index
    %c0_7 = arith.constant 0 : index
    %10 = vector.load %arg4[%c0_6, %c0_7] : memref<512x256xbf16, #tpu.memory_space<vmem>>, vector<512x256xbf16>
    %c0_8 = arith.constant 0 : index
    %c0_9 = arith.constant 0 : index
    %11 = vector.load %arg5[%c0_8, %c0_9] : memref<1x256xf32, #tpu.memory_space<vmem>>, vector<1x256xf32>
    %cst_10 = arith.constant dense<0.000000e+00> : vector<32x256xf32>
    %12 = tpu.matmul %9, %10, %cst_10 {dimension_numbers = #tpu.dot_dimension_numbers<[1], [0], [0], [1], [0, 0, 1, 1], [], []>} : vector<32x512xbf16>, vector<512x256xbf16>, vector<32x256xf32> -> vector<32x256xf32>
    %13 = vector.broadcast %11 : vector<1x256xf32> to vector<32x256xf32>
    %14 = arith.addf %12, %13 : vector<32x256xf32>
    %15 = arith.truncf %14 : vector<32x256xf32> to vector<32x256xbf16>
    %cst_11 = arith.constant 0.000000e+00 : bf16
    %16 = vector.broadcast %cst_11 : bf16 to vector<32x256xbf16>
    %17 = arith.maximumf %15, %16 : vector<32x256xbf16>
    %c0_12 = arith.constant 0 : index
    %c0_13 = arith.constant 0 : index
    %18 = vector.load %arg6[%c0_12, %c0_13] : memref<256x128xbf16, #tpu.memory_space<vmem>>, vector<256x128xbf16>
    %c0_14 = arith.constant 0 : index
    %c0_15 = arith.constant 0 : index
    %19 = vector.load %arg7[%c0_14, %c0_15] : memref<1x128xf32, #tpu.memory_space<vmem>>, vector<1x128xf32>
    %cst_16 = arith.constant dense<0.000000e+00> : vector<32x128xf32>
    %20 = tpu.matmul %17, %18, %cst_16 {dimension_numbers = #tpu.dot_dimension_numbers<[1], [0], [0], [1], [0, 0, 1, 1], [], []>} : vector<32x256xbf16>, vector<256x128xbf16>, vector<32x128xf32> -> vector<32x128xf32>
    %21 = vector.broadcast %19 : vector<1x128xf32> to vector<32x128xf32>
    %22 = arith.addf %20, %21 : vector<32x128xf32>
    %23 = arith.truncf %22 : vector<32x128xf32> to vector<32x128xbf16>
    %cst_17 = arith.constant 0.000000e+00 : bf16
    %24 = vector.broadcast %cst_17 : bf16 to vector<32x128xbf16>
    %25 = arith.maximumf %23, %24 : vector<32x128xbf16>
    %c0_18 = arith.constant 0 : index
    %c0_19 = arith.constant 0 : index
    %26 = vector.load %arg8[%c0_18, %c0_19] : memref<128x128xbf16, #tpu.memory_space<vmem>>, vector<128x128xbf16>
    %c0_20 = arith.constant 0 : index
    %c0_21 = arith.constant 0 : index
    %27 = vector.load %arg9[%c0_20, %c0_21] : memref<1x128xf32, #tpu.memory_space<vmem>>, vector<1x128xf32>
    %cst_22 = arith.constant dense<0.000000e+00> : vector<32x128xf32>
    %28 = tpu.matmul %25, %26, %cst_22 {dimension_numbers = #tpu.dot_dimension_numbers<[1], [0], [0], [1], [0, 0, 1, 1], [], []>} : vector<32x128xbf16>, vector<128x128xbf16>, vector<32x128xf32> -> vector<32x128xf32>
    %29 = vector.broadcast %27 : vector<1x128xf32> to vector<32x128xf32>
    %30 = arith.addf %28, %29 : vector<32x128xf32>
    %31 = arith.truncf %30 : vector<32x128xf32> to vector<32x128xbf16>
    %cst_23 = arith.constant 0.000000e+00 : bf16
    %32 = vector.broadcast %cst_23 : bf16 to vector<32x128xbf16>
    %33 = arith.maximumf %31, %32 : vector<32x128xbf16>
    %c0_24 = arith.constant 0 : index
    %c0_25 = arith.constant 0 : index
    %34 = vector.load %arg10[%c0_24, %c0_25] : memref<128x256xbf16, #tpu.memory_space<vmem>>, vector<128x256xbf16>
    %c0_26 = arith.constant 0 : index
    %c0_27 = arith.constant 0 : index
    %35 = vector.load %arg11[%c0_26, %c0_27] : memref<1x256xf32, #tpu.memory_space<vmem>>, vector<1x256xf32>
    %cst_28 = arith.constant dense<0.000000e+00> : vector<32x256xf32>
    %36 = tpu.matmul %33, %34, %cst_28 {dimension_numbers = #tpu.dot_dimension_numbers<[1], [0], [0], [1], [0, 0, 1, 1], [], []>} : vector<32x128xbf16>, vector<128x256xbf16>, vector<32x256xf32> -> vector<32x256xf32>
    %37 = vector.broadcast %35 : vector<1x256xf32> to vector<32x256xf32>
    %38 = arith.addf %36, %37 : vector<32x256xf32>
    %39 = arith.truncf %38 : vector<32x256xf32> to vector<32x256xbf16>
    %cst_29 = arith.constant 0.000000e+00 : bf16
    %40 = vector.broadcast %cst_29 : bf16 to vector<32x256xbf16>
    %41 = arith.maximumf %39, %40 : vector<32x256xbf16>
    %c0_30 = arith.constant 0 : index
    %c0_31 = arith.constant 0 : index
    %42 = vector.load %arg12[%c0_30, %c0_31] : memref<256x512xbf16, #tpu.memory_space<vmem>>, vector<256x512xbf16>
    %c0_32 = arith.constant 0 : index
    %c0_33 = arith.constant 0 : index
    %43 = vector.load %arg13[%c0_32, %c0_33] : memref<1x512xf32, #tpu.memory_space<vmem>>, vector<1x512xf32>
    %cst_34 = arith.constant dense<0.000000e+00> : vector<32x512xf32>
    %44 = tpu.matmul %41, %42, %cst_34 {dimension_numbers = #tpu.dot_dimension_numbers<[1], [0], [0], [1], [0, 0, 1, 1], [], []>} : vector<32x256xbf16>, vector<256x512xbf16>, vector<32x512xf32> -> vector<32x512xf32>
    %45 = vector.broadcast %43 : vector<1x512xf32> to vector<32x512xf32>
    %46 = arith.addf %44, %45 : vector<32x512xf32>
    %47 = arith.truncf %46 : vector<32x512xf32> to vector<32x512xbf16>
    %cst_35 = arith.constant 0.000000e+00 : bf16
    %48 = vector.broadcast %cst_35 : bf16 to vector<32x512xbf16>
    %49 = arith.maximumf %47, %48 : vector<32x512xbf16>
    %c0_36 = arith.constant 0 : index
    %c0_37 = arith.constant 0 : index
    %50 = vector.load %arg14[%c0_36, %c0_37] : memref<512x256xbf16, #tpu.memory_space<vmem>>, vector<512x256xbf16>
    %c0_38 = arith.constant 0 : index
    %c0_39 = arith.constant 0 : index
    %51 = vector.load %arg15[%c0_38, %c0_39] : memref<1x256xf32, #tpu.memory_space<vmem>>, vector<1x256xf32>
    %cst_40 = arith.constant dense<0.000000e+00> : vector<32x256xf32>
    %52 = tpu.matmul %49, %50, %cst_40 {dimension_numbers = #tpu.dot_dimension_numbers<[1], [0], [0], [1], [0, 0, 1, 1], [], []>} : vector<32x512xbf16>, vector<512x256xbf16>, vector<32x256xf32> -> vector<32x256xf32>
    %53 = vector.broadcast %51 : vector<1x256xf32> to vector<32x256xf32>
    %54 = arith.addf %52, %53 : vector<32x256xf32>
    %c0_41 = arith.constant 0 : index
    %c0_42 = arith.constant 0 : index
    %55 = vector.load %arg16[%c0_41, %c0_42] : memref<32x256xf32, #tpu.memory_space<vmem>>, vector<32x256xf32>
    tpu.vector_store %arg16[%c0_41, %c0_42], %54 {strides = array<i32>} : memref<32x256xf32, #tpu.memory_space<vmem>>, vector<32x256xf32>,
    return
  }
  func.func @transform_0(%arg0: i32) -> (i32, i32) {
    %c0_i32 = arith.constant 0 : i32
    %c0_i32_0 = arith.constant 0 : i32
    return %arg0, %c0_i32 : i32, i32
  }
  func.func @transform_1(%arg0: i32) -> (i32, i32) {
    %c0_i32 = arith.constant 0 : i32
    %c0_i32_0 = arith.constant 0 : i32
    %c0_i32_1 = arith.constant 0 : i32
    return %c0_i32, %c0_i32_0 : i32, i32
  }
  func.func @transform_2(%arg0: i32) -> (i32, i32) {
    %c0_i32 = arith.constant 0 : i32
    %c0_i32_0 = arith.constant 0 : i32
    %c0_i32_1 = arith.constant 0 : i32
    return %c0_i32, %c0_i32_0 : i32, i32
  }
  func.func @transform_3(%arg0: i32) -> (i32, i32) {
    %c0_i32 = arith.constant 0 : i32
    %c0_i32_0 = arith.constant 0 : i32
    %c0_i32_1 = arith.constant 0 : i32
    return %c0_i32, %c0_i32_0 : i32, i32
  }
  func.func @transform_4(%arg0: i32) -> (i32, i32) {
    %c0_i32 = arith.constant 0 : i32
    %c0_i32_0 = arith.constant 0 : i32
    %c0_i32_1 = arith.constant 0 : i32
    return %c0_i32, %c0_i32_0 : i32, i32
  }
  func.func @transform_5(%arg0: i32) -> (i32, i32) {
    %c0_i32 = arith.constant 0 : i32
    %c0_i32_0 = arith.constant 0 : i32
    %c0_i32_1 = arith.constant 0 : i32
    return %c0_i32, %c0_i32_0 : i32, i32
  }
  func.func @transform_6(%arg0: i32) -> (i32, i32) {
    %c0_i32 = arith.constant 0 : i32
    %c0_i32_0 = arith.constant 0 : i32
    %c0_i32_1 = arith.constant 0 : i32
    return %c0_i32, %c0_i32_0 : i32, i32
  }
  func.func @transform_7(%arg0: i32) -> (i32, i32) {
    %c0_i32 = arith.constant 0 : i32
    %c0_i32_0 = arith.constant 0 : i32
    %c0_i32_1 = arith.constant 0 : i32
    return %c0_i32, %c0_i32_0 : i32, i32
  }
  func.func @transform_8(%arg0: i32) -> (i32, i32) {
    %c0_i32 = arith.constant 0 : i32
    %c0_i32_0 = arith.constant 0 : i32
    %c0_i32_1 = arith.constant 0 : i32
    return %c0_i32, %c0_i32_0 : i32, i32
  }
  func.func @transform_9(%arg0: i32) -> (i32, i32) {
    %c0_i32 = arith.constant 0 : i32
    %c0_i32_0 = arith.constant 0 : i32
    %c0_i32_1 = arith.constant 0 : i32
    return %c0_i32, %c0_i32_0 : i32, i32
  }
  func.func @transform_10(%arg0: i32) -> (i32, i32) {
    %c0_i32 = arith.constant 0 : i32
    %c0_i32_0 = arith.constant 0 : i32
    %c0_i32_1 = arith.constant 0 : i32
    return %c0_i32, %c0_i32_0 : i32, i32
  }
  func.func @transform_11(%arg0: i32) -> (i32, i32) {
    %c0_i32 = arith.constant 0 : i32
    %c0_i32_0 = arith.constant 0 : i32
    %c0_i32_1 = arith.constant 0 : i32
    return %c0_i32, %c0_i32_0 : i32, i32
  }
  func.func @transform_12(%arg0: i32) -> (i32, i32) {
    %c0_i32 = arith.constant 0 : i32
    %c0_i32_0 = arith.constant 0 : i32
    %c0_i32_1 = arith.constant 0 : i32
    return %c0_i32, %c0_i32_0 : i32, i32
  }
  func.func @transform_13(%arg0: i32) -> (i32, i32) {
    %c0_i32 = arith.constant 0 : i32
    %c0_i32_0 = arith.constant 0 : i32
    %c0_i32_1 = arith.constant 0 : i32
    return %c0_i32, %c0_i32_0 : i32, i32
  }
  func.func @transform_14(%arg0: i32) -> (i32, i32) {
    %c0_i32 = arith.constant 0 : i32
    %c0_i32_0 = arith.constant 0 : i32
    %c0_i32_1 = arith.constant 0 : i32
    return %c0_i32, %c0_i32_0 : i32, i32
  }
  func.func @transform_15(%arg0: i32) -> (i32, i32) {
    %c0_i32 = arith.constant 0 : i32
    %c0_i32_0 = arith.constant 0 : i32
    return %arg0, %c0_i32 : i32, i32
  }
}

</mosaic_0001>

<llo_original>
// kernel: _forward_impl.1
$region0: #{_forward_impl.1}
  #allocation0 [shape = 'u32[]', space=smem, size = 0x4, offset = 0x4, fixed_abs, tag = 'smem constant byte address 0x4 - core index']
  #allocation1 [shape = 'u32[144,128]{1,0:T(1,128)}', space=vmem, size = 0x12000, scoped, tag = 'internal scratch']
  %s0 = inlined_call_operand.vmem [shape: f32[64,256], index: 0, kind: input, shape index: {}]
  %s1 = inlined_call_operand.hbm [shape: bf16[256,512], index: 1, kind: input, shape index: {}]
  %s2 = inlined_call_operand.vmem [shape: f32[1,512], index: 2, kind: input, shape index: {}]
  %s3 = inlined_call_operand.hbm [shape: bf16[512,256], index: 3, kind: input, shape index: {}]
  %s4 = inlined_call_operand.vmem [shape: f32[1,256], index: 4, kind: input, shape index: {}]
  %s5 = inlined_call_operand.hbm [shape: bf16[256,128], index: 5, kind: input, shape index: {}]
  %s6 = inlined_call_operand.vmem [shape: f32[1,128], index: 6, kind: input, shape index: {}]
  %s7 = inlined_call_operand.vmem [shape: bf16[128,128], index: 7, kind: input, shape index: {}]
  %s8 = inlined_call_operand.vmem [shape: f32[1,128], index: 8, kind: input, shape index: {}]
  %s9 = inlined_call_operand.hbm [shape: bf16[128,256], index: 9, kind: input, shape index: {}]
  %s10 = inlined_call_operand.vmem [shape: f32[1,256], index: 10, kind: input, shape index: {}]
  %s11 = inlined_call_operand.hbm [shape: bf16[256,512], index: 11, kind: input, shape index: {}]
  %s12 = inlined_call_operand.vmem [shape: f32[1,512], index: 12, kind: input, shape index: {}]
  %s13 = inlined_call_operand.hbm [shape: bf16[512,256], index: 13, kind: input, shape index: {}]
  %s14 = inlined_call_operand.vmem [shape: f32[1,256], index: 14, kind: input, shape index: {}]
  %s15 = inlined_call_operand.hbm [shape: f32[64,256], index: 15, kind: output, shape index: {}]
  %s16 = sld [smem:[#allocation0]]
  $region117: #{_forward_impl.1} parent=0
    _
  %s18 = ssub.s32 1, %s16
  %s19 = scalar_select 0, %s18, %s16
  $region1: #{_forward_impl.1} parent=0
    #allocation2 [shape = 'u8[262144]{0}', space=vmem, size = 0x40000, scoped, tag = 'input window, operand 1, single buffered']
    #allocation3 [shape = 's32[2]{0}', space=sflag, size = 0x8, scoped, tag = 'scoped memory for _forward_impl.1']
    #allocation4 [shape = 's32[2]{0}', space=sflag, size = 0x8, scoped, tag = 'scoped memory for _forward_impl.1']
    #allocation5 [shape = 'u8[262144]{0}', space=vmem, size = 0x40000, scoped, tag = 'input window, operand 3, single buffered']
    #allocation6 [shape = 's32[1]{0}', space=sflag, size = 0x4, scoped, tag = 'scoped memory for _forward_impl.1']
    #allocation7 [shape = 'u8[65536]{0}', space=vmem, size = 0x10000, scoped, tag = 'input window, operand 5, single buffered']
    #allocation8 [shape = 'u8[65536]{0}', space=vmem, size = 0x10000, scoped, tag = 'input window, operand 9, single buffered']
    #allocation9 [shape = 's32[1]{0}', space=sflag, size = 0x4, scoped, tag = 'scoped memory for _forward_impl.1']
    #allocation10 [shape = 'u8[262144]{0}', space=vmem, size = 0x40000, scoped, tag = 'input window, operand 11, single buffered']
    #allocation11 [shape = 'u8[262144]{0}', space=vmem, size = 0x40000, scoped, tag = 'input window, operand 13, single buffered']
    #allocation12 [shape = 's32[1]{0}', space=sflag, size = 0x4, scoped, tag = 'scoped memory for _forward_impl.1']
    #allocation13 [shape = 'u8[65536]{0}', space=vmem, size = 0x10000, scoped, tag = 'output window, operand 0']
    %20 = vsyncpa [#allocation3], 0
    %21 = vsyncpa [#allocation6], 0
    %22 = vsyncpa [#allocation9], 0
    %23 = vsyncpa [#allocation12], 0
    %24 = vsyncpa [#allocation4], 0
    %s25 = scalar_lea.sflag [#allocation4], 1
    %26 = vsyncpa %s25, 0
    loop: start=0, step=1, limit=4
    $region2: #{_forward_impl.1} parent=1 // loop_pre_header
      _
    $region3: #{_forward_impl.1} parent=1 // loop_header
      %s28 = sphi 0, %s32
      %p29 = scmp.ge.s32.totalorder %s28, 4
      %s38 = sphi 0, %s40
      %s41 = sphi 0, %s38
      %s42 = sphi 0, %s41
      %s58 = sphi 0, %s42
      %s62 = sphi 0, %s62
      %s64 = sphi 0, %s62
      %s65 = sphi 0, %s64
      %s79 = sphi 0, %s65
      %s83 = sphi 0, %s83
      %s85 = sphi 0, %s83
      %s86 = sphi 0, %s85
      %s100 = sphi 0, %s86
      %s104 = sphi 0, %s104
      %s106 = sphi 0, %s104
      %s107 = sphi 0, %s106
      %s121 = sphi 0, %s107
      %s125 = sphi 0, %s125
      %s127 = sphi 0, %s125
      %s128 = sphi 0, %s127
      %s142 = sphi 0, %s128
      %s146 = sphi 0, %s146
      %s148 = sphi 0, %s146
      %s149 = sphi 0, %s148
      %s163 = sphi 0, %s149
      %s167 = sphi 0, %s167
      %s169 = sphi 0, %s167
      %s170 = sphi 0, %s169
      %s184 = sphi 0, %s170
      %s188 = sphi 0, %s188
      %s190 = sphi 0, %s188
      %s191 = sphi 0, %s190
      %s205 = sphi 0, %s191
      %s209 = sphi 0, %s209
      %s211 = sphi 0, %s209
      %s212 = sphi 0, %s211
      %s226 = sphi 0, %s212
      %s230 = sphi 0, %s230
      %s232 = sphi 0, %s230
      %s233 = sphi 0, %s232
      %s247 = sphi 0, %s233
      %s251 = sphi 0, %s251
      %s253 = sphi 0, %s251
      %s254 = sphi 0, %s253
      %s268 = sphi 0, %s254
      %s272 = sphi 0, %s272
      %s274 = sphi 0, %s272
      %s275 = sphi 0, %s274
      %s289 = sphi 0, %s275
      %s293 = sphi 0, %s293
      %s295 = sphi 0, %s293
      %s296 = sphi 0, %s295
      %s310 = sphi 0, %s296
      %s314 = sphi 0, %s314
      %s316 = sphi 0, %s314
      %s317 = sphi 0, %s316
      %s331 = sphi 0, %s317
      %s335 = sphi 0, %s335
      %s337 = sphi 0, %s335
      %s338 = sphi 0, %s337
      %s352 = sphi 0, %s338
      %s358 = sphi 0, %s360
      %s361 = sphi 0, %s358
      %s362 = sphi 0, %s361
      %s378 = sphi 0, %s362
    $region4: #{_forward_impl.1} parent=1 // loop_header_branch
      %31 = sbr.rel (%p29) target = $region8
    $region5: #{_forward_impl.1} parent=1 // loop_body
      %s33 = ssub.s32 %s28, 1
      %s34 = ssub.s32 %s28, 2
      %s35 = sadd.s32 %s28, 1
      %s36 = ssub.s32 %s28, %s35
      %p37 = scmp.eq.s32.totalorder %s36, 0
      %s39 = sadd.s32 %s38, 1
      %s40 = scalar_select %p37, %s38, %s39
      %p43 = pneg %p37
      %p44 = scmp.eq.s32.totalorder %s28, 1
      %p45 = por %p43, %p44
      %p46 = scmp.ne.s32.totalorder %s38, %s41
      %p47 = scmp.eq.s32.totalorder %s28, 0
      %p48 = por %p46, %p47
      %p49 = scmp.ne.s32.totalorder %s38, %s41
      %p50 = scmp.eq.s32.totalorder %s33, 1
      %p51 = por %p49, %p50
      %p52 = scmp.ne.s32.totalorder %s41, %s42
      %p53 = scmp.eq.s32.totalorder %s33, 0
      %p54 = por %p52, %p53
      %p55 = scmp.ne.s32.totalorder %s41, %s42
      %p56 = scmp.eq.s32.totalorder %s34, 1
      %p57 = por %p55, %p56
      %p59 = scmp.ne.s32.totalorder %s42, %s58
      %p60 = scmp.eq.s32.totalorder %s34, 0
      %p61 = por %p59, %p60
      %s63 = sadd.s32 %s62, 1
      %p66 = scmp.eq.s32.totalorder %s28, 1
      %p67 = scmp.ne.s32.totalorder %s62, %s64
      %p68 = scmp.eq.s32.totalorder %s28, 0
      %p69 = por %p67, %p68
      %p70 = scmp.ne.s32.totalorder %s62, %s64
      %p71 = scmp.eq.s32.totalorder %s33, 1
      %p72 = por %p70, %p71
      %p73 = scmp.ne.s32.totalorder %s64, %s65
      %p74 = scmp.eq.s32.totalorder %s33, 0
      %p75 = por %p73, %p74
      %p76 = scmp.ne.s32.totalorder %s64, %s65
      %p77 = scmp.eq.s32.totalorder %s34, 1
      %p78 = por %p76, %p77
      %p80 = scmp.ne.s32.totalorder %s65, %s79
      %p81 = scmp.eq.s32.totalorder %s34, 0
      %p82 = por %p80, %p81
      %s84 = sadd.s32 %s83, 1
      %p87 = scmp.eq.s32.totalorder %s28, 1
      %p88 = scmp.ne.s32.totalorder %s83, %s85
      %p89 = scmp.eq.s32.totalorder %s28, 0
      %p90 = por %p88, %p89
      %p91 = scmp.ne.s32.totalorder %s83, %s85
      %p92 = scmp.eq.s32.totalorder %s33, 1
      %p93 = por %p91, %p92
      %p94 = scmp.ne.s32.totalorder %s85, %s86
      %p95 = scmp.eq.s32.totalorder %s33, 0
      %p96 = por %p94, %p95
      %p97 = scmp.ne.s32.totalorder %s85, %s86
      %p98 = scmp.eq.s32.totalorder %s34, 1
      %p99 = por %p97, %p98
      %p101 = scmp.ne.s32.totalorder %s86, %s100
      %p102 = scmp.eq.s32.totalorder %s34, 0
      %p103 = por %p101, %p102
      %s105 = sadd.s32 %s104, 1
      %p108 = scmp.eq.s32.totalorder %s28, 1
      %p109 = scmp.ne.s32.totalorder %s104, %s106
      %p110 = scmp.eq.s32.totalorder %s28, 0
      %p111 = por %p109, %p110
      %p112 = scmp.ne.s32.totalorder %s104, %s106
      %p113 = scmp.eq.s32.totalorder %s33, 1
      %p114 = por %p112, %p113
      %p115 = scmp.ne.s32.totalorder %s106, %s107
      %p116 = scmp.eq.s32.totalorder %s33, 0
      %p117 = por %p115, %p116
      %p118 = scmp.ne.s32.totalorder %s106, %s107
      %p119 = scmp.eq.s32.totalorder %s34, 1
      %p120 = por %p118, %p119
      %p122 = scmp.ne.s32.totalorder %s107, %s121
      %p123 = scmp.eq.s32.totalorder %s34, 0
      %p124 = por %p122, %p123
      %s126 = sadd.s32 %s125, 1
      %p129 = scmp.eq.s32.totalorder %s28, 1
      %p130 = scmp.ne.s32.totalorder %s125, %s127
      %p131 = scmp.eq.s32.totalorder %s28, 0
      %p132 = por %p130, %p131
      %p133 = scmp.ne.s32.totalorder %s125, %s127
      %p134 = scmp.eq.s32.totalorder %s33, 1
      %p135 = por %p133, %p134
      %p136 = scmp.ne.s32.totalorder %s127, %s128
      %p137 = scmp.eq.s32.totalorder %s33, 0
      %p138 = por %p136, %p137
      %p139 = scmp.ne.s32.totalorder %s127, %s128
      %p140 = scmp.eq.s32.totalorder %s34, 1
      %p141 = por %p139, %p140
      %p143 = scmp.ne.s32.totalorder %s128, %s142
      %p144 = scmp.eq.s32.totalorder %s34, 0
      %p145 = por %p143, %p144
      %s147 = sadd.s32 %s146, 1
      %p150 = scmp.eq.s32.totalorder %s28, 1
      %p151 = scmp.ne.s32.totalorder %s146, %s148
      %p152 = scmp.eq.s32.totalorder %s28, 0
      %p153 = por %p151, %p152
      %p154 = scmp.ne.s32.totalorder %s146, %s148
      %p155 = scmp.eq.s32.totalorder %s33, 1
      %p156 = por %p154, %p155
      %p157 = scmp.ne.s32.totalorder %s148, %s149
      %p158 = scmp.eq.s32.totalorder %s33, 0
      %p159 = por %p157, %p158
      %p160 = scmp.ne.s32.totalorder %s148, %s149
      %p161 = scmp.eq.s32.totalorder %s34, 1
      %p162 = por %p160, %p161
      %p164 = scmp.ne.s32.totalorder %s149, %s163
      %p165 = scmp.eq.s32.totalorder %s34, 0
      %p166 = por %p164, %p165
      %s168 = sadd.s32 %s167, 1
      %p171 = scmp.eq.s32.totalorder %s28, 1
      %p172 = scmp.ne.s32.totalorder %s167, %s169
      %p173 = scmp.eq.s32.totalorder %s28, 0
      %p174 = por %p172, %p173
      %p175 = scmp.ne.s32.totalorder %s167, %s169
      %p176 = scmp.eq.s32.totalorder %s33, 1
      %p177 = por %p175, %p176
      %p178 = scmp.ne.s32.totalorder %s169, %s170
      %p179 = scmp.eq.s32.totalorder %s33, 0
      %p180 = por %p178, %p179
      %p181 = scmp.ne.s32.totalorder %s169, %s170
      %p182 = scmp.eq.s32.totalorder %s34, 1
      %p183 = por %p181, %p182
      %p185 = scmp.ne.s32.totalorder %s170, %s184
      %p186 = scmp.eq.s32.totalorder %s34, 0
      %p187 = por %p185, %p186
      %s189 = sadd.s32 %s188, 1
      %p192 = scmp.eq.s32.totalorder %s28, 1
      %p193 = scmp.ne.s32.totalorder %s188, %s190
      %p194 = scmp.eq.s32.totalorder %s28, 0
      %p195 = por %p193, %p194
      %p196 = scmp.ne.s32.totalorder %s188, %s190
      %p197 = scmp.eq.s32.totalorder %s33, 1
      %p198 = por %p196, %p197
      %p199 = scmp.ne.s32.totalorder %s190, %s191
      %p200 = scmp.eq.s32.totalorder %s33, 0
      %p201 = por %p199, %p200
      %p202 = scmp.ne.s32.totalorder %s190, %s191
      %p203 = scmp.eq.s32.totalorder %s34, 1
      %p204 = por %p202, %p203
      %p206 = scmp.ne.s32.totalorder %s191, %s205
      %p207 = scmp.eq.s32.totalorder %s34, 0
      %p208 = por %p206, %p207
      %s210 = sadd.s32 %s209, 1
      %p213 = scmp.eq.s32.totalorder %s28, 1
      %p214 = scmp.ne.s32.totalorder %s209, %s211
      %p215 = scmp.eq.s32.totalorder %s28, 0
      %p216 = por %p214, %p215
      %p217 = scmp.ne.s32.totalorder %s209, %s211
      %p218 = scmp.eq.s32.totalorder %s33, 1
      %p219 = por %p217, %p218
      %p220 = scmp.ne.s32.totalorder %s211, %s212
      %p221 = scmp.eq.s32.totalorder %s33, 0
      %p222 = por %p220, %p221
      %p223 = scmp.ne.s32.totalorder %s211, %s212
      %p224 = scmp.eq.s32.totalorder %s34, 1
      %p225 = por %p223, %p224
      %p227 = scmp.ne.s32.totalorder %s212, %s226
      %p228 = scmp.eq.s32.totalorder %s34, 0
      %p229 = por %p227, %p228
      %s231 = sadd.s32 %s230, 1
      %p234 = scmp.eq.s32.totalorder %s28, 1
      %p235 = scmp.ne.s32.totalorder %s230, %s232
      %p236 = scmp.eq.s32.totalorder %s28, 0
      %p237 = por %p235, %p236
      %p238 = scmp.ne.s32.totalorder %s230, %s232
      %p239 = scmp.eq.s32.totalorder %s33, 1
      %p240 = por %p238, %p239
      %p241 = scmp.ne.s32.totalorder %s232, %s233
      %p242 = scmp.eq.s32.totalorder %s33, 0
      %p243 = por %p241, %p242
      %p244 = scmp.ne.s32.totalorder %s232, %s233
      %p245 = scmp.eq.s32.totalorder %s34, 1
      %p246 = por %p244, %p245
      %p248 = scmp.ne.s32.totalorder %s233, %s247
      %p249 = scmp.eq.s32.totalorder %s34, 0
      %p250 = por %p248, %p249
      %s252 = sadd.s32 %s251, 1
      %p255 = scmp.eq.s32.totalorder %s28, 1
      %p256 = scmp.ne.s32.totalorder %s251, %s253
      %p257 = scmp.eq.s32.totalorder %s28, 0
      %p258 = por %p256, %p257
      %p259 = scmp.ne.s32.totalorder %s251, %s253
      %p260 = scmp.eq.s32.totalorder %s33, 1
      %p261 = por %p259, %p260
      %p262 = scmp.ne.s32.totalorder %s253, %s254
      %p263 = scmp.eq.s32.totalorder %s33, 0
      %p264 = por %p262, %p263
      %p265 = scmp.ne.s32.totalorder %s253, %s254
      %p266 = scmp.eq.s32.totalorder %s34, 1
      %p267 = por %p265, %p266
      %p269 = scmp.ne.s32.totalorder %s254, %s268
      %p270 = scmp.eq.s32.totalorder %s34, 0
      %p271 = por %p269, %p270
      %s273 = sadd.s32 %s272, 1
      %p276 = scmp.eq.s32.totalorder %s28, 1
      %p277 = scmp.ne.s32.totalorder %s272, %s274
      %p278 = scmp.eq.s32.totalorder %s28, 0
      %p279 = por %p277, %p278
      %p280 = scmp.ne.s32.totalorder %s272, %s274
      %p281 = scmp.eq.s32.totalorder %s33, 1
      %p282 = por %p280, %p281
      %p283 = scmp.ne.s32.totalorder %s274, %s275
      %p284 = scmp.eq.s32.totalorder %s33, 0
      %p285 = por %p283, %p284
      %p286 = scmp.ne.s32.totalorder %s274, %s275
      %p287 = scmp.eq.s32.totalorder %s34, 1
      %p288 = por %p286, %p287
      %p290 = scmp.ne.s32.totalorder %s275, %s289
      %p291 = scmp.eq.s32.totalorder %s34, 0
      %p292 = por %p290, %p291
      %s294 = sadd.s32 %s293, 1
      %p297 = scmp.eq.s32.totalorder %s28, 1
      %p298 = scmp.ne.s32.totalorder %s293, %s295
      %p299 = scmp.eq.s32.totalorder %s28, 0
      %p300 = por %p298, %p299
      %p301 = scmp.ne.s32.totalorder %s293, %s295
      %p302 = scmp.eq.s32.totalorder %s33, 1
      %p303 = por %p301, %p302
      %p304 = scmp.ne.s32.totalorder %s295, %s296
      %p305 = scmp.eq.s32.totalorder %s33, 0
      %p306 = por %p304, %p305
      %p307 = scmp.ne.s32.totalorder %s295, %s296
      %p308 = scmp.eq.s32.totalorder %s34, 1
      %p309 = por %p307, %p308
      %p311 = scmp.ne.s32.totalorder %s296, %s310
      %p312 = scmp.eq.s32.totalorder %s34, 0
      %p313 = por %p311, %p312
      %s315 = sadd.s32 %s314, 1
      %p318 = scmp.eq.s32.totalorder %s28, 1
      %p319 = scmp.ne.s32.totalorder %s314, %s316
      %p320 = scmp.eq.s32.totalorder %s28, 0
      %p321 = por %p319, %p320
      %p322 = scmp.ne.s32.totalorder %s314, %s316
      %p323 = scmp.eq.s32.totalorder %s33, 1
      %p324 = por %p322, %p323
      %p325 = scmp.ne.s32.totalorder %s316, %s317
      %p326 = scmp.eq.s32.totalorder %s33, 0
      %p327 = por %p325, %p326
      %p328 = scmp.ne.s32.totalorder %s316, %s317
      %p329 = scmp.eq.s32.totalorder %s34, 1
      %p330 = por %p328, %p329
      %p332 = scmp.ne.s32.totalorder %s317, %s331
      %p333 = scmp.eq.s32.totalorder %s34, 0
      %p334 = por %p332, %p333
      %s336 = sadd.s32 %s335, 1
      %p339 = scmp.eq.s32.totalorder %s28, 1
      %p340 = scmp.ne.s32.totalorder %s335, %s337
      %p341 = scmp.eq.s32.totalorder %s28, 0
      %p342 = por %p340, %p341
      %p343 = scmp.ne.s32.totalorder %s335, %s337
      %p344 = scmp.eq.s32.totalorder %s33, 1
      %p345 = por %p343, %p344
      %p346 = scmp.ne.s32.totalorder %s337, %s338
      %p347 = scmp.eq.s32.totalorder %s33, 0
      %p348 = por %p346, %p347
      %p349 = scmp.ne.s32.totalorder %s337, %s338
      %p350 = scmp.eq.s32.totalorder %s34, 1
      %p351 = por %p349, %p350
      %p353 = scmp.ne.s32.totalorder %s338, %s352
      %p354 = scmp.eq.s32.totalorder %s34, 0
      %p355 = por %p353, %p354
      %s356 = ssub.s32 %s28, %s35
      %p357 = scmp.eq.s32.totalorder %s356, 0
      %s359 = sadd.s32 %s358, 1
      %s360 = scalar_select %p357, %s358, %s359
      %p363 = pneg %p357
      %p364 = scmp.eq.s32.totalorder %s28, 1
      %p365 = por %p363, %p364
      %p366 = scmp.ne.s32.totalorder %s358, %s361
      %p367 = scmp.eq.s32.totalorder %s28, 0
      %p368 = por %p366, %p367
      %p369 = scmp.ne.s32.totalorder %s358, %s361
      %p370 = scmp.eq.s32.totalorder %s33, 1
      %p371 = por %p369, %p370
      %p372 = scmp.ne.s32.totalorder %s361, %s362
      %p373 = scmp.eq.s32.totalorder %s33, 0
      %p374 = por %p372, %p373
      %p375 = scmp.ne.s32.totalorder %s361, %s362
      %p376 = scmp.eq.s32.totalorder %s34, 1
      %p377 = por %p375, %p376
      %p379 = scmp.ne.s32.totalorder %s362, %s378
      %p380 = scmp.eq.s32.totalorder %s34, 0
      %p381 = por %p379, %p380
      %p382 = scmp.le.s32.totalorder 1, %s28
      %p383 = scmp.lt.s32.totalorder %s28, 3
      %p384 = pnand %p382, %p383
      %p385 = pneg %p384
      // Predicated region
      $region9: #{_forward_impl.1} parent=5 // pred_check
        _
      $region10: #{_forward_impl.1} parent=5 // pred_check_branch
        %387 = sbr.rel (%p384) target = $region12
      $region11: #{_forward_impl.1} parent=5 // pred_region
        %s388 = ssub.s32 %s28, 1
        // Predicated region
        $region13: #{_forward_impl.1} parent=11 // pred_check
          %p389 = pneg %p75
        $region14: #{_forward_impl.1} parent=11 // pred_check_branch
          %391 = sbr.rel (%p389) target = $region16
        $region15: #{_forward_impl.1} parent=11 // pred_region
          %s393 = ssub.s32 8192, 8192
          %394 = vsyncadd [#allocation3], %s393
          %s395 = sshll.u32 [#allocation2], 4
          %s396 = int_to_ptr.vmem [resolvable:$true] %s395
          %401 = dma.hbm_to_vmem [thread:$0]  %s1, 8192, %s396, [#allocation3], 256, 256, 16
        $region16: #{_forward_impl.1} parent=11 // pred_fallthru
          _
        // Predicated region
        $region17: #{_forward_impl.1} parent=11 // pred_check
          %p402 = pneg %p96
        $region18: #{_forward_impl.1} parent=11 // pred_check_branch
          %404 = sbr.rel (%p402) target = $region20
        $region19: #{_forward_impl.1} parent=11 // pred_region
          _
        $region20: #{_forward_impl.1} parent=11 // pred_fallthru
          _
        // Predicated region
        $region21: #{_forward_impl.1} parent=11 // pred_check
          %p405 = pneg %p117
        $region22: #{_forward_impl.1} parent=11 // pred_check_branch
          %407 = sbr.rel (%p405) target = $region24
        $region23: #{_forward_impl.1} parent=11 // pred_region
          %s409 = ssub.s32 8192, 8192
          %410 = vsyncadd [#allocation6], %s409
          %s411 = sshll.u32 [#allocation5], 4
          %s412 = int_to_ptr.vmem [resolvable:$true] %s411
          %417 = dma.hbm_to_vmem [thread:$0]  %s3, 8192, %s412, [#allocation6], 128, 128, 8
        $region24: #{_forward_impl.1} parent=11 // pred_fallthru
          _
        // Predicated region
        $region25: #{_forward_impl.1} parent=11 // pred_check
          %p418 = pneg %p138
        $region26: #{_forward_impl.1} parent=11 // pred_check_branch
          %420 = sbr.rel (%p418) target = $region28
        $region27: #{_forward_impl.1} parent=11 // pred_region
          _
        $region28: #{_forward_impl.1} parent=11 // pred_fallthru
          _
        // Predicated region
        $region29: #{_forward_impl.1} parent=11 // pred_check
          %p421 = pneg %p159
        $region30: #{_forward_impl.1} parent=11 // pred_check_branch
          %423 = sbr.rel (%p421) target = $region32
        $region31: #{_forward_impl.1} parent=11 // pred_region
          %s425 = ssub.s32 2048, 2048
          %426 = vsyncadd [#allocation6], %s425
          %s427 = sshll.u32 [#allocation7], 4
          %s428 = int_to_ptr.vmem [resolvable:$true] %s427
          %433 = dma.hbm_to_vmem [thread:$0]  %s5, 2048, %s428, [#allocation6], 64, 64, 4
        $region32: #{_forward_impl.1} parent=11 // pred_fallthru
          _
        // Predicated region
        $region33: #{_forward_impl.1} parent=11 // pred_check
          %p434 = pneg %p180
        $region34: #{_forward_impl.1} parent=11 // pred_check_branch
          %436 = sbr.rel (%p434) target = $region36
        $region35: #{_forward_impl.1} parent=11 // pred_region
          _
        $region36: #{_forward_impl.1} parent=11 // pred_fallthru
          _
        // Predicated region
        $region37: #{_forward_impl.1} parent=11 // pred_check
          %p437 = pneg %p201
        $region38: #{_forward_impl.1} parent=11 // pred_check_branch
          %439 = sbr.rel (%p437) target = $region40
        $region39: #{_forward_impl.1} parent=11 // pred_region
          _
        $region40: #{_forward_impl.1} parent=11 // pred_fallthru
          _
        // Predicated region
        $region41: #{_forward_impl.1} parent=11 // pred_check
          %p440 = pneg %p222
        $region42: #{_forward_impl.1} parent=11 // pred_check_branch
          %442 = sbr.rel (%p440) target = $region44
        $region43: #{_forward_impl.1} parent=11 // pred_region
          _
        $region44: #{_forward_impl.1} parent=11 // pred_fallthru
          _
        // Predicated region
        $region45: #{_forward_impl.1} parent=11 // pred_check
          %p443 = pneg %p243
        $region46: #{_forward_impl.1} parent=11 // pred_check_branch
          %445 = sbr.rel (%p443) target = $region48
        $region47: #{_forward_impl.1} parent=11 // pred_region
          %s447 = ssub.s32 2048, 2048
          %448 = vsyncadd [#allocation9], %s447
          %s449 = sshll.u32 [#allocation8], 4
          %s450 = int_to_ptr.vmem [resolvable:$true] %s449
          %455 = dma.hbm_to_vmem [thread:$0]  %s9, 2048, %s450, [#allocation9], 128, 128, 8
        $region48: #{_forward_impl.1} parent=11 // pred_fallthru
          _
        // Predicated region
        $region49: #{_forward_impl.1} parent=11 // pred_check
          %p456 = pneg %p264
        $region50: #{_forward_impl.1} parent=11 // pred_check_branch
          %458 = sbr.rel (%p456) target = $region52
        $region51: #{_forward_impl.1} parent=11 // pred_region
          _
        $region52: #{_forward_impl.1} parent=11 // pred_fallthru
          _
        // Predicated region
        $region53: #{_forward_impl.1} parent=11 // pred_check
          %p459 = pneg %p285
        $region54: #{_forward_impl.1} parent=11 // pred_check_branch
          %461 = sbr.rel (%p459) target = $region56
        $region55: #{_forward_impl.1} parent=11 // pred_region
          %s463 = ssub.s32 8192, 8192
          %464 = vsyncadd [#allocation9], %s463
          %s465 = sshll.u32 [#allocation10], 4
          %s466 = int_to_ptr.vmem [resolvable:$true] %s465
          %471 = dma.hbm_to_vmem [thread:$0]  %s11, 8192, %s466, [#allocation9], 256, 256, 16
        $region56: #{_forward_impl.1} parent=11 // pred_fallthru
          _
        // Predicated region
        $region57: #{_forward_impl.1} parent=11 // pred_check
          %p472 = pneg %p306
        $region58: #{_forward_impl.1} parent=11 // pred_check_branch
          %474 = sbr.rel (%p472) target = $region60
        $region59: #{_forward_impl.1} parent=11 // pred_region
          _
        $region60: #{_forward_impl.1} parent=11 // pred_fallthru
          _
        // Predicated region
        $region61: #{_forward_impl.1} parent=11 // pred_check
          %p475 = pneg %p327
        $region62: #{_forward_impl.1} parent=11 // pred_check_branch
          %477 = sbr.rel (%p475) target = $region64
        $region63: #{_forward_impl.1} parent=11 // pred_region
          %s479 = ssub.s32 8192, 8192
          %480 = vsyncadd [#allocation12], %s479
          %s481 = sshll.u32 [#allocation11], 4
          %s482 = int_to_ptr.vmem [resolvable:$true] %s481
          %487 = dma.hbm_to_vmem [thread:$0]  %s13, 8192, %s482, [#allocation12], 128, 128, 8
        $region64: #{_forward_impl.1} parent=11 // pred_fallthru
          _
        // Predicated region
        $region65: #{_forward_impl.1} parent=11 // pred_check
          %p488 = pneg %p348
        $region66: #{_forward_impl.1} parent=11 // pred_check_branch
          %490 = sbr.rel (%p488) target = $region68
        $region67: #{_forward_impl.1} parent=11 // pred_region
          _
        $region68: #{_forward_impl.1} parent=11 // pred_fallthru
          _
      $region12: #{_forward_impl.1} parent=5 // pred_fallthru
        _
      %p491 = scmp.lt.s32.totalorder %s28, 2
      // Predicated region
      $region69: #{_forward_impl.1} parent=5 // pred_check
        %p492 = pneg %p491
      $region70: #{_forward_impl.1} parent=5 // pred_check_branch
        %494 = sbr.rel (%p492) target = $region72
      $region71: #{_forward_impl.1} parent=5 // pred_region
        // Predicated region
        $region73: #{_forward_impl.1} parent=71 // pred_check
          %p495 = pneg %p48
        $region74: #{_forward_impl.1} parent=71 // pred_check_branch
          %497 = sbr.rel (%p495) target = $region76
        $region75: #{_forward_impl.1} parent=71 // pred_region
          %s498 = smul.u32 4, %s28
          %p499 = scmp.lt.s32.totalorder %s498, 7
          %s500 = scalar_select %p499, %s498, 7
          %s501 = smul.addr %s500, 2
          %s502 = smul.addr %s501, 8
          %s503 = scalar_lea.vmem %s0, %s502
          %s504 = smul.u32 4, %s28
        $region76: #{_forward_impl.1} parent=71 // pred_fallthru
          _
      $region72: #{_forward_impl.1} parent=5 // pred_fallthru
        _
      %p505 = scmp.le.s32.totalorder 1, %s28
      %p506 = scmp.lt.s32.totalorder %s28, 3
      %p507 = pnand %p505, %p506
      %p508 = pneg %p507
      // Predicated region
      $region77: #{_forward_impl.1} parent=5 // pred_check
        _
      $region78: #{_forward_impl.1} parent=5 // pred_check_branch
        %510 = sbr.rel (%p507) target = $region80
      $region79: #{_forward_impl.1} parent=5 // pred_region
        %s511 = ssub.s32 %s28, 1
        // Predicated region
        $region81: #{_forward_impl.1} parent=79 // pred_check
          %p512 = pneg %p75
        $region82: #{_forward_impl.1} parent=79 // pred_check_branch
          %514 = sbr.rel (%p512) target = $region84
        $region83: #{_forward_impl.1} parent=79 // pred_region
          %515 = dma.done [#allocation3], 8192
        $region84: #{_forward_impl.1} parent=79 // pred_fallthru
          _
        // Predicated region
        $region85: #{_forward_impl.1} parent=79 // pred_check
          %p516 = pneg %p117
        $region86: #{_forward_impl.1} parent=79 // pred_check_branch
          %518 = sbr.rel (%p516) target = $region88
        $region87: #{_forward_impl.1} parent=79 // pred_region
          %519 = dma.done [#allocation6], 8192
        $region88: #{_forward_impl.1} parent=79 // pred_fallthru
          _
        // Predicated region
        $region89: #{_forward_impl.1} parent=79 // pred_check
          %p520 = pneg %p159
        $region90: #{_forward_impl.1} parent=79 // pred_check_branch
          %522 = sbr.rel (%p520) target = $region92
        $region91: #{_forward_impl.1} parent=79 // pred_region
          %523 = dma.done [#allocation6], 2048
        $region92: #{_forward_impl.1} parent=79 // pred_fallthru
          _
        // Predicated region
        $region93: #{_forward_impl.1} parent=79 // pred_check
          %p524 = pneg %p243
        $region94: #{_forward_impl.1} parent=79 // pred_check_branch
          %526 = sbr.rel (%p524) target = $region96
        $region95: #{_forward_impl.1} parent=79 // pred_region
          %527 = dma.done [#allocation9], 2048
        $region96: #{_forward_impl.1} parent=79 // pred_fallthru
          _
        // Predicated region
        $region97: #{_forward_impl.1} parent=79 // pred_check
          %p528 = pneg %p285
        $region98: #{_forward_impl.1} parent=79 // pred_check_branch
          %530 = sbr.rel (%p528) target = $region100
        $region99: #{_forward_impl.1} parent=79 // pred_region
          %531 = dma.done [#allocation9], 8192
        $region100: #{_forward_impl.1} parent=79 // pred_fallthru
          _
        // Predicated region
        $region101: #{_forward_impl.1} parent=79 // pred_check
          %p532 = pneg %p327
        $region102: #{_forward_impl.1} parent=79 // pred_check_branch
          %534 = sbr.rel (%p532) target = $region104
        $region103: #{_forward_impl.1} parent=79 // pred_region
          %535 = dma.done [#allocation12], 8192
        $region104: #{_forward_impl.1} parent=79 // pred_fallthru
          _
        %s536 = smul.u32 4, %s33
        %p537 = scmp.lt.s32.totalorder %s536, 7
        %s538 = scalar_select %p537, %s536, 7
        %s539 = smul.addr %s538, 2
        %s540 = smul.addr %s539, 8
        %s541 = scalar_lea.vmem %s0, %s540
        %p542 = pneg %p54
        %p543 = pneg %p51
        %p544 = pneg %p75
        %p545 = pneg %p72
        %p546 = pneg %p96
        %p547 = pneg %p93
        %p548 = pneg %p117
        %p549 = pneg %p114
        %p550 = pneg %p138
        %p551 = pneg %p135
        %p552 = pneg %p159
        %p553 = pneg %p156
        %p554 = pneg %p180
        %p555 = pneg %p177
        %p556 = pneg %p201
        %p557 = pneg %p198
        %p558 = pneg %p222
        %p559 = pneg %p219
        %p560 = pneg %p243
        %p561 = pneg %p240
        %p562 = pneg %p264
        %p563 = pneg %p261
        %p564 = pneg %p285
        %p565 = pneg %p282
        %p566 = pneg %p306
        %p567 = pneg %p303
        %p568 = pneg %p327
        %p569 = pneg %p324
        %p570 = pneg %p348
        %p571 = pneg %p345
        %p572 = pneg %p374
        %p573 = pneg %p371
        %s574 = sand.u32 %s361, 1
        %s575 = scalar_lea.sflag [#allocation4], %s574
        %s576 = sand.u32 %s361, 1
        %s577 = smul.addr %s576, 64
        %s578 = scalar_lea.vmem [#allocation13], %s577
        %s579 = smul.u32 4, %s33
        %p580 = scmp.lt.s32.totalorder %s579, 7
        %s581 = scalar_select %p580, %s579, 7
        %s582 = smul.addr %s581, 2
        %s583 = smul.addr %s582, 8
        %s584 = scalar_lea.vmem %s0, %s583
        %s585 = smul.u32 4, %s33
        %s586 = smul.u32 4, %s33
        %v588 = vld [vmem:[%s584] sm:$0xff]
        %v589 = vld [vmem:[%s584 + $0x8] sm:$0xff]
        %v590 = vld [vmem:[%s584 + $0x10] sm:$0xff]
        %v591 = vld [vmem:[%s584 + $0x18] sm:$0xff]
        %v592 = vld [vmem:[%s584 + $0x20] sm:$0xff]
        %v593 = vld [vmem:[%s584 + $0x28] sm:$0xff]
        %v594 = vld [vmem:[%s584 + $0x30] sm:$0xff]
        %v595 = vld [vmem:[%s584 + $0x38] sm:$0xff]
        %v596 = vpack.c.bf16 %v590, %v588
        %v597 = vpack.c.bf16 %v591, %v589
        %v598 = vpack.c.bf16 %v594, %v592
        %v599 = vpack.c.bf16 %v595, %v593
        %v600 = vld [vmem:[#allocation2] sm:$0xff]
        %v601 = vld [vmem:[#allocation2 + $0x8] sm:$0xff]
        %v602 = vld [vmem:[#allocation2 + $0x10] sm:$0xff]
        %v603 = vld [vmem:[#allocation2 + $0x18] sm:$0xff]
        %v604 = vld [vmem:[#allocation2 + $0x20] sm:$0xff]
        %v605 = vld [vmem:[#allocation2 + $0x28] sm:$0xff]
        %v606 = vld [vmem:[#allocation2 + $0x30] sm:$0xff]
        %v607 = vld [vmem:[#allocation2 + $0x38] sm:$0xff]
        %v608 = vld [vmem:[#allocation2 + $0x40] sm:$0xff]
        %v609 = vld [vmem:[#allocation2 + $0x48] sm:$0xff]
        %v610 = vld [vmem:[#allocation2 + $0x50] sm:$0xff]
        %v611 = vld [vmem:[#allocation2 + $0x58] sm:$0xff]
        %v612 = vld [vmem:[#allocation2 + $0x60] sm:$0xff]
        %v613 = vld [vmem:[#allocation2 + $0x68] sm:$0xff]
        %v614 = vld [vmem:[#allocation2 + $0x70] sm:$0xff]
        %v615 = vld [vmem:[#allocation2 + $0x78] sm:$0xff]
        %v616 = vld [vmem:[#allocation2 + $0x80] sm:$0xff]
        %v617 = vld [vmem:[#allocation2 + $0x88] sm:$0xff]
        %v618 = vld [vmem:[#allocation2 + $0x90] sm:$0xff]
        %v619 = vld [vmem:[#allocation2 + $0x98] sm:$0xff]
        %v620 = vld [vmem:[#allocation2 + $0xa0] sm:$0xff]
        %v621 = vld [vmem:[#allocation2 + $0xa8] sm:$0xff]
        %v622 = vld [vmem:[#allocation2 + $0xb0] sm:$0xff]
        %v623 = vld [vmem:[#allocation2 + $0xb8] sm:$0xff]
        %v624 = vld [vmem:[#allocation2 + $0xc0] sm:$0xff]
        %v625 = vld [vmem:[#allocation2 + $0xc8] sm:$0xff]
        %v626 = vld [vmem:[#allocation2 + $0xd0] sm:$0xff]
        %v627 = vld [vmem:[#allocation2 + $0xd8] sm:$0xff]
        %v628 = vld [vmem:[#allocation2 + $0xe0] sm:$0xff]
        %v629 = vld [vmem:[#allocation2 + $0xe8] sm:$0xff]
        %v630 = vld [vmem:[#allocation2 + $0xf0] sm:$0xff]
        %v631 = vld [vmem:[#allocation2 + $0xf8] sm:$0xff]
        %v632 = vld [vmem:[#allocation2 + $0x100] sm:$0xff]
        %v633 = vld [vmem:[#allocation2 + $0x108] sm:$0xff]
        %v634 = vld [vmem:[#allocation2 + $0x110] sm:$0xff]
        %v635 = vld [vmem:[#allocation2 + $0x118] sm:$0xff]
        %v636 = vld [vmem:[#allocation2 + $0x120] sm:$0xff]
        %v637 = vld [vmem:[#allocation2 + $0x128] sm:$0xff]
        %v638 = vld [vmem:[#allocation2 + $0x130] sm:$0xff]
        %v639 = vld [vmem:[#allocation2 + $0x138] sm:$0xff]
        %v640 = vld [vmem:[#allocation2 + $0x140] sm:$0xff]
        %v641 = vld [vmem:[#allocation2 + $0x148] sm:$0xff]
        %v642 = vld [vmem:[#allocation2 + $0x150] sm:$0xff]
        %v643 = vld [vmem:[#allocation2 + $0x158] sm:$0xff]
        %v644 = vld [vmem:[#allocation2 + $0x160] sm:$0xff]
        %v645 = vld [vmem:[#allocation2 + $0x168] sm:$0xff]
        %v646 = vld [vmem:[#allocation2 + $0x170] sm:$0xff]
        %v647 = vld [vmem:[#allocation2 + $0x178] sm:$0xff]
        %v648 = vld [vmem:[#allocation2 + $0x180] sm:$0xff]
        %v649 = vld [vmem:[#allocation2 + $0x188] sm:$0xff]
        %v650 = vld [vmem:[#allocation2 + $0x190] sm:$0xff]
        %v651 = vld [vmem:[#allocation2 + $0x198] sm:$0xff]
        %v652 = vld [vmem:[#allocation2 + $0x1a0] sm:$0xff]
        %v653 = vld [vmem:[#allocation2 + $0x1a8] sm:$0xff]
        %v654 = vld [vmem:[#allocation2 + $0x1b0] sm:$0xff]
        %v655 = vld [vmem:[#allocation2 + $0x1b8] sm:$0xff]
        %v656 = vld [vmem:[#allocation2 + $0x1c0] sm:$0xff]
        %v657 = vld [vmem:[#allocation2 + $0x1c8] sm:$0xff]
        %v658 = vld [vmem:[#allocation2 + $0x1d0] sm:$0xff]
        %v659 = vld [vmem:[#allocation2 + $0x1d8] sm:$0xff]
        %v660 = vld [vmem:[#allocation2 + $0x1e0] sm:$0xff]
        %v661 = vld [vmem:[#allocation2 + $0x1e8] sm:$0xff]
        %v662 = vld [vmem:[#allocation2 + $0x1f0] sm:$0xff]
        %v663 = vld [vmem:[#allocation2 + $0x1f8] sm:$0xff]
        %v664 = vld [vmem:[%s2] sm:$0xf]
        %v666 = vlaneseq
        %v667 = vshrl.u32 %v666, 7
        %v668 = vsub.s32 0, %v667
        %v669 = vrot.slane %v664, %v668
        %v670 = vlaneseq
        %v671 = vshrl.u32 %v670, 7
        %v672 = vsub.s32 1, %v671
        %v673 = vrot.slane %v664, %v672
        %v674 = vlaneseq
        %v675 = vshrl.u32 %v674, 7
        %v676 = vsub.s32 2, %v675
        %v677 = vrot.slane %v664, %v676
        %v678 = vlaneseq
        %v679 = vshrl.u32 %v678, 7
        %v680 = vsub.s32 3, %v679
        %v681 = vrot.slane %v664, %v680
        %v750 = vunpack.c.l.b16 %v600
        %v751 = vunpack.c.h.b16 %v600
        %v752 = vunpack.c.l.b16 %v601
        %v753 = vunpack.c.h.b16 %v601
        %v754 = vunpack.c.l.b16 %v602
        %v755 = vunpack.c.h.b16 %v602
        %v756 = vunpack.c.l.b16 %v603
        %v757 = vunpack.c.h.b16 %v603
        %v758 = vunpack.c.l.b16 %v604
        %v759 = vunpack.c.h.b16 %v604
        %v760 = vunpack.c.l.b16 %v605
        %v761 = vunpack.c.h.b16 %v605
        %v762 = vunpack.c.l.b16 %v606
        %v763 = vunpack.c.h.b16 %v606
        %v764 = vunpack.c.l.b16 %v607
        %v765 = vunpack.c.h.b16 %v607
        %v766 = vunpack.c.l.b16 %v608
        %v767 = vunpack.c.h.b16 %v608
        %v768 = vunpack.c.l.b16 %v609
        %v769 = vunpack.c.h.b16 %v609
        %v770 = vunpack.c.l.b16 %v610
        %v771 = vunpack.c.h.b16 %v610
        %v772 = vunpack.c.l.b16 %v611
        %v773 = vunpack.c.h.b16 %v611
        %v774 = vunpack.c.l.b16 %v612
        %v775 = vunpack.c.h.b16 %v612
        %v776 = vunpack.c.l.b16 %v613
        %v777 = vunpack.c.h.b16 %v613
        %v778 = vunpack.c.l.b16 %v614
        %v779 = vunpack.c.h.b16 %v614
        %v780 = vunpack.c.l.b16 %v615
        %v781 = vunpack.c.h.b16 %v615
        %v782 = vunpack.c.l.b16 %v616
        %v783 = vunpack.c.h.b16 %v616
        %v784 = vunpack.c.l.b16 %v617
        %v785 = vunpack.c.h.b16 %v617
        %v786 = vunpack.c.l.b16 %v618
        %v787 = vunpack.c.h.b16 %v618
        %v788 = vunpack.c.l.b16 %v619
        %v789 = vunpack.c.h.b16 %v619
        %v790 = vunpack.c.l.b16 %v620
        %v791 = vunpack.c.h.b16 %v620
        %v792 = vunpack.c.l.b16 %v621
        %v793 = vunpack.c.h.b16 %v621
        %v794 = vunpack.c.l.b16 %v622
        %v795 = vunpack.c.h.b16 %v622
        %v796 = vunpack.c.l.b16 %v623
        %v797 = vunpack.c.h.b16 %v623
        %v798 = vunpack.c.l.b16 %v624
        %v799 = vunpack.c.h.b16 %v624
        %v800 = vunpack.c.l.b16 %v625
        %v801 = vunpack.c.h.b16 %v625
        %v802 = vunpack.c.l.b16 %v626
        %v803 = vunpack.c.h.b16 %v626
        %v804 = vunpack.c.l.b16 %v627
        %v805 = vunpack.c.h.b16 %v627
        %v806 = vunpack.c.l.b16 %v628
        %v807 = vunpack.c.h.b16 %v628
        %v808 = vunpack.c.l.b16 %v629
        %v809 = vunpack.c.h.b16 %v629
        %v810 = vunpack.c.l.b16 %v630
        %v811 = vunpack.c.h.b16 %v630
        %v812 = vunpack.c.l.b16 %v631
        %v813 = vunpack.c.h.b16 %v631
        %v814 = vunpack.c.l.b16 %v632
        %v815 = vunpack.c.h.b16 %v632
        %v816 = vunpack.c.l.b16 %v633
        %v817 = vunpack.c.h.b16 %v633
        %v818 = vunpack.c.l.b16 %v634
        %v819 = vunpack.c.h.b16 %v634
        %v820 = vunpack.c.l.b16 %v635
        %v821 = vunpack.c.h.b16 %v635
        %v822 = vunpack.c.l.b16 %v636
        %v823 = vunpack.c.h.b16 %v636
        %v824 = vunpack.c.l.b16 %v637
        %v825 = vunpack.c.h.b16 %v637
        %v826 = vunpack.c.l.b16 %v638
        %v827 = vunpack.c.h.b16 %v638
        %v828 = vunpack.c.l.b16 %v639
        %v829 = vunpack.c.h.b16 %v639
        %v830 = vunpack.c.l.b16 %v640
        %v831 = vunpack.c.h.b16 %v640
        %v832 = vunpack.c.l.b16 %v641
        %v833 = vunpack.c.h.b16 %v641
        %v834 = vunpack.c.l.b16 %v642
        %v835 = vunpack.c.h.b16 %v642
        %v836 = vunpack.c.l.b16 %v643
        %v837 = vunpack.c.h.b16 %v643
        %v838 = vunpack.c.l.b16 %v644
        %v839 = vunpack.c.h.b16 %v644
        %v840 = vunpack.c.l.b16 %v645
        %v841 = vunpack.c.h.b16 %v645
        %v842 = vunpack.c.l.b16 %v646
        %v843 = vunpack.c.h.b16 %v646
        %v844 = vunpack.c.l.b16 %v647
        %v845 = vunpack.c.h.b16 %v647
        %v846 = vunpack.c.l.b16 %v648
        %v847 = vunpack.c.h.b16 %v648
        %v848 = vunpack.c.l.b16 %v649
        %v849 = vunpack.c.h.b16 %v649
        %v850 = vunpack.c.l.b16 %v650
        %v851 = vunpack.c.h.b16 %v650
        %v852 = vunpack.c.l.b16 %v651
        %v853 = vunpack.c.h.b16 %v651
        %v854 = vunpack.c.l.b16 %v652
        %v855 = vunpack.c.h.b16 %v652
        %v856 = vunpack.c.l.b16 %v653
        %v857 = vunpack.c.h.b16 %v653
        %v858 = vunpack.c.l.b16 %v654
        %v859 = vunpack.c.h.b16 %v654
        %v860 = vunpack.c.l.b16 %v655
        %v861 = vunpack.c.h.b16 %v655
        %v862 = vunpack.c.l.b16 %v656
        %v863 = vunpack.c.h.b16 %v656
        %v864 = vunpack.c.l.b16 %v657
        %v865 = vunpack.c.h.b16 %v657
        %v866 = vunpack.c.l.b16 %v658
        %v867 = vunpack.c.h.b16 %v658
        %v868 = vunpack.c.l.b16 %v659
        %v869 = vunpack.c.h.b16 %v659
        %v870 = vunpack.c.l.b16 %v660
        %v871 = vunpack.c.h.b16 %v660
        %v872 = vunpack.c.l.b16 %v661
        %v873 = vunpack.c.h.b16 %v661
        %v874 = vunpack.c.l.b16 %v662
        %v875 = vunpack.c.h.b16 %v662
        %v876 = vunpack.c.l.b16 %v663
        %v877 = vunpack.c.h.b16 %v663
        %v878 = vpack.c.b16 %v754, %v750
        %v879 = vpack.c.b16 %v755, %v751
        %v880 = vpack.c.b16 %v756, %v752
        %v881 = vpack.c.b16 %v757, %v753
        %v882 = vpack.c.b16 %v762, %v758
        %v883 = vpack.c.b16 %v763, %v759
        %v884 = vpack.c.b16 %v764, %v760
        %v885 = vpack.c.b16 %v765, %v761
        %v886 = vpack.c.b16 %v770, %v766
        %v887 = vpack.c.b16 %v771, %v767
        %v888 = vpack.c.b16 %v772, %v768
        %v889 = vpack.c.b16 %v773, %v769
        %v890 = vpack.c.b16 %v778, %v774
        %v891 = vpack.c.b16 %v779, %v775
        %v892 = vpack.c.b16 %v780, %v776
        %v893 = vpack.c.b16 %v781, %v777
        %v894 = vpack.c.b16 %v786, %v782
        %v895 = vpack.c.b16 %v787, %v783
        %v896 = vpack.c.b16 %v788, %v784
        %v897 = vpack.c.b16 %v789, %v785
        %v898 = vpack.c.b16 %v794, %v790
        %v899 = vpack.c.b16 %v795, %v791
        %v900 = vpack.c.b16 %v796, %v792
        %v901 = vpack.c.b16 %v797, %v793
        %v902 = vpack.c.b16 %v802, %v798
        %v903 = vpack.c.b16 %v803, %v799
        %v904 = vpack.c.b16 %v804, %v800
        %v905 = vpack.c.b16 %v805, %v801
        %v906 = vpack.c.b16 %v810, %v806
        %v907 = vpack.c.b16 %v811, %v807
        %v908 = vpack.c.b16 %v812, %v808
        %v909 = vpack.c.b16 %v813, %v809
        %v910 = vpack.c.b16 %v818, %v814
        %v911 = vpack.c.b16 %v819, %v815
        %v912 = vpack.c.b16 %v820, %v816
        %v913 = vpack.c.b16 %v821, %v817
        %v914 = vpack.c.b16 %v826, %v822
        %v915 = vpack.c.b16 %v827, %v823
        %v916 = vpack.c.b16 %v828, %v824
        %v917 = vpack.c.b16 %v829, %v825
        %v918 = vpack.c.b16 %v834, %v830
        %v919 = vpack.c.b16 %v835, %v831
        %v920 = vpack.c.b16 %v836, %v832
        %v921 = vpack.c.b16 %v837, %v833
        %v922 = vpack.c.b16 %v842, %v838
        %v923 = vpack.c.b16 %v843, %v839
        %v924 = vpack.c.b16 %v844, %v840
        %v925 = vpack.c.b16 %v845, %v841
        %v926 = vpack.c.b16 %v850, %v846
        %v927 = vpack.c.b16 %v851, %v847
        %v928 = vpack.c.b16 %v852, %v848
        %v929 = vpack.c.b16 %v853, %v849
        %v930 = vpack.c.b16 %v858, %v854
        %v931 = vpack.c.b16 %v859, %v855
        %v932 = vpack.c.b16 %v860, %v856
        %v933 = vpack.c.b16 %v861, %v857
        %v934 = vpack.c.b16 %v866, %v862
        %v935 = vpack.c.b16 %v867, %v863
        %v936 = vpack.c.b16 %v868, %v864
        %v937 = vpack.c.b16 %v869, %v865
        %v938 = vpack.c.b16 %v874, %v870
        %v939 = vpack.c.b16 %v875, %v871
        %v940 = vpack.c.b16 %v876, %v872
        %v941 = vpack.c.b16 %v877, %v873
        %1006 = vmatprep.subr.bf16.mxu0 %v879
        %1007 = vmatpush1.bf16.msra.mxu0 %v878
        %1008 = vmatprep.subr.bf16.mxu0 %v883
        %1009 = vmatpush1.bf16.msra.mxu0 %v882
        %1010 = vmatprep.subr.bf16.mxu0 %v887
        %1011 = vmatpush1.bf16.msra.mxu0 %v886
        %1012 = vmatprep.subr.bf16.mxu0 %v891
        %1013 = vmatpush1.bf16.msra.mxu0 %v890
        %1014 = vmatprep.subr.bf16.mxu0 %v895
        %1015 = vmatpush1.bf16.msra.mxu0 %v894
        %1016 = vmatprep.subr.bf16.mxu0 %v899
        %1017 = vmatpush1.bf16.msra.mxu0 %v898
        %1018 = vmatprep.subr.bf16.mxu0 %v903
        %1019 = vmatpush1.bf16.msra.mxu0 %v902
        %1020 = vmatprep.subr.bf16.mxu0 %v907
        %1021 = vmatpush1.bf16.msra.mxu0 %v906
        %1022 = vmatprep.subr.bf16.mxu0 %v911
        %1023 = vmatpush1.bf16.msra.mxu0 %v910
        %1024 = vmatprep.subr.bf16.mxu0 %v915
        %1025 = vmatpush1.bf16.msra.mxu0 %v914
        %1026 = vmatprep.subr.bf16.mxu0 %v919
        %1027 = vmatpush1.bf16.msra.mxu0 %v918
        %1028 = vmatprep.subr.bf16.mxu0 %v923
        %1029 = vmatpush1.bf16.msra.mxu0 %v922
        %1030 = vmatprep.subr.bf16.mxu0 %v927
        %1031 = vmatpush1.bf16.msra.mxu0 %v926
        %1032 = vmatprep.subr.bf16.mxu0 %v931
        %1033 = vmatpush1.bf16.msra.mxu0 %v930
        %1034 = vmatprep.subr.bf16.mxu0 %v935
        %1035 = vmatpush1.bf16.msra.mxu0 %v934
        %1036 = vmatprep.subr.bf16.mxu0 %v939
        %1037 = vmatpush1.bf16.msra.mxu0 %v938
        %1038 = vmatprep.mubr.bf16.mxu0 %v597
        %1039 = vmatmul.mubr.bf16.gmra.mrb[0].mxu0 %v596
        %v1040 = vpop.f32.mrb[0].mxu0
        %v1041 = vadd.f32 %v669, %v1040
        %v1042 = vpop.f32.mrb[0].mxu0
        %v1043 = vadd.f32 %v673, %v1042
        %v1044 = vpop.f32.mrb[0].mxu0
        %v1045 = vadd.f32 %v669, %v1044
        %v1046 = vpop.f32.mrb[0].mxu0
        %v1047 = vadd.f32 %v673, %v1046
        %1048 = vmatprep.mubr.bf16.mxu0 %v599
        %1049 = vmatmul.mubr.bf16.gmra.mrb[0].mxu0 %v598
        %v1050 = vpop.f32.mrb[0].mxu0
        %v1051 = vadd.f32 %v669, %v1050
        %v1052 = vpop.f32.mrb[0].mxu0
        %v1053 = vadd.f32 %v673, %v1052
        %v1054 = vpop.f32.mrb[0].mxu0
        %v1055 = vadd.f32 %v669, %v1054
        %v1056 = vpop.f32.mrb[0].mxu0
        %v1057 = vadd.f32 %v673, %v1056
        %1058 = vdwg.mxu0
        %1059 = vmatprep.subr.bf16.mxu0 %v881
        %1060 = vmatpush1.bf16.msra.mxu0 %v880
        %1061 = vmatprep.subr.bf16.mxu0 %v885
        %1062 = vmatpush1.bf16.msra.mxu0 %v884
        %1063 = vmatprep.subr.bf16.mxu0 %v889
        %1064 = vmatpush1.bf16.msra.mxu0 %v888
        %1065 = vmatprep.subr.bf16.mxu0 %v893
        %1066 = vmatpush1.bf16.msra.mxu0 %v892
        %1067 = vmatprep.subr.bf16.mxu0 %v897
        %1068 = vmatpush1.bf16.msra.mxu0 %v896
        %1069 = vmatprep.subr.bf16.mxu0 %v901
        %1070 = vmatpush1.bf16.msra.mxu0 %v900
        %1071 = vmatprep.subr.bf16.mxu0 %v905
        %1072 = vmatpush1.bf16.msra.mxu0 %v904
        %1073 = vmatprep.subr.bf16.mxu0 %v909
        %1074 = vmatpush1.bf16.msra.mxu0 %v908
        %1075 = vmatprep.subr.bf16.mxu0 %v913
        %1076 = vmatpush1.bf16.msra.mxu0 %v912
        %1077 = vmatprep.subr.bf16.mxu0 %v917
        %1078 = vmatpush1.bf16.msra.mxu0 %v916
        %1079 = vmatprep.subr.bf16.mxu0 %v921
        %1080 = vmatpush1.bf16.msra.mxu0 %v920
        %1081 = vmatprep.subr.bf16.mxu0 %v925
        %1082 = vmatpush1.bf16.msra.mxu0 %v924
        %1083 = vmatprep.subr.bf16.mxu0 %v929
        %1084 = vmatpush1.bf16.msra.mxu0 %v928
        %1085 = vmatprep.subr.bf16.mxu0 %v933
        %1086 = vmatpush1.bf16.msra.mxu0 %v932
        %1087 = vmatprep.subr.bf16.mxu0 %v937
        %1088 = vmatpush1.bf16.msra.mxu0 %v936
        %1089 = vmatprep.subr.bf16.mxu0 %v941
        %1090 = vmatpush1.bf16.msra.mxu0 %v940
        %1091 = vmatprep.mubr.bf16.mxu0 %v597
        %1092 = vmatmul.mubr.bf16.gmra.mrb[0].mxu0 %v596
        %v1093 = vpop.f32.mrb[0].mxu0
        %v1094 = vadd.f32 %v677, %v1093
        %v1095 = vpop.f32.mrb[0].mxu0
        %v1096 = vadd.f32 %v681, %v1095
        %v1097 = vpop.f32.mrb[0].mxu0
        %v1098 = vadd.f32 %v677, %v1097
        %v1099 = vpop.f32.mrb[0].mxu0
        %v1100 = vadd.f32 %v681, %v1099
        %1101 = vmatprep.mubr.bf16.mxu0 %v599
        %1102 = vmatmul.mubr.bf16.gmra.mrb[0].mxu0 %v598
        %v1103 = vpop.f32.mrb[0].mxu0
        %v1104 = vadd.f32 %v677, %v1103
        %v1105 = vpop.f32.mrb[0].mxu0
        %v1106 = vadd.f32 %v681, %v1105
        %v1107 = vpop.f32.mrb[0].mxu0
        %v1108 = vadd.f32 %v677, %v1107
        %v1109 = vpop.f32.mrb[0].mxu0
        %v1110 = vadd.f32 %v681, %v1109
        %1111 = vdwg.mxu0
        %v1112 = vpack.c.bf16 %v1045, %v1041
        %v1113 = vpack.c.bf16 %v1047, %v1043
        %v1114 = vpack.c.bf16 %v1098, %v1094
        %v1115 = vpack.c.bf16 %v1100, %v1096
        %v1116 = vpack.c.bf16 %v1055, %v1051
        %v1117 = vpack.c.bf16 %v1057, %v1053
        %v1118 = vpack.c.bf16 %v1108, %v1104
        %v1119 = vpack.c.bf16 %v1110, %v1106
        %v1120 = vmax.bf16 %v1112, 0
        %v1121 = vmax.bf16 %v1113, 0
        %v1122 = vmax.bf16 %v1114, 0
        %v1123 = vmax.bf16 %v1115, 0
        %v1124 = vmax.bf16 %v1116, 0
        %v1125 = vmax.bf16 %v1117, 0
        %v1126 = vmax.bf16 %v1118, 0
        %v1127 = vmax.bf16 %v1119, 0
        %v1128 = vld [vmem:[#allocation5] sm:$0xff]
        %v1129 = vld [vmem:[#allocation5 + $0x8] sm:$0xff]
        %v1130 = vld [vmem:[#allocation5 + $0x10] sm:$0xff]
        %v1131 = vld [vmem:[#allocation5 + $0x18] sm:$0xff]
        %v1132 = vld [vmem:[#allocation5 + $0x20] sm:$0xff]
        %v1133 = vld [vmem:[#allocation5 + $0x28] sm:$0xff]
        %v1134 = vld [vmem:[#allocation5 + $0x30] sm:$0xff]
        %v1135 = vld [vmem:[#allocation5 + $0x38] sm:$0xff]
        %v1136 = vld [vmem:[#allocation5 + $0x40] sm:$0xff]
        %v1137 = vld [vmem:[#allocation5 + $0x48] sm:$0xff]
        %v1138 = vld [vmem:[#allocation5 + $0x50] sm:$0xff]
        %v1139 = vld [vmem:[#allocation5 + $0x58] sm:$0xff]
        %v1140 = vld [vmem:[#allocation5 + $0x60] sm:$0xff]
        %v1141 = vld [vmem:[#allocation5 + $0x68] sm:$0xff]
        %v1142 = vld [vmem:[#allocation5 + $0x70] sm:$0xff]
        %v1143 = vld [vmem:[#allocation5 + $0x78] sm:$0xff]
        %v1144 = vld [vmem:[#allocation5 + $0x80] sm:$0xff]
        %v1145 = vld [vmem:[#allocation5 + $0x88] sm:$0xff]
        %v1146 = vld [vmem:[#allocation5 + $0x90] sm:$0xff]
        %v1147 = vld [vmem:[#allocation5 + $0x98] sm:$0xff]
        %v1148 = vld [vmem:[#allocation5 + $0xa0] sm:$0xff]
        %v1149 = vld [vmem:[#allocation5 + $0xa8] sm:$0xff]
        %v1150 = vld [vmem:[#allocation5 + $0xb0] sm:$0xff]
        %v1151 = vld [vmem:[#allocation5 + $0xb8] sm:$0xff]
        %v1152 = vld [vmem:[#allocation5 + $0xc0] sm:$0xff]
        %v1153 = vld [vmem:[#allocation5 + $0xc8] sm:$0xff]
        %v1154 = vld [vmem:[#allocation5 + $0xd0] sm:$0xff]
        %v1155 = vld [vmem:[#allocation5 + $0xd8] sm:$0xff]
        %v1156 = vld [vmem:[#allocation5 + $0xe0] sm:$0xff]
        %v1157 = vld [vmem:[#allocation5 + $0xe8] sm:$0xff]
        %v1158 = vld [vmem:[#allocation5 + $0xf0] sm:$0xff]
        %v1159 = vld [vmem:[#allocation5 + $0xf8] sm:$0xff]
        %v1160 = vld [vmem:[#allocation5 + $0x100] sm:$0xff]
        %v1161 = vld [vmem:[#allocation5 + $0x108] sm:$0xff]
        %v1162 = vld [vmem:[#allocation5 + $0x110] sm:$0xff]
        %v1163 = vld [vmem:[#allocation5 + $0x118] sm:$0xff]
        %v1164 = vld [vmem:[#allocation5 + $0x120] sm:$0xff]
        %v1165 = vld [vmem:[#allocation5 + $0x128] sm:$0xff]
        %v1166 = vld [vmem:[#allocation5 + $0x130] sm:$0xff]
        %v1167 = vld [vmem:[#allocation5 + $0x138] sm:$0xff]
        %v1168 = vld [vmem:[#allocation5 + $0x140] sm:$0xff]
        %v1169 = vld [vmem:[#allocation5 + $0x148] sm:$0xff]
        %v1170 = vld [vmem:[#allocation5 + $0x150] sm:$0xff]
        %v1171 = vld [vmem:[#allocation5 + $0x158] sm:$0xff]
        %v1172 = vld [vmem:[#allocation5 + $0x160] sm:$0xff]
        %v1173 = vld [vmem:[#allocation5 + $0x168] sm:$0xff]
        %v1174 = vld [vmem:[#allocation5 + $0x170] sm:$0xff]
        %v1175 = vld [vmem:[#allocation5 + $0x178] sm:$0xff]
        %v1176 = vld [vmem:[#allocation5 + $0x180] sm:$0xff]
        %v1177 = vld [vmem:[#allocation5 + $0x188] sm:$0xff]
        %v1178 = vld [vmem:[#allocation5 + $0x190] sm:$0xff]
        %v1179 = vld [vmem:[#allocation5 + $0x198] sm:$0xff]
        %v1180 = vld [vmem:[#allocation5 + $0x1a0] sm:$0xff]
        %v1181 = vld [vmem:[#allocation5 + $0x1a8] sm:$0xff]
        %v1182 = vld [vmem:[#allocation5 + $0x1b0] sm:$0xff]
        %v1183 = vld [vmem:[#allocation5 + $0x1b8] sm:$0xff]
        %v1184 = vld [vmem:[#allocation5 + $0x1c0] sm:$0xff]
        %v1185 = vld [vmem:[#allocation5 + $0x1c8] sm:$0xff]
        %v1186 = vld [vmem:[#allocation5 + $0x1d0] sm:$0xff]
        %v1187 = vld [vmem:[#allocation5 + $0x1d8] sm:$0xff]
        %v1188 = vld [vmem:[#allocation5 + $0x1e0] sm:$0xff]
        %v1189 = vld [vmem:[#allocation5 + $0x1e8] sm:$0xff]
        %v1190 = vld [vmem:[#allocation5 + $0x1f0] sm:$0xff]
        %v1191 = vld [vmem:[#allocation5 + $0x1f8] sm:$0xff]
        %v1192 = vld [vmem:[%s4] sm:$0x3]
        %v1194 = vlaneseq
        %v1195 = vshrl.u32 %v1194, 7
        %v1196 = vsub.s32 0, %v1195
        %v1197 = vrot.slane %v1192, %v1196
        %v1198 = vlaneseq
        %v1199 = vshrl.u32 %v1198, 7
        %v1200 = vsub.s32 1, %v1199
        %v1201 = vrot.slane %v1192, %v1200
        %v1268 = vunpack.c.l.b16 %v1128
        %v1269 = vunpack.c.h.b16 %v1128
        %v1270 = vunpack.c.l.b16 %v1129
        %v1271 = vunpack.c.h.b16 %v1129
        %v1272 = vunpack.c.l.b16 %v1130
        %v1273 = vunpack.c.h.b16 %v1130
        %v1274 = vunpack.c.l.b16 %v1131
        %v1275 = vunpack.c.h.b16 %v1131
        %v1276 = vunpack.c.l.b16 %v1132
        %v1277 = vunpack.c.h.b16 %v1132
        %v1278 = vunpack.c.l.b16 %v1133
        %v1279 = vunpack.c.h.b16 %v1133
        %v1280 = vunpack.c.l.b16 %v1134
        %v1281 = vunpack.c.h.b16 %v1134
        %v1282 = vunpack.c.l.b16 %v1135
        %v1283 = vunpack.c.h.b16 %v1135
        %v1284 = vunpack.c.l.b16 %v1136
        %v1285 = vunpack.c.h.b16 %v1136
        %v1286 = vunpack.c.l.b16 %v1137
        %v1287 = vunpack.c.h.b16 %v1137
        %v1288 = vunpack.c.l.b16 %v1138
        %v1289 = vunpack.c.h.b16 %v1138
        %v1290 = vunpack.c.l.b16 %v1139
        %v1291 = vunpack.c.h.b16 %v1139
        %v1292 = vunpack.c.l.b16 %v1140
        %v1293 = vunpack.c.h.b16 %v1140
        %v1294 = vunpack.c.l.b16 %v1141
        %v1295 = vunpack.c.h.b16 %v1141
        %v1296 = vunpack.c.l.b16 %v1142
        %v1297 = vunpack.c.h.b16 %v1142
        %v1298 = vunpack.c.l.b16 %v1143
        %v1299 = vunpack.c.h.b16 %v1143
        %v1300 = vunpack.c.l.b16 %v1144
        %v1301 = vunpack.c.h.b16 %v1144
        %v1302 = vunpack.c.l.b16 %v1145
        %v1303 = vunpack.c.h.b16 %v1145
        %v1304 = vunpack.c.l.b16 %v1146
        %v1305 = vunpack.c.h.b16 %v1146
        %v1306 = vunpack.c.l.b16 %v1147
        %v1307 = vunpack.c.h.b16 %v1147
        %v1308 = vunpack.c.l.b16 %v1148
        %v1309 = vunpack.c.h.b16 %v1148
        %v1310 = vunpack.c.l.b16 %v1149
        %v1311 = vunpack.c.h.b16 %v1149
        %v1312 = vunpack.c.l.b16 %v1150
        %v1313 = vunpack.c.h.b16 %v1150
        %v1314 = vunpack.c.l.b16 %v1151
        %v1315 = vunpack.c.h.b16 %v1151
        %v1316 = vunpack.c.l.b16 %v1152
        %v1317 = vunpack.c.h.b16 %v1152
        %v1318 = vunpack.c.l.b16 %v1153
        %v1319 = vunpack.c.h.b16 %v1153
        %v1320 = vunpack.c.l.b16 %v1154
        %v1321 = vunpack.c.h.b16 %v1154
        %v1322 = vunpack.c.l.b16 %v1155
        %v1323 = vunpack.c.h.b16 %v1155
        %v1324 = vunpack.c.l.b16 %v1156
        %v1325 = vunpack.c.h.b16 %v1156
        %v1326 = vunpack.c.l.b16 %v1157
        %v1327 = vunpack.c.h.b16 %v1157
        %v1328 = vunpack.c.l.b16 %v1158
        %v1329 = vunpack.c.h.b16 %v1158
        %v1330 = vunpack.c.l.b16 %v1159
        %v1331 = vunpack.c.h.b16 %v1159
        %v1332 = vunpack.c.l.b16 %v1160
        %v1333 = vunpack.c.h.b16 %v1160
        %v1334 = vunpack.c.l.b16 %v1161
        %v1335 = vunpack.c.h.b16 %v1161
        %v1336 = vunpack.c.l.b16 %v1162
        %v1337 = vunpack.c.h.b16 %v1162
        %v1338 = vunpack.c.l.b16 %v1163
        %v1339 = vunpack.c.h.b16 %v1163
        %v1340 = vunpack.c.l.b16 %v1164
        %v1341 = vunpack.c.h.b16 %v1164
        %v1342 = vunpack.c.l.b16 %v1165
        %v1343 = vunpack.c.h.b16 %v1165
        %v1344 = vunpack.c.l.b16 %v1166
        %v1345 = vunpack.c.h.b16 %v1166
        %v1346 = vunpack.c.l.b16 %v1167
        %v1347 = vunpack.c.h.b16 %v1167
        %v1348 = vunpack.c.l.b16 %v1168
        %v1349 = vunpack.c.h.b16 %v1168
        %v1350 = vunpack.c.l.b16 %v1169
        %v1351 = vunpack.c.h.b16 %v1169
        %v1352 = vunpack.c.l.b16 %v1170
        %v1353 = vunpack.c.h.b16 %v1170
        %v1354 = vunpack.c.l.b16 %v1171
        %v1355 = vunpack.c.h.b16 %v1171
        %v1356 = vunpack.c.l.b16 %v1172
        %v1357 = vunpack.c.h.b16 %v1172
        %v1358 = vunpack.c.l.b16 %v1173
        %v1359 = vunpack.c.h.b16 %v1173
        %v1360 = vunpack.c.l.b16 %v1174
        %v1361 = vunpack.c.h.b16 %v1174
        %v1362 = vunpack.c.l.b16 %v1175
        %v1363 = vunpack.c.h.b16 %v1175
        %v1364 = vunpack.c.l.b16 %v1176
        %v1365 = vunpack.c.h.b16 %v1176
        %v1366 = vunpack.c.l.b16 %v1177
        %v1367 = vunpack.c.h.b16 %v1177
        %v1368 = vunpack.c.l.b16 %v1178
        %v1369 = vunpack.c.h.b16 %v1178
        %v1370 = vunpack.c.l.b16 %v1179
        %v1371 = vunpack.c.h.b16 %v1179
        %v1372 = vunpack.c.l.b16 %v1180
        %v1373 = vunpack.c.h.b16 %v1180
        %v1374 = vunpack.c.l.b16 %v1181
        %v1375 = vunpack.c.h.b16 %v1181
        %v1376 = vunpack.c.l.b16 %v1182
        %v1377 = vunpack.c.h.b16 %v1182
        %v1378 = vunpack.c.l.b16 %v1183
        %v1379 = vunpack.c.h.b16 %v1183
        %v1380 = vunpack.c.l.b16 %v1184
        %v1381 = vunpack.c.h.b16 %v1184
        %v1382 = vunpack.c.l.b16 %v1185
        %v1383 = vunpack.c.h.b16 %v1185
        %v1384 = vunpack.c.l.b16 %v1186
        %v1385 = vunpack.c.h.b16 %v1186
        %v1386 = vunpack.c.l.b16 %v1187
        %v1387 = vunpack.c.h.b16 %v1187
        %v1388 = vunpack.c.l.b16 %v1188
        %v1389 = vunpack.c.h.b16 %v1188
        %v1390 = vunpack.c.l.b16 %v1189
        %v1391 = vunpack.c.h.b16 %v1189
        %v1392 = vunpack.c.l.b16 %v1190
        %v1393 = vunpack.c.h.b16 %v1190
        %v1394 = vunpack.c.l.b16 %v1191
        %v1395 = vunpack.c.h.b16 %v1191
        %v1396 = vpack.c.b16 %v1270, %v1268
        %v1397 = vpack.c.b16 %v1271, %v1269
        %v1398 = vpack.c.b16 %v1274, %v1272
        %v1399 = vpack.c.b16 %v1275, %v1273
        %v1400 = vpack.c.b16 %v1278, %v1276
        %v1401 = vpack.c.b16 %v1279, %v1277
        %v1402 = vpack.c.b16 %v1282, %v1280
        %v1403 = vpack.c.b16 %v1283, %v1281
        %v1404 = vpack.c.b16 %v1286, %v1284
        %v1405 = vpack.c.b16 %v1287, %v1285
        %v1406 = vpack.c.b16 %v1290, %v1288
        %v1407 = vpack.c.b16 %v1291, %v1289
        %v1408 = vpack.c.b16 %v1294, %v1292
        %v1409 = vpack.c.b16 %v1295, %v1293
        %v1410 = vpack.c.b16 %v1298, %v1296
        %v1411 = vpack.c.b16 %v1299, %v1297
        %v1412 = vpack.c.b16 %v1302, %v1300
        %v1413 = vpack.c.b16 %v1303, %v1301
        %v1414 = vpack.c.b16 %v1306, %v1304
        %v1415 = vpack.c.b16 %v1307, %v1305
        %v1416 = vpack.c.b16 %v1310, %v1308
        %v1417 = vpack.c.b16 %v1311, %v1309
        %v1418 = vpack.c.b16 %v1314, %v1312
        %v1419 = vpack.c.b16 %v1315, %v1313
        %v1420 = vpack.c.b16 %v1318, %v1316
        %v1421 = vpack.c.b16 %v1319, %v1317
        %v1422 = vpack.c.b16 %v1322, %v1320
        %v1423 = vpack.c.b16 %v1323, %v1321
        %v1424 = vpack.c.b16 %v1326, %v1324
        %v1425 = vpack.c.b16 %v1327, %v1325
        %v1426 = vpack.c.b16 %v1330, %v1328
        %v1427 = vpack.c.b16 %v1331, %v1329
        %v1428 = vpack.c.b16 %v1334, %v1332
        %v1429 = vpack.c.b16 %v1335, %v1333
        %v1430 = vpack.c.b16 %v1338, %v1336
        %v1431 = vpack.c.b16 %v1339, %v1337
        %v1432 = vpack.c.b16 %v1342, %v1340
        %v1433 = vpack.c.b16 %v1343, %v1341
        %v1434 = vpack.c.b16 %v1346, %v1344
        %v1435 = vpack.c.b16 %v1347, %v1345
        %v1436 = vpack.c.b16 %v1350, %v1348
        %v1437 = vpack.c.b16 %v1351, %v1349
        %v1438 = vpack.c.b16 %v1354, %v1352
        %v1439 = vpack.c.b16 %v1355, %v1353
        %v1440 = vpack.c.b16 %v1358, %v1356
        %v1441 = vpack.c.b16 %v1359, %v1357
        %v1442 = vpack.c.b16 %v1362, %v1360
        %v1443 = vpack.c.b16 %v1363, %v1361
        %v1444 = vpack.c.b16 %v1366, %v1364
        %v1445 = vpack.c.b16 %v1367, %v1365
        %v1446 = vpack.c.b16 %v1370, %v1368
        %v1447 = vpack.c.b16 %v1371, %v1369
        %v1448 = vpack.c.b16 %v1374, %v1372
        %v1449 = vpack.c.b16 %v1375, %v1373
        %v1450 = vpack.c.b16 %v1378, %v1376
        %v1451 = vpack.c.b16 %v1379, %v1377
        %v1452 = vpack.c.b16 %v1382, %v1380
        %v1453 = vpack.c.b16 %v1383, %v1381
        %v1454 = vpack.c.b16 %v1386, %v1384
        %v1455 = vpack.c.b16 %v1387, %v1385
        %v1456 = vpack.c.b16 %v1390, %v1388
        %v1457 = vpack.c.b16 %v1391, %v1389
        %v1458 = vpack.c.b16 %v1394, %v1392
        %v1459 = vpack.c.b16 %v1395, %v1393
        %1524 = vmatprep.subr.bf16.mxu0 %v1397
        %1525 = vmatpush1.bf16.msra.mxu0 %v1396
        %1526 = vmatprep.subr.bf16.mxu0 %v1399
        %1527 = vmatpush1.bf16.msra.mxu0 %v1398
        %1528 = vmatprep.subr.bf16.mxu0 %v1401
        %1529 = vmatpush1.bf16.msra.mxu0 %v1400
        %1530 = vmatprep.subr.bf16.mxu0 %v1403
        %1531 = vmatpush1.bf16.msra.mxu0 %v1402
        %1532 = vmatprep.subr.bf16.mxu0 %v1405
        %1533 = vmatpush1.bf16.msra.mxu0 %v1404
        %1534 = vmatprep.subr.bf16.mxu0 %v1407
        %1535 = vmatpush1.bf16.msra.mxu0 %v1406
        %1536 = vmatprep.subr.bf16.mxu0 %v1409
        %1537 = vmatpush1.bf16.msra.mxu0 %v1408
        %1538 = vmatprep.subr.bf16.mxu0 %v1411
        %1539 = vmatpush1.bf16.msra.mxu0 %v1410
        %1540 = vmatprep.subr.bf16.mxu0 %v1413
        %1541 = vmatpush1.bf16.msra.mxu0 %v1412
        %1542 = vmatprep.subr.bf16.mxu0 %v1415
        %1543 = vmatpush1.bf16.msra.mxu0 %v1414
        %1544 = vmatprep.subr.bf16.mxu0 %v1417
        %1545 = vmatpush1.bf16.msra.mxu0 %v1416
        %1546 = vmatprep.subr.bf16.mxu0 %v1419
        %1547 = vmatpush1.bf16.msra.mxu0 %v1418
        %1548 = vmatprep.subr.bf16.mxu0 %v1421
        %1549 = vmatpush1.bf16.msra.mxu0 %v1420
        %1550 = vmatprep.subr.bf16.mxu0 %v1423
        %1551 = vmatpush1.bf16.msra.mxu0 %v1422
        %1552 = vmatprep.subr.bf16.mxu0 %v1425
        %1553 = vmatpush1.bf16.msra.mxu0 %v1424
        %1554 = vmatprep.subr.bf16.mxu0 %v1427
        %1555 = vmatpush1.bf16.msra.mxu0 %v1426
        %1556 = vmatprep.mubr.bf16.mxu0 %v1121
        %1557 = vmatmul.mubr.bf16.gmra.mrb[0].mxu0 %v1120
        %v1558 = vpop.f32.mrb[0].mxu0
        %v1559 = vadd.f32 %v1197, %v1558
        %v1560 = vpop.f32.mrb[0].mxu0
        %v1561 = vadd.f32 %v1201, %v1560
        %v1562 = vpop.f32.mrb[0].mxu0
        %v1563 = vadd.f32 %v1197, %v1562
        %v1564 = vpop.f32.mrb[0].mxu0
        %v1565 = vadd.f32 %v1201, %v1564
        %1566 = vmatprep.mubr.bf16.mxu0 %v1125
        %1567 = vmatmul.mubr.bf16.gmra.mrb[0].mxu0 %v1124
        %v1568 = vpop.f32.mrb[0].mxu0
        %v1569 = vadd.f32 %v1197, %v1568
        %v1570 = vpop.f32.mrb[0].mxu0
        %v1571 = vadd.f32 %v1201, %v1570
        %v1572 = vpop.f32.mrb[0].mxu0
        %v1573 = vadd.f32 %v1197, %v1572
        %v1574 = vpop.f32.mrb[0].mxu0
        %v1575 = vadd.f32 %v1201, %v1574
        %1576 = vdwg.mxu0
        %1577 = vmatprep.subr.bf16.mxu0 %v1429
        %1578 = vmatpush1.bf16.msra.mxu0 %v1428
        %1579 = vmatprep.subr.bf16.mxu0 %v1431
        %1580 = vmatpush1.bf16.msra.mxu0 %v1430
        %1581 = vmatprep.subr.bf16.mxu0 %v1433
        %1582 = vmatpush1.bf16.msra.mxu0 %v1432
        %1583 = vmatprep.subr.bf16.mxu0 %v1435
        %1584 = vmatpush1.bf16.msra.mxu0 %v1434
        %1585 = vmatprep.subr.bf16.mxu0 %v1437
        %1586 = vmatpush1.bf16.msra.mxu0 %v1436
        %1587 = vmatprep.subr.bf16.mxu0 %v1439
        %1588 = vmatpush1.bf16.msra.mxu0 %v1438
        %1589 = vmatprep.subr.bf16.mxu0 %v1441
        %1590 = vmatpush1.bf16.msra.mxu0 %v1440
        %1591 = vmatprep.subr.bf16.mxu0 %v1443
        %1592 = vmatpush1.bf16.msra.mxu0 %v1442
        %1593 = vmatprep.subr.bf16.mxu0 %v1445
        %1594 = vmatpush1.bf16.msra.mxu0 %v1444
        %1595 = vmatprep.subr.bf16.mxu0 %v1447
        %1596 = vmatpush1.bf16.msra.mxu0 %v1446
        %1597 = vmatprep.subr.bf16.mxu0 %v1449
        %1598 = vmatpush1.bf16.msra.mxu0 %v1448
        %1599 = vmatprep.subr.bf16.mxu0 %v1451
        %1600 = vmatpush1.bf16.msra.mxu0 %v1450
        %1601 = vmatprep.subr.bf16.mxu0 %v1453
        %1602 = vmatpush1.bf16.msra.mxu0 %v1452
        %1603 = vmatprep.subr.bf16.mxu0 %v1455
        %1604 = vmatpush1.bf16.msra.mxu0 %v1454
        %1605 = vmatprep.subr.bf16.mxu0 %v1457
        %1606 = vmatpush1.bf16.msra.mxu0 %v1456
        %1607 = vmatprep.subr.bf16.mxu0 %v1459
        %1608 = vmatpush1.bf16.msra.mxu0 %v1458
        %1609 = vmatprep.mubr.bf16.mxu0 %v1123
        %1610 = vmatmul.mubr.bf16.gmra.mrb[0].mxu0 %v1122
        %v1611 = vpop.f32.mrb[0].mxu0
        %v1612 = vadd.f32 %v1559, %v1611
        %v1613 = vpop.f32.mrb[0].mxu0
        %v1614 = vadd.f32 %v1561, %v1613
        %v1615 = vpop.f32.mrb[0].mxu0
        %v1616 = vadd.f32 %v1563, %v1615
        %v1617 = vpop.f32.mrb[0].mxu0
        %v1618 = vadd.f32 %v1565, %v1617
        %1619 = vmatprep.mubr.bf16.mxu0 %v1127
        %1620 = vmatmul.mubr.bf16.gmra.mrb[0].mxu0 %v1126
        %v1621 = vpop.f32.mrb[0].mxu0
        %v1622 = vadd.f32 %v1569, %v1621
        %v1623 = vpop.f32.mrb[0].mxu0
        %v1624 = vadd.f32 %v1571, %v1623
        %v1625 = vpop.f32.mrb[0].mxu0
        %v1626 = vadd.f32 %v1573, %v1625
        %v1627 = vpop.f32.mrb[0].mxu0
        %v1628 = vadd.f32 %v1575, %v1627
        %1629 = vdwg.mxu0
        %v1630 = vpack.c.bf16 %v1616, %v1612
        %v1631 = vpack.c.bf16 %v1618, %v1614
        %v1632 = vpack.c.bf16 %v1626, %v1622
        %v1633 = vpack.c.bf16 %v1628, %v1624
        %v1634 = vmax.bf16 %v1630, 0
        %v1635 = vmax.bf16 %v1631, 0
        %v1636 = vmax.bf16 %v1632, 0
        %v1637 = vmax.bf16 %v1633, 0
        %v1638 = vld [vmem:[#allocation7] sm:$0xf]
        %v1639 = vld [vmem:[#allocation7 + $0x4] sm:$0xf]
        %v1640 = vld [vmem:[#allocation7 + $0x8] sm:$0xf]
        %v1641 = vld [vmem:[#allocation7 + $0xc] sm:$0xf]
        %v1642 = vld [vmem:[#allocation7 + $0x10] sm:$0xf]
        %v1643 = vld [vmem:[#allocation7 + $0x14] sm:$0xf]
        %v1644 = vld [vmem:[#allocation7 + $0x18] sm:$0xf]
        %v1645 = vld [vmem:[#allocation7 + $0x1c] sm:$0xf]
        %v1646 = vld [vmem:[#allocation7 + $0x20] sm:$0xf]
        %v1647 = vld [vmem:[#allocation7 + $0x24] sm:$0xf]
        %v1648 = vld [vmem:[#allocation7 + $0x28] sm:$0xf]
        %v1649 = vld [vmem:[#allocation7 + $0x2c] sm:$0xf]
        %v1650 = vld [vmem:[#allocation7 + $0x30] sm:$0xf]
        %v1651 = vld [vmem:[#allocation7 + $0x34] sm:$0xf]
        %v1652 = vld [vmem:[#allocation7 + $0x38] sm:$0xf]
        %v1653 = vld [vmem:[#allocation7 + $0x3c] sm:$0xf]
        %v1654 = vld [vmem:[#allocation7 + $0x40] sm:$0xf]
        %v1655 = vld [vmem:[#allocation7 + $0x44] sm:$0xf]
        %v1656 = vld [vmem:[#allocation7 + $0x48] sm:$0xf]
        %v1657 = vld [vmem:[#allocation7 + $0x4c] sm:$0xf]
        %v1658 = vld [vmem:[#allocation7 + $0x50] sm:$0xf]
        %v1659 = vld [vmem:[#allocation7 + $0x54] sm:$0xf]
        %v1660 = vld [vmem:[#allocation7 + $0x58] sm:$0xf]
        %v1661 = vld [vmem:[#allocation7 + $0x5c] sm:$0xf]
        %v1662 = vld [vmem:[#allocation7 + $0x60] sm:$0xf]
        %v1663 = vld [vmem:[#allocation7 + $0x64] sm:$0xf]
        %v1664 = vld [vmem:[#allocation7 + $0x68] sm:$0xf]
        %v1665 = vld [vmem:[#allocation7 + $0x6c] sm:$0xf]
        %v1666 = vld [vmem:[#allocation7 + $0x70] sm:$0xf]
        %v1667 = vld [vmem:[#allocation7 + $0x74] sm:$0xf]
        %v1668 = vld [vmem:[#allocation7 + $0x78] sm:$0xf]
        %v1669 = vld [vmem:[#allocation7 + $0x7c] sm:$0xf]
        %v1670 = vld [vmem:[%s6] sm:$0x1]
        %v1672 = vlaneseq
        %v1673 = vshrl.u32 %v1672, 7
        %v1674 = vsub.s32 0, %v1673
        %v1675 = vrot.slane %v1670, %v1674
        %v1709 = vunpack.c.l.b16 %v1638
        %v1710 = vunpack.c.l.b16 %v1639
        %v1711 = vunpack.c.l.b16 %v1640
        %v1712 = vunpack.c.l.b16 %v1641
        %v1713 = vunpack.c.l.b16 %v1642
        %v1714 = vunpack.c.l.b16 %v1643
        %v1715 = vunpack.c.l.b16 %v1644
        %v1716 = vunpack.c.l.b16 %v1645
        %v1717 = vunpack.c.l.b16 %v1646
        %v1718 = vunpack.c.l.b16 %v1647
        %v1719 = vunpack.c.l.b16 %v1648
        %v1720 = vunpack.c.l.b16 %v1649
        %v1721 = vunpack.c.l.b16 %v1650
        %v1722 = vunpack.c.l.b16 %v1651
        %v1723 = vunpack.c.l.b16 %v1652
        %v1724 = vunpack.c.l.b16 %v1653
        %v1725 = vunpack.c.l.b16 %v1654
        %v1726 = vunpack.c.l.b16 %v1655
        %v1727 = vunpack.c.l.b16 %v1656
        %v1728 = vunpack.c.l.b16 %v1657
        %v1729 = vunpack.c.l.b16 %v1658
        %v1730 = vunpack.c.l.b16 %v1659
        %v1731 = vunpack.c.l.b16 %v1660
        %v1732 = vunpack.c.l.b16 %v1661
        %v1733 = vunpack.c.l.b16 %v1662
        %v1734 = vunpack.c.l.b16 %v1663
        %v1735 = vunpack.c.l.b16 %v1664
        %v1736 = vunpack.c.l.b16 %v1665
        %v1737 = vunpack.c.l.b16 %v1666
        %v1738 = vunpack.c.l.b16 %v1667
        %v1739 = vunpack.c.l.b16 %v1668
        %v1740 = vunpack.c.l.b16 %v1669
        %v1741 = vpack.c.b16 %v1710, %v1709
        %v1742 = vpack.c.b16 %v1712, %v1711
        %v1743 = vpack.c.b16 %v1714, %v1713
        %v1744 = vpack.c.b16 %v1716, %v1715
        %v1745 = vpack.c.b16 %v1718, %v1717
        %v1746 = vpack.c.b16 %v1720, %v1719
        %v1747 = vpack.c.b16 %v1722, %v1721
        %v1748 = vpack.c.b16 %v1724, %v1723
        %v1749 = vpack.c.b16 %v1726, %v1725
        %v1750 = vpack.c.b16 %v1728, %v1727
        %v1751 = vpack.c.b16 %v1730, %v1729
        %v1752 = vpack.c.b16 %v1732, %v1731
        %v1753 = vpack.c.b16 %v1734, %v1733
        %v1754 = vpack.c.b16 %v1736, %v1735
        %v1755 = vpack.c.b16 %v1738, %v1737
        %v1756 = vpack.c.b16 %v1740, %v1739
        %1773 = vmatprep.subr.bf16.mxu0 0
        %1774 = vmatpush1.bf16.msra.mxu0 %v1741
        %1775 = vmatprep.subr.bf16.mxu0 0
        %1776 = vmatpush1.bf16.msra.mxu0 %v1742
        %1777 = vmatprep.subr.bf16.mxu0 0
        %1778 = vmatpush1.bf16.msra.mxu0 %v1743
        %1779 = vmatprep.subr.bf16.mxu0 0
        %1780 = vmatpush1.bf16.msra.mxu0 %v1744
        %1781 = vmatprep.subr.bf16.mxu0 0
        %1782 = vmatpush1.bf16.msra.mxu0 %v1745
        %1783 = vmatprep.subr.bf16.mxu0 0
        %1784 = vmatpush1.bf16.msra.mxu0 %v1746
        %1785 = vmatprep.subr.bf16.mxu0 0
        %1786 = vmatpush1.bf16.msra.mxu0 %v1747
        %1787 = vmatprep.subr.bf16.mxu0 0
        %1788 = vmatpush1.bf16.msra.mxu0 %v1748
        %1789 = vmatprep.subr.bf16.mxu0 0
        %1790 = vmatpush1.bf16.msra.mxu0 %v1749
        %1791 = vmatprep.subr.bf16.mxu0 0
        %1792 = vmatpush1.bf16.msra.mxu0 %v1750
        %1793 = vmatprep.subr.bf16.mxu0 0
        %1794 = vmatpush1.bf16.msra.mxu0 %v1751
        %1795 = vmatprep.subr.bf16.mxu0 0
        %1796 = vmatpush1.bf16.msra.mxu0 %v1752
        %1797 = vmatprep.subr.bf16.mxu0 0
        %1798 = vmatpush1.bf16.msra.mxu0 %v1753
        %1799 = vmatprep.subr.bf16.mxu0 0
        %1800 = vmatpush1.bf16.msra.mxu0 %v1754
        %1801 = vmatprep.subr.bf16.mxu0 0
        %1802 = vmatpush1.bf16.msra.mxu0 %v1755
        %1803 = vmatprep.subr.bf16.mxu0 0
        %1804 = vmatpush1.bf16.msra.mxu0 %v1756
        %1805 = vmatprep.mubr.bf16.mxu0 %v1635
        %1806 = vmatmul.mubr.bf16.gmra.mrb[0].mxu0 %v1634
        %v1807 = vpop.f32.mrb[0].mxu0
        %v1808 = vadd.f32 %v1675, %v1807
        %v1809 = vpop.f32.mrb[0].mxu0
        %v1810 = vpop.f32.mrb[0].mxu0
        %v1811 = vadd.f32 %v1675, %v1810
        %v1812 = vpop.f32.mrb[0].mxu0
        %1813 = vmatprep.mubr.bf16.mxu0 %v1637
        %1814 = vmatmul.mubr.bf16.gmra.mrb[0].mxu0 %v1636
        %v1815 = vpop.f32.mrb[0].mxu0
        %v1816 = vadd.f32 %v1675, %v1815
        %v1817 = vpop.f32.mrb[0].mxu0
        %v1818 = vpop.f32.mrb[0].mxu0
        %v1819 = vadd.f32 %v1675, %v1818
        %v1820 = vpop.f32.mrb[0].mxu0
        %1821 = vdwg.mxu0
        %v1822 = vpack.c.bf16 %v1811, %v1808
        %v1823 = vpack.c.bf16 %v1819, %v1816
        %v1824 = vmax.bf16 %v1822, 0
        %v1825 = vmax.bf16 %v1823, 0
        %v1826 = vld [vmem:[%s7] sm:$0xf]
        %v1827 = vld [vmem:[%s7 + $0x4] sm:$0xf]
        %v1828 = vld [vmem:[%s7 + $0x8] sm:$0xf]
        %v1829 = vld [vmem:[%s7 + $0xc] sm:$0xf]
        %v1830 = vld [vmem:[%s7 + $0x10] sm:$0xf]
        %v1831 = vld [vmem:[%s7 + $0x14] sm:$0xf]
        %v1832 = vld [vmem:[%s7 + $0x18] sm:$0xf]
        %v1833 = vld [vmem:[%s7 + $0x1c] sm:$0xf]
        %v1834 = vld [vmem:[%s7 + $0x20] sm:$0xf]
        %v1835 = vld [vmem:[%s7 + $0x24] sm:$0xf]
        %v1836 = vld [vmem:[%s7 + $0x28] sm:$0xf]
        %v1837 = vld [vmem:[%s7 + $0x2c] sm:$0xf]
        %v1838 = vld [vmem:[%s7 + $0x30] sm:$0xf]
        %v1839 = vld [vmem:[%s7 + $0x34] sm:$0xf]
        %v1840 = vld [vmem:[%s7 + $0x38] sm:$0xf]
        %v1841 = vld [vmem:[%s7 + $0x3c] sm:$0xf]
        %v1842 = vld [vmem:[%s8] sm:$0x1]
        %v1844 = vlaneseq
        %v1845 = vshrl.u32 %v1844, 7
        %v1846 = vsub.s32 0, %v1845
        %v1847 = vrot.slane %v1842, %v1846
        %v1865 = vunpack.c.l.b16 %v1826
        %v1866 = vunpack.c.l.b16 %v1827
        %v1867 = vunpack.c.l.b16 %v1828
        %v1868 = vunpack.c.l.b16 %v1829
        %v1869 = vunpack.c.l.b16 %v1830
        %v1870 = vunpack.c.l.b16 %v1831
        %v1871 = vunpack.c.l.b16 %v1832
        %v1872 = vunpack.c.l.b16 %v1833
        %v1873 = vunpack.c.l.b16 %v1834
        %v1874 = vunpack.c.l.b16 %v1835
        %v1875 = vunpack.c.l.b16 %v1836
        %v1876 = vunpack.c.l.b16 %v1837
        %v1877 = vunpack.c.l.b16 %v1838
        %v1878 = vunpack.c.l.b16 %v1839
        %v1879 = vunpack.c.l.b16 %v1840
        %v1880 = vunpack.c.l.b16 %v1841
        %v1881 = vpack.c.b16 %v1866, %v1865
        %v1882 = vpack.c.b16 %v1868, %v1867
        %v1883 = vpack.c.b16 %v1870, %v1869
        %v1884 = vpack.c.b16 %v1872, %v1871
        %v1885 = vpack.c.b16 %v1874, %v1873
        %v1886 = vpack.c.b16 %v1876, %v1875
        %v1887 = vpack.c.b16 %v1878, %v1877
        %v1888 = vpack.c.b16 %v1880, %v1879
        %1897 = vmatprep.subr.bf16.mxu0 0
        %1898 = vmatpush1.bf16.msra.mxu0 %v1881
        %1899 = vmatprep.subr.bf16.mxu0 0
        %1900 = vmatpush1.bf16.msra.mxu0 %v1882
        %1901 = vmatprep.subr.bf16.mxu0 0
        %1902 = vmatpush1.bf16.msra.mxu0 %v1883
        %1903 = vmatprep.subr.bf16.mxu0 0
        %1904 = vmatpush1.bf16.msra.mxu0 %v1884
        %1905 = vmatprep.subr.bf16.mxu0 0
        %1906 = vmatpush1.bf16.msra.mxu0 %v1885
        %1907 = vmatprep.subr.bf16.mxu0 0
        %1908 = vmatpush1.bf16.msra.mxu0 %v1886
        %1909 = vmatprep.subr.bf16.mxu0 0
        %1910 = vmatpush1.bf16.msra.mxu0 %v1887
        %1911 = vmatprep.subr.bf16.mxu0 0
        %1912 = vmatpush1.bf16.msra.mxu0 %v1888
        %1913 = vmatprep.subr.bf16.mxu0 0
        %1914 = vmatpush1.bf16.msra.mxu0 0
        %1915 = vmatprep.subr.bf16.mxu0 0
        %1916 = vmatpush1.bf16.msra.mxu0 0
        %1917 = vmatprep.subr.bf16.mxu0 0
        %1918 = vmatpush1.bf16.msra.mxu0 0
        %1919 = vmatprep.subr.bf16.mxu0 0
        %1920 = vmatpush1.bf16.msra.mxu0 0
        %1921 = vmatprep.subr.bf16.mxu0 0
        %1922 = vmatpush1.bf16.msra.mxu0 0
        %1923 = vmatprep.subr.bf16.mxu0 0
        %1924 = vmatpush1.bf16.msra.mxu0 0
        %1925 = vmatprep.subr.bf16.mxu0 0
        %1926 = vmatpush1.bf16.msra.mxu0 0
        %1927 = vmatprep.subr.bf16.mxu0 0
        %1928 = vmatpush1.bf16.msra.mxu0 0
        %1929 = vmatprep.mubr.bf16.mxu0 0
        %1930 = vmatmul.mubr.bf16.gmra.mrb[0].mxu0 %v1824
        %v1931 = vpop.f32.mrb[0].mxu0
        %v1932 = vadd.f32 %v1847, %v1931
        %v1933 = vpop.f32.mrb[0].mxu0
        %v1934 = vpop.f32.mrb[0].mxu0
        %v1935 = vadd.f32 %v1847, %v1934
        %v1936 = vpop.f32.mrb[0].mxu0
        %1937 = vmatprep.mubr.bf16.mxu0 0
        %1938 = vmatmul.mubr.bf16.gmra.mrb[0].mxu0 %v1825
        %v1939 = vpop.f32.mrb[0].mxu0
        %v1940 = vadd.f32 %v1847, %v1939
        %v1941 = vpop.f32.mrb[0].mxu0
        %v1942 = vpop.f32.mrb[0].mxu0
        %v1943 = vadd.f32 %v1847, %v1942
        %v1944 = vpop.f32.mrb[0].mxu0
        %1945 = vdwg.mxu0
        %v1946 = vpack.c.bf16 %v1935, %v1932
        %v1947 = vpack.c.bf16 %v1943, %v1940
        %v1948 = vmax.bf16 %v1946, 0
        %v1949 = vmax.bf16 %v1947, 0
        %v1950 = vld [vmem:[#allocation8] sm:$0xff]
        %v1951 = vld [vmem:[#allocation8 + $0x8] sm:$0xff]
        %v1952 = vld [vmem:[#allocation8 + $0x10] sm:$0xff]
        %v1953 = vld [vmem:[#allocation8 + $0x18] sm:$0xff]
        %v1954 = vld [vmem:[#allocation8 + $0x20] sm:$0xff]
        %v1955 = vld [vmem:[#allocation8 + $0x28] sm:$0xff]
        %v1956 = vld [vmem:[#allocation8 + $0x30] sm:$0xff]
        %v1957 = vld [vmem:[#allocation8 + $0x38] sm:$0xff]
        %v1958 = vld [vmem:[#allocation8 + $0x40] sm:$0xff]
        %v1959 = vld [vmem:[#allocation8 + $0x48] sm:$0xff]
        %v1960 = vld [vmem:[#allocation8 + $0x50] sm:$0xff]
        %v1961 = vld [vmem:[#allocation8 + $0x58] sm:$0xff]
        %v1962 = vld [vmem:[#allocation8 + $0x60] sm:$0xff]
        %v1963 = vld [vmem:[#allocation8 + $0x68] sm:$0xff]
        %v1964 = vld [vmem:[#allocation8 + $0x70] sm:$0xff]
        %v1965 = vld [vmem:[#allocation8 + $0x78] sm:$0xff]
        %v1966 = vld [vmem:[%s10] sm:$0x3]
        %v1968 = vlaneseq
        %v1969 = vshrl.u32 %v1968, 7
        %v1970 = vsub.s32 0, %v1969
        %v1971 = vrot.slane %v1966, %v1970
        %v1972 = vlaneseq
        %v1973 = vshrl.u32 %v1972, 7
        %v1974 = vsub.s32 1, %v1973
        %v1975 = vrot.slane %v1966, %v1974
        %v1994 = vunpack.c.l.b16 %v1950
        %v1995 = vunpack.c.h.b16 %v1950
        %v1996 = vunpack.c.l.b16 %v1951
        %v1997 = vunpack.c.h.b16 %v1951
        %v1998 = vunpack.c.l.b16 %v1952
        %v1999 = vunpack.c.h.b16 %v1952
        %v2000 = vunpack.c.l.b16 %v1953
        %v2001 = vunpack.c.h.b16 %v1953
        %v2002 = vunpack.c.l.b16 %v1954
        %v2003 = vunpack.c.h.b16 %v1954
        %v2004 = vunpack.c.l.b16 %v1955
        %v2005 = vunpack.c.h.b16 %v1955
        %v2006 = vunpack.c.l.b16 %v1956
        %v2007 = vunpack.c.h.b16 %v1956
        %v2008 = vunpack.c.l.b16 %v1957
        %v2009 = vunpack.c.h.b16 %v1957
        %v2010 = vunpack.c.l.b16 %v1958
        %v2011 = vunpack.c.h.b16 %v1958
        %v2012 = vunpack.c.l.b16 %v1959
        %v2013 = vunpack.c.h.b16 %v1959
        %v2014 = vunpack.c.l.b16 %v1960
        %v2015 = vunpack.c.h.b16 %v1960
        %v2016 = vunpack.c.l.b16 %v1961
        %v2017 = vunpack.c.h.b16 %v1961
        %v2018 = vunpack.c.l.b16 %v1962
        %v2019 = vunpack.c.h.b16 %v1962
        %v2020 = vunpack.c.l.b16 %v1963
        %v2021 = vunpack.c.h.b16 %v1963
        %v2022 = vunpack.c.l.b16 %v1964
        %v2023 = vunpack.c.h.b16 %v1964
        %v2024 = vunpack.c.l.b16 %v1965
        %v2025 = vunpack.c.h.b16 %v1965
        %v2026 = vpack.c.b16 %v1996, %v1994
        %v2027 = vpack.c.b16 %v1997, %v1995
        %v2028 = vpack.c.b16 %v2000, %v1998
        %v2029 = vpack.c.b16 %v2001, %v1999
        %v2030 = vpack.c.b16 %v2004, %v2002
        %v2031 = vpack.c.b16 %v2005, %v2003
        %v2032 = vpack.c.b16 %v2008, %v2006
        %v2033 = vpack.c.b16 %v2009, %v2007
        %v2034 = vpack.c.b16 %v2012, %v2010
        %v2035 = vpack.c.b16 %v2013, %v2011
        %v2036 = vpack.c.b16 %v2016, %v2014
        %v2037 = vpack.c.b16 %v2017, %v2015
        %v2038 = vpack.c.b16 %v2020, %v2018
        %v2039 = vpack.c.b16 %v2021, %v2019
        %v2040 = vpack.c.b16 %v2024, %v2022
        %v2041 = vpack.c.b16 %v2025, %v2023
        %2058 = vmatprep.subr.bf16.mxu0 %v2027
        %2059 = vmatpush1.bf16.msra.mxu0 %v2026
        %2060 = vmatprep.subr.bf16.mxu0 %v2029
        %2061 = vmatpush1.bf16.msra.mxu0 %v2028
        %2062 = vmatprep.subr.bf16.mxu0 %v2031
        %2063 = vmatpush1.bf16.msra.mxu0 %v2030
        %2064 = vmatprep.subr.bf16.mxu0 %v2033
        %2065 = vmatpush1.bf16.msra.mxu0 %v2032
        %2066 = vmatprep.subr.bf16.mxu0 %v2035
        %2067 = vmatpush1.bf16.msra.mxu0 %v2034
        %2068 = vmatprep.subr.bf16.mxu0 %v2037
        %2069 = vmatpush1.bf16.msra.mxu0 %v2036
        %2070 = vmatprep.subr.bf16.mxu0 %v2039
        %2071 = vmatpush1.bf16.msra.mxu0 %v2038
        %2072 = vmatprep.subr.bf16.mxu0 %v2041
        %2073 = vmatpush1.bf16.msra.mxu0 %v2040
        %2074 = vmatprep.subr.bf16.mxu0 0
        %2075 = vmatpush1.bf16.msra.mxu0 0
        %2076 = vmatprep.subr.bf16.mxu0 0
        %2077 = vmatpush1.bf16.msra.mxu0 0
        %2078 = vmatprep.subr.bf16.mxu0 0
        %2079 = vmatpush1.bf16.msra.mxu0 0
        %2080 = vmatprep.subr.bf16.mxu0 0
        %2081 = vmatpush1.bf16.msra.mxu0 0
        %2082 = vmatprep.subr.bf16.mxu0 0
        %2083 = vmatpush1.bf16.msra.mxu0 0
        %2084 = vmatprep.subr.bf16.mxu0 0
        %2085 = vmatpush1.bf16.msra.mxu0 0
        %2086 = vmatprep.subr.bf16.mxu0 0
        %2087 = vmatpush1.bf16.msra.mxu0 0
        %2088 = vmatprep.subr.bf16.mxu0 0
        %2089 = vmatpush1.bf16.msra.mxu0 0
        %2090 = vmatprep.mubr.bf16.mxu0 0
        %2091 = vmatmul.mubr.bf16.gmra.mrb[0].mxu0 %v1948
        %v2092 = vpop.f32.mrb[0].mxu0
        %v2093 = vadd.f32 %v1971, %v2092
        %v2094 = vpop.f32.mrb[0].mxu0
        %v2095 = vadd.f32 %v1975, %v2094
        %v2096 = vpop.f32.mrb[0].mxu0
        %v2097 = vadd.f32 %v1971, %v2096
        %v2098 = vpop.f32.mrb[0].mxu0
        %v2099 = vadd.f32 %v1975, %v2098
        %2100 = vmatprep.mubr.bf16.mxu0 0
        %2101 = vmatmul.mubr.bf16.gmra.mrb[0].mxu0 %v1949
        %v2102 = vpop.f32.mrb[0].mxu0
        %v2103 = vadd.f32 %v1971, %v2102
        %v2104 = vpop.f32.mrb[0].mxu0
        %v2105 = vadd.f32 %v1975, %v2104
        %v2106 = vpop.f32.mrb[0].mxu0
        %v2107 = vadd.f32 %v1971, %v2106
        %v2108 = vpop.f32.mrb[0].mxu0
        %v2109 = vadd.f32 %v1975, %v2108
        %2110 = vdwg.mxu0
        %v2111 = vpack.c.bf16 %v2097, %v2093
        %v2112 = vpack.c.bf16 %v2099, %v2095
        %v2113 = vpack.c.bf16 %v2107, %v2103
        %v2114 = vpack.c.bf16 %v2109, %v2105
        %v2115 = vmax.bf16 %v2111, 0
        %v2116 = vmax.bf16 %v2112, 0
        %v2117 = vmax.bf16 %v2113, 0
        %v2118 = vmax.bf16 %v2114, 0
        %v2119 = vld [vmem:[#allocation10] sm:$0xff]
        %v2120 = vld [vmem:[#allocation10 + $0x8] sm:$0xff]
        %v2121 = vld [vmem:[#allocation10 + $0x10] sm:$0xff]
        %v2122 = vld [vmem:[#allocation10 + $0x18] sm:$0xff]
        %v2123 = vld [vmem:[#allocation10 + $0x20] sm:$0xff]
        %v2124 = vld [vmem:[#allocation10 + $0x28] sm:$0xff]
        %v2125 = vld [vmem:[#allocation10 + $0x30] sm:$0xff]
        %v2126 = vld [vmem:[#allocation10 + $0x38] sm:$0xff]
        %v2127 = vld [vmem:[#allocation10 + $0x40] sm:$0xff]
        %v2128 = vld [vmem:[#allocation10 + $0x48] sm:$0xff]
        %v2129 = vld [vmem:[#allocation10 + $0x50] sm:$0xff]
        %v2130 = vld [vmem:[#allocation10 + $0x58] sm:$0xff]
        %v2131 = vld [vmem:[#allocation10 + $0x60] sm:$0xff]
        %v2132 = vld [vmem:[#allocation10 + $0x68] sm:$0xff]
        %v2133 = vld [vmem:[#allocation10 + $0x70] sm:$0xff]
        %v2134 = vld [vmem:[#allocation10 + $0x78] sm:$0xff]
        %v2135 = vld [vmem:[#allocation10 + $0x80] sm:$0xff]
        %v2136 = vld [vmem:[#allocation10 + $0x88] sm:$0xff]
        %v2137 = vld [vmem:[#allocation10 + $0x90] sm:$0xff]
        %v2138 = vld [vmem:[#allocation10 + $0x98] sm:$0xff]
        %v2139 = vld [vmem:[#allocation10 + $0xa0] sm:$0xff]
        %v2140 = vld [vmem:[#allocation10 + $0xa8] sm:$0xff]
        %v2141 = vld [vmem:[#allocation10 + $0xb0] sm:$0xff]
        %v2142 = vld [vmem:[#allocation10 + $0xb8] sm:$0xff]
        %v2143 = vld [vmem:[#allocation10 + $0xc0] sm:$0xff]
        %v2144 = vld [vmem:[#allocation10 + $0xc8] sm:$0xff]
        %v2145 = vld [vmem:[#allocation10 + $0xd0] sm:$0xff]
        %v2146 = vld [vmem:[#allocation10 + $0xd8] sm:$0xff]
        %v2147 = vld [vmem:[#allocation10 + $0xe0] sm:$0xff]
        %v2148 = vld [vmem:[#allocation10 + $0xe8] sm:$0xff]
        %v2149 = vld [vmem:[#allocation10 + $0xf0] sm:$0xff]
        %v2150 = vld [vmem:[#allocation10 + $0xf8] sm:$0xff]
        %v2151 = vld [vmem:[#allocation10 + $0x100] sm:$0xff]
        %v2152 = vld [vmem:[#allocation10 + $0x108] sm:$0xff]
        %v2153 = vld [vmem:[#allocation10 + $0x110] sm:$0xff]
        %v2154 = vld [vmem:[#allocation10 + $0x118] sm:$0xff]
        %v2155 = vld [vmem:[#allocation10 + $0x120] sm:$0xff]
        %v2156 = vld [vmem:[#allocation10 + $0x128] sm:$0xff]
        %v2157 = vld [vmem:[#allocation10 + $0x130] sm:$0xff]
        %v2158 = vld [vmem:[#allocation10 + $0x138] sm:$0xff]
        %v2159 = vld [vmem:[#allocation10 + $0x140] sm:$0xff]
        %v2160 = vld [vmem:[#allocation10 + $0x148] sm:$0xff]
        %v2161 = vld [vmem:[#allocation10 + $0x150] sm:$0xff]
        %v2162 = vld [vmem:[#allocation10 + $0x158] sm:$0xff]
        %v2163 = vld [vmem:[#allocation10 + $0x160] sm:$0xff]
        %v2164 = vld [vmem:[#allocation10 + $0x168] sm:$0xff]
        %v2165 = vld [vmem:[#allocation10 + $0x170] sm:$0xff]
        %v2166 = vld [vmem:[#allocation10 + $0x178] sm:$0xff]
        %v2167 = vld [vmem:[#allocation10 + $0x180] sm:$0xff]
        %v2168 = vld [vmem:[#allocation10 + $0x188] sm:$0xff]
        %v2169 = vld [vmem:[#allocation10 + $0x190] sm:$0xff]
        %v2170 = vld [vmem:[#allocation10 + $0x198] sm:$0xff]
        %v2171 = vld [vmem:[#allocation10 + $0x1a0] sm:$0xff]
        %v2172 = vld [vmem:[#allocation10 + $0x1a8] sm:$0xff]
        %v2173 = vld [vmem:[#allocation10 + $0x1b0] sm:$0xff]
        %v2174 = vld [vmem:[#allocation10 + $0x1b8] sm:$0xff]
        %v2175 = vld [vmem:[#allocation10 + $0x1c0] sm:$0xff]
        %v2176 = vld [vmem:[#allocation10 + $0x1c8] sm:$0xff]
        %v2177 = vld [vmem:[#allocation10 + $0x1d0] sm:$0xff]
        %v2178 = vld [vmem:[#allocation10 + $0x1d8] sm:$0xff]
        %v2179 = vld [vmem:[#allocation10 + $0x1e0] sm:$0xff]
        %v2180 = vld [vmem:[#allocation10 + $0x1e8] sm:$0xff]
        %v2181 = vld [vmem:[#allocation10 + $0x1f0] sm:$0xff]
        %v2182 = vld [vmem:[#allocation10 + $0x1f8] sm:$0xff]
        %v2183 = vld [vmem:[%s12] sm:$0xf]
        %v2185 = vlaneseq
        %v2186 = vshrl.u32 %v2185, 7
        %v2187 = vsub.s32 0, %v2186
        %v2188 = vrot.slane %v2183, %v2187
        %v2189 = vlaneseq
        %v2190 = vshrl.u32 %v2189, 7
        %v2191 = vsub.s32 1, %v2190
        %v2192 = vrot.slane %v2183, %v2191
        %v2193 = vlaneseq
        %v2194 = vshrl.u32 %v2193, 7
        %v2195 = vsub.s32 2, %v2194
        %v2196 = vrot.slane %v2183, %v2195
        %v2197 = vlaneseq
        %v2198 = vshrl.u32 %v2197, 7
        %v2199 = vsub.s32 3, %v2198
        %v2200 = vrot.slane %v2183, %v2199
        %v2269 = vunpack.c.l.b16 %v2119
        %v2270 = vunpack.c.h.b16 %v2119
        %v2271 = vunpack.c.l.b16 %v2120
        %v2272 = vunpack.c.h.b16 %v2120
        %v2273 = vunpack.c.l.b16 %v2121
        %v2274 = vunpack.c.h.b16 %v2121
        %v2275 = vunpack.c.l.b16 %v2122
        %v2276 = vunpack.c.h.b16 %v2122
        %v2277 = vunpack.c.l.b16 %v2123
        %v2278 = vunpack.c.h.b16 %v2123
        %v2279 = vunpack.c.l.b16 %v2124
        %v2280 = vunpack.c.h.b16 %v2124
        %v2281 = vunpack.c.l.b16 %v2125
        %v2282 = vunpack.c.h.b16 %v2125
        %v2283 = vunpack.c.l.b16 %v2126
        %v2284 = vunpack.c.h.b16 %v2126
        %v2285 = vunpack.c.l.b16 %v2127
        %v2286 = vunpack.c.h.b16 %v2127
        %v2287 = vunpack.c.l.b16 %v2128
        %v2288 = vunpack.c.h.b16 %v2128
        %v2289 = vunpack.c.l.b16 %v2129
        %v2290 = vunpack.c.h.b16 %v2129
        %v2291 = vunpack.c.l.b16 %v2130
        %v2292 = vunpack.c.h.b16 %v2130
        %v2293 = vunpack.c.l.b16 %v2131
        %v2294 = vunpack.c.h.b16 %v2131
        %v2295 = vunpack.c.l.b16 %v2132
        %v2296 = vunpack.c.h.b16 %v2132
        %v2297 = vunpack.c.l.b16 %v2133
        %v2298 = vunpack.c.h.b16 %v2133
        %v2299 = vunpack.c.l.b16 %v2134
        %v2300 = vunpack.c.h.b16 %v2134
        %v2301 = vunpack.c.l.b16 %v2135
        %v2302 = vunpack.c.h.b16 %v2135
        %v2303 = vunpack.c.l.b16 %v2136
        %v2304 = vunpack.c.h.b16 %v2136
        %v2305 = vunpack.c.l.b16 %v2137
        %v2306 = vunpack.c.h.b16 %v2137
        %v2307 = vunpack.c.l.b16 %v2138
        %v2308 = vunpack.c.h.b16 %v2138
        %v2309 = vunpack.c.l.b16 %v2139
        %v2310 = vunpack.c.h.b16 %v2139
        %v2311 = vunpack.c.l.b16 %v2140
        %v2312 = vunpack.c.h.b16 %v2140
        %v2313 = vunpack.c.l.b16 %v2141
        %v2314 = vunpack.c.h.b16 %v2141
        %v2315 = vunpack.c.l.b16 %v2142
        %v2316 = vunpack.c.h.b16 %v2142
        %v2317 = vunpack.c.l.b16 %v2143
        %v2318 = vunpack.c.h.b16 %v2143
        %v2319 = vunpack.c.l.b16 %v2144
        %v2320 = vunpack.c.h.b16 %v2144
        %v2321 = vunpack.c.l.b16 %v2145
        %v2322 = vunpack.c.h.b16 %v2145
        %v2323 = vunpack.c.l.b16 %v2146
        %v2324 = vunpack.c.h.b16 %v2146
        %v2325 = vunpack.c.l.b16 %v2147
        %v2326 = vunpack.c.h.b16 %v2147
        %v2327 = vunpack.c.l.b16 %v2148
        %v2328 = vunpack.c.h.b16 %v2148
        %v2329 = vunpack.c.l.b16 %v2149
        %v2330 = vunpack.c.h.b16 %v2149
        %v2331 = vunpack.c.l.b16 %v2150
        %v2332 = vunpack.c.h.b16 %v2150
        %v2333 = vunpack.c.l.b16 %v2151
        %v2334 = vunpack.c.h.b16 %v2151
        %v2335 = vunpack.c.l.b16 %v2152
        %v2336 = vunpack.c.h.b16 %v2152
        %v2337 = vunpack.c.l.b16 %v2153
        %v2338 = vunpack.c.h.b16 %v2153
        %v2339 = vunpack.c.l.b16 %v2154
        %v2340 = vunpack.c.h.b16 %v2154
        %v2341 = vunpack.c.l.b16 %v2155
        %v2342 = vunpack.c.h.b16 %v2155
        %v2343 = vunpack.c.l.b16 %v2156
        %v2344 = vunpack.c.h.b16 %v2156
        %v2345 = vunpack.c.l.b16 %v2157
        %v2346 = vunpack.c.h.b16 %v2157
        %v2347 = vunpack.c.l.b16 %v2158
        %v2348 = vunpack.c.h.b16 %v2158
        %v2349 = vunpack.c.l.b16 %v2159
        %v2350 = vunpack.c.h.b16 %v2159
        %v2351 = vunpack.c.l.b16 %v2160
        %v2352 = vunpack.c.h.b16 %v2160
        %v2353 = vunpack.c.l.b16 %v2161
        %v2354 = vunpack.c.h.b16 %v2161
        %v2355 = vunpack.c.l.b16 %v2162
        %v2356 = vunpack.c.h.b16 %v2162
        %v2357 = vunpack.c.l.b16 %v2163
        %v2358 = vunpack.c.h.b16 %v2163
        %v2359 = vunpack.c.l.b16 %v2164
        %v2360 = vunpack.c.h.b16 %v2164
        %v2361 = vunpack.c.l.b16 %v2165
        %v2362 = vunpack.c.h.b16 %v2165
        %v2363 = vunpack.c.l.b16 %v2166
        %v2364 = vunpack.c.h.b16 %v2166
        %v2365 = vunpack.c.l.b16 %v2167
        %v2366 = vunpack.c.h.b16 %v2167
        %v2367 = vunpack.c.l.b16 %v2168
        %v2368 = vunpack.c.h.b16 %v2168
        %v2369 = vunpack.c.l.b16 %v2169
        %v2370 = vunpack.c.h.b16 %v2169
        %v2371 = vunpack.c.l.b16 %v2170
        %v2372 = vunpack.c.h.b16 %v2170
        %v2373 = vunpack.c.l.b16 %v2171
        %v2374 = vunpack.c.h.b16 %v2171
        %v2375 = vunpack.c.l.b16 %v2172
        %v2376 = vunpack.c.h.b16 %v2172
        %v2377 = vunpack.c.l.b16 %v2173
        %v2378 = vunpack.c.h.b16 %v2173
        %v2379 = vunpack.c.l.b16 %v2174
        %v2380 = vunpack.c.h.b16 %v2174
        %v2381 = vunpack.c.l.b16 %v2175
        %v2382 = vunpack.c.h.b16 %v2175
        %v2383 = vunpack.c.l.b16 %v2176
        %v2384 = vunpack.c.h.b16 %v2176
        %v2385 = vunpack.c.l.b16 %v2177
        %v2386 = vunpack.c.h.b16 %v2177
        %v2387 = vunpack.c.l.b16 %v2178
        %v2388 = vunpack.c.h.b16 %v2178
        %v2389 = vunpack.c.l.b16 %v2179
        %v2390 = vunpack.c.h.b16 %v2179
        %v2391 = vunpack.c.l.b16 %v2180
        %v2392 = vunpack.c.h.b16 %v2180
        %v2393 = vunpack.c.l.b16 %v2181
        %v2394 = vunpack.c.h.b16 %v2181
        %v2395 = vunpack.c.l.b16 %v2182
        %v2396 = vunpack.c.h.b16 %v2182
        %v2397 = vpack.c.b16 %v2273, %v2269
        %v2398 = vpack.c.b16 %v2274, %v2270
        %v2399 = vpack.c.b16 %v2275, %v2271
        %v2400 = vpack.c.b16 %v2276, %v2272
        %v2401 = vpack.c.b16 %v2281, %v2277
        %v2402 = vpack.c.b16 %v2282, %v2278
        %v2403 = vpack.c.b16 %v2283, %v2279
        %v2404 = vpack.c.b16 %v2284, %v2280
        %v2405 = vpack.c.b16 %v2289, %v2285
        %v2406 = vpack.c.b16 %v2290, %v2286
        %v2407 = vpack.c.b16 %v2291, %v2287
        %v2408 = vpack.c.b16 %v2292, %v2288
        %v2409 = vpack.c.b16 %v2297, %v2293
        %v2410 = vpack.c.b16 %v2298, %v2294
        %v2411 = vpack.c.b16 %v2299, %v2295
        %v2412 = vpack.c.b16 %v2300, %v2296
        %v2413 = vpack.c.b16 %v2305, %v2301
        %v2414 = vpack.c.b16 %v2306, %v2302
        %v2415 = vpack.c.b16 %v2307, %v2303
        %v2416 = vpack.c.b16 %v2308, %v2304
        %v2417 = vpack.c.b16 %v2313, %v2309
        %v2418 = vpack.c.b16 %v2314, %v2310
        %v2419 = vpack.c.b16 %v2315, %v2311
        %v2420 = vpack.c.b16 %v2316, %v2312
        %v2421 = vpack.c.b16 %v2321, %v2317
        %v2422 = vpack.c.b16 %v2322, %v2318
        %v2423 = vpack.c.b16 %v2323, %v2319
        %v2424 = vpack.c.b16 %v2324, %v2320
        %v2425 = vpack.c.b16 %v2329, %v2325
        %v2426 = vpack.c.b16 %v2330, %v2326
        %v2427 = vpack.c.b16 %v2331, %v2327
        %v2428 = vpack.c.b16 %v2332, %v2328
        %v2429 = vpack.c.b16 %v2337, %v2333
        %v2430 = vpack.c.b16 %v2338, %v2334
        %v2431 = vpack.c.b16 %v2339, %v2335
        %v2432 = vpack.c.b16 %v2340, %v2336
        %v2433 = vpack.c.b16 %v2345, %v2341
        %v2434 = vpack.c.b16 %v2346, %v2342
        %v2435 = vpack.c.b16 %v2347, %v2343
        %v2436 = vpack.c.b16 %v2348, %v2344
        %v2437 = vpack.c.b16 %v2353, %v2349
        %v2438 = vpack.c.b16 %v2354, %v2350
        %v2439 = vpack.c.b16 %v2355, %v2351
        %v2440 = vpack.c.b16 %v2356, %v2352
        %v2441 = vpack.c.b16 %v2361, %v2357
        %v2442 = vpack.c.b16 %v2362, %v2358
        %v2443 = vpack.c.b16 %v2363, %v2359
        %v2444 = vpack.c.b16 %v2364, %v2360
        %v2445 = vpack.c.b16 %v2369, %v2365
        %v2446 = vpack.c.b16 %v2370, %v2366
        %v2447 = vpack.c.b16 %v2371, %v2367
        %v2448 = vpack.c.b16 %v2372, %v2368
        %v2449 = vpack.c.b16 %v2377, %v2373
        %v2450 = vpack.c.b16 %v2378, %v2374
        %v2451 = vpack.c.b16 %v2379, %v2375
        %v2452 = vpack.c.b16 %v2380, %v2376
        %v2453 = vpack.c.b16 %v2385, %v2381
        %v2454 = vpack.c.b16 %v2386, %v2382
        %v2455 = vpack.c.b16 %v2387, %v2383
        %v2456 = vpack.c.b16 %v2388, %v2384
        %v2457 = vpack.c.b16 %v2393, %v2389
        %v2458 = vpack.c.b16 %v2394, %v2390
        %v2459 = vpack.c.b16 %v2395, %v2391
        %v2460 = vpack.c.b16 %v2396, %v2392
        %2525 = vmatprep.subr.bf16.mxu0 %v2398
        %2526 = vmatpush1.bf16.msra.mxu0 %v2397
        %2527 = vmatprep.subr.bf16.mxu0 %v2402
        %2528 = vmatpush1.bf16.msra.mxu0 %v2401
        %2529 = vmatprep.subr.bf16.mxu0 %v2406
        %2530 = vmatpush1.bf16.msra.mxu0 %v2405
        %2531 = vmatprep.subr.bf16.mxu0 %v2410
        %2532 = vmatpush1.bf16.msra.mxu0 %v2409
        %2533 = vmatprep.subr.bf16.mxu0 %v2414
        %2534 = vmatpush1.bf16.msra.mxu0 %v2413
        %2535 = vmatprep.subr.bf16.mxu0 %v2418
        %2536 = vmatpush1.bf16.msra.mxu0 %v2417
        %2537 = vmatprep.subr.bf16.mxu0 %v2422
        %2538 = vmatpush1.bf16.msra.mxu0 %v2421
        %2539 = vmatprep.subr.bf16.mxu0 %v2426
        %2540 = vmatpush1.bf16.msra.mxu0 %v2425
        %2541 = vmatprep.subr.bf16.mxu0 %v2430
        %2542 = vmatpush1.bf16.msra.mxu0 %v2429
        %2543 = vmatprep.subr.bf16.mxu0 %v2434
        %2544 = vmatpush1.bf16.msra.mxu0 %v2433
        %2545 = vmatprep.subr.bf16.mxu0 %v2438
        %2546 = vmatpush1.bf16.msra.mxu0 %v2437
        %2547 = vmatprep.subr.bf16.mxu0 %v2442
        %2548 = vmatpush1.bf16.msra.mxu0 %v2441
        %2549 = vmatprep.subr.bf16.mxu0 %v2446
        %2550 = vmatpush1.bf16.msra.mxu0 %v2445
        %2551 = vmatprep.subr.bf16.mxu0 %v2450
        %2552 = vmatpush1.bf16.msra.mxu0 %v2449
        %2553 = vmatprep.subr.bf16.mxu0 %v2454
        %2554 = vmatpush1.bf16.msra.mxu0 %v2453
        %2555 = vmatprep.subr.bf16.mxu0 %v2458
        %2556 = vmatpush1.bf16.msra.mxu0 %v2457
        %2557 = vmatprep.mubr.bf16.mxu0 %v2116
        %2558 = vmatmul.mubr.bf16.gmra.mrb[0].mxu0 %v2115
        %v2559 = vpop.f32.mrb[0].mxu0
        %v2560 = vadd.f32 %v2188, %v2559
        %v2561 = vpop.f32.mrb[0].mxu0
        %v2562 = vadd.f32 %v2192, %v2561
        %v2563 = vpop.f32.mrb[0].mxu0
        %v2564 = vadd.f32 %v2188, %v2563
        %v2565 = vpop.f32.mrb[0].mxu0
        %v2566 = vadd.f32 %v2192, %v2565
        %2567 = vmatprep.mubr.bf16.mxu0 %v2118
        %2568 = vmatmul.mubr.bf16.gmra.mrb[0].mxu0 %v2117
        %v2569 = vpop.f32.mrb[0].mxu0
        %v2570 = vadd.f32 %v2188, %v2569
        %v2571 = vpop.f32.mrb[0].mxu0
        %v2572 = vadd.f32 %v2192, %v2571
        %v2573 = vpop.f32.mrb[0].mxu0
        %v2574 = vadd.f32 %v2188, %v2573
        %v2575 = vpop.f32.mrb[0].mxu0
        %v2576 = vadd.f32 %v2192, %v2575
        %2577 = vdwg.mxu0
        %2578 = vmatprep.subr.bf16.mxu0 %v2400
        %2579 = vmatpush1.bf16.msra.mxu0 %v2399
        %2580 = vmatprep.subr.bf16.mxu0 %v2404
        %2581 = vmatpush1.bf16.msra.mxu0 %v2403
        %2582 = vmatprep.subr.bf16.mxu0 %v2408
        %2583 = vmatpush1.bf16.msra.mxu0 %v2407
        %2584 = vmatprep.subr.bf16.mxu0 %v2412
        %2585 = vmatpush1.bf16.msra.mxu0 %v2411
        %2586 = vmatprep.subr.bf16.mxu0 %v2416
        %2587 = vmatpush1.bf16.msra.mxu0 %v2415
        %2588 = vmatprep.subr.bf16.mxu0 %v2420
        %2589 = vmatpush1.bf16.msra.mxu0 %v2419
        %2590 = vmatprep.subr.bf16.mxu0 %v2424
        %2591 = vmatpush1.bf16.msra.mxu0 %v2423
        %2592 = vmatprep.subr.bf16.mxu0 %v2428
        %2593 = vmatpush1.bf16.msra.mxu0 %v2427
        %2594 = vmatprep.subr.bf16.mxu0 %v2432
        %2595 = vmatpush1.bf16.msra.mxu0 %v2431
        %2596 = vmatprep.subr.bf16.mxu0 %v2436
        %2597 = vmatpush1.bf16.msra.mxu0 %v2435
        %2598 = vmatprep.subr.bf16.mxu0 %v2440
        %2599 = vmatpush1.bf16.msra.mxu0 %v2439
        %2600 = vmatprep.subr.bf16.mxu0 %v2444
        %2601 = vmatpush1.bf16.msra.mxu0 %v2443
        %2602 = vmatprep.subr.bf16.mxu0 %v2448
        %2603 = vmatpush1.bf16.msra.mxu0 %v2447
        %2604 = vmatprep.subr.bf16.mxu0 %v2452
        %2605 = vmatpush1.bf16.msra.mxu0 %v2451
        %2606 = vmatprep.subr.bf16.mxu0 %v2456
        %2607 = vmatpush1.bf16.msra.mxu0 %v2455
        %2608 = vmatprep.subr.bf16.mxu0 %v2460
        %2609 = vmatpush1.bf16.msra.mxu0 %v2459
        %2610 = vmatprep.mubr.bf16.mxu0 %v2116
        %2611 = vmatmul.mubr.bf16.gmra.mrb[0].mxu0 %v2115
        %v2612 = vpop.f32.mrb[0].mxu0
        %v2613 = vadd.f32 %v2196, %v2612
        %v2614 = vpop.f32.mrb[0].mxu0
        %v2615 = vadd.f32 %v2200, %v2614
        %v2616 = vpop.f32.mrb[0].mxu0
        %v2617 = vadd.f32 %v2196, %v2616
        %v2618 = vpop.f32.mrb[0].mxu0
        %v2619 = vadd.f32 %v2200, %v2618
        %2620 = vmatprep.mubr.bf16.mxu0 %v2118
        %2621 = vmatmul.mubr.bf16.gmra.mrb[0].mxu0 %v2117
        %v2622 = vpop.f32.mrb[0].mxu0
        %v2623 = vadd.f32 %v2196, %v2622
        %v2624 = vpop.f32.mrb[0].mxu0
        %v2625 = vadd.f32 %v2200, %v2624
        %v2626 = vpop.f32.mrb[0].mxu0
        %v2627 = vadd.f32 %v2196, %v2626
        %v2628 = vpop.f32.mrb[0].mxu0
        %v2629 = vadd.f32 %v2200, %v2628
        %2630 = vdwg.mxu0
        %v2631 = vpack.c.bf16 %v2564, %v2560
        %v2632 = vpack.c.bf16 %v2566, %v2562
        %v2633 = vpack.c.bf16 %v2617, %v2613
        %v2634 = vpack.c.bf16 %v2619, %v2615
        %v2635 = vpack.c.bf16 %v2574, %v2570
        %v2636 = vpack.c.bf16 %v2576, %v2572
        %v2637 = vpack.c.bf16 %v2627, %v2623
        %v2638 = vpack.c.bf16 %v2629, %v2625
        %v2639 = vmax.bf16 %v2631, 0
        %v2640 = vmax.bf16 %v2632, 0
        %v2641 = vmax.bf16 %v2633, 0
        %v2642 = vmax.bf16 %v2634, 0
        %v2643 = vmax.bf16 %v2635, 0
        %v2644 = vmax.bf16 %v2636, 0
        %v2645 = vmax.bf16 %v2637, 0
        %v2646 = vmax.bf16 %v2638, 0
        %v2647 = vld [vmem:[#allocation11] sm:$0xff]
        %v2648 = vld [vmem:[#allocation11 + $0x8] sm:$0xff]
        %v2649 = vld [vmem:[#allocation11 + $0x10] sm:$0xff]
        %v2650 = vld [vmem:[#allocation11 + $0x18] sm:$0xff]
        %v2651 = vld [vmem:[#allocation11 + $0x20] sm:$0xff]
        %v2652 = vld [vmem:[#allocation11 + $0x28] sm:$0xff]
        %v2653 = vld [vmem:[#allocation11 + $0x30] sm:$0xff]
        %v2654 = vld [vmem:[#allocation11 + $0x38] sm:$0xff]
        %v2655 = vld [vmem:[#allocation11 + $0x40] sm:$0xff]
        %v2656 = vld [vmem:[#allocation11 + $0x48] sm:$0xff]
        %v2657 = vld [vmem:[#allocation11 + $0x50] sm:$0xff]
        %v2658 = vld [vmem:[#allocation11 + $0x58] sm:$0xff]
        %v2659 = vld [vmem:[#allocation11 + $0x60] sm:$0xff]
        %v2660 = vld [vmem:[#allocation11 + $0x68] sm:$0xff]
        %v2661 = vld [vmem:[#allocation11 + $0x70] sm:$0xff]
        %v2662 = vld [vmem:[#allocation11 + $0x78] sm:$0xff]
        %v2663 = vld [vmem:[#allocation11 + $0x80] sm:$0xff]
        %v2664 = vld [vmem:[#allocation11 + $0x88] sm:$0xff]
        %v2665 = vld [vmem:[#allocation11 + $0x90] sm:$0xff]
        %v2666 = vld [vmem:[#allocation11 + $0x98] sm:$0xff]
        %v2667 = vld [vmem:[#allocation11 + $0xa0] sm:$0xff]
        %v2668 = vld [vmem:[#allocation11 + $0xa8] sm:$0xff]
        %v2669 = vld [vmem:[#allocation11 + $0xb0] sm:$0xff]
        %v2670 = vld [vmem:[#allocation11 + $0xb8] sm:$0xff]
        %v2671 = vld [vmem:[#allocation11 + $0xc0] sm:$0xff]
        %v2672 = vld [vmem:[#allocation11 + $0xc8] sm:$0xff]
        %v2673 = vld [vmem:[#allocation11 + $0xd0] sm:$0xff]
        %v2674 = vld [vmem:[#allocation11 + $0xd8] sm:$0xff]
        %v2675 = vld [vmem:[#allocation11 + $0xe0] sm:$0xff]
        %v2676 = vld [vmem:[#allocation11 + $0xe8] sm:$0xff]
        %v2677 = vld [vmem:[#allocation11 + $0xf0] sm:$0xff]
        %v2678 = vld [vmem:[#allocation11 + $0xf8] sm:$0xff]
        %v2679 = vld [vmem:[#allocation11 + $0x100] sm:$0xff]
        %v2680 = vld [vmem:[#allocation11 + $0x108] sm:$0xff]
        %v2681 = vld [vmem:[#allocation11 + $0x110] sm:$0xff]
        %v2682 = vld [vmem:[#allocation11 + $0x118] sm:$0xff]
        %v2683 = vld [vmem:[#allocation11 + $0x120] sm:$0xff]
        %v2684 = vld [vmem:[#allocation11 + $0x128] sm:$0xff]
        %v2685 = vld [vmem:[#allocation11 + $0x130] sm:$0xff]
        %v2686 = vld [vmem:[#allocation11 + $0x138] sm:$0xff]
        %v2687 = vld [vmem:[#allocation11 + $0x140] sm:$0xff]
        %v2688 = vld [vmem:[#allocation11 + $0x148] sm:$0xff]
        %v2689 = vld [vmem:[#allocation11 + $0x150] sm:$0xff]
        %v2690 = vld [vmem:[#allocation11 + $0x158] sm:$0xff]
        %v2691 = vld [vmem:[#allocation11 + $0x160] sm:$0xff]
        %v2692 = vld [vmem:[#allocation11 + $0x168] sm:$0xff]
        %v2693 = vld [vmem:[#allocation11 + $0x170] sm:$0xff]
        %v2694 = vld [vmem:[#allocation11 + $0x178] sm:$0xff]
        %v2695 = vld [vmem:[#allocation11 + $0x180] sm:$0xff]
        %v2696 = vld [vmem:[#allocation11 + $0x188] sm:$0xff]
        %v2697 = vld [vmem:[#allocation11 + $0x190] sm:$0xff]
        %v2698 = vld [vmem:[#allocation11 + $0x198] sm:$0xff]
        %v2699 = vld [vmem:[#allocation11 + $0x1a0] sm:$0xff]
        %v2700 = vld [vmem:[#allocation11 + $0x1a8] sm:$0xff]
        %v2701 = vld [vmem:[#allocation11 + $0x1b0] sm:$0xff]
        %v2702 = vld [vmem:[#allocation11 + $0x1b8] sm:$0xff]
        %v2703 = vld [vmem:[#allocation11 + $0x1c0] sm:$0xff]
        %v2704 = vld [vmem:[#allocation11 + $0x1c8] sm:$0xff]
        %v2705 = vld [vmem:[#allocation11 + $0x1d0] sm:$0xff]
        %v2706 = vld [vmem:[#allocation11 + $0x1d8] sm:$0xff]
        %v2707 = vld [vmem:[#allocation11 + $0x1e0] sm:$0xff]
        %v2708 = vld [vmem:[#allocation11 + $0x1e8] sm:$0xff]
        %v2709 = vld [vmem:[#allocation11 + $0x1f0] sm:$0xff]
        %v2710 = vld [vmem:[#allocation11 + $0x1f8] sm:$0xff]
        %v2711 = vld [vmem:[%s14] sm:$0x3]
        %v2713 = vlaneseq
        %v2714 = vshrl.u32 %v2713, 7
        %v2715 = vsub.s32 0, %v2714
        %v2716 = vrot.slane %v2711, %v2715
        %v2717 = vlaneseq
        %v2718 = vshrl.u32 %v2717, 7
        %v2719 = vsub.s32 1, %v2718
        %v2720 = vrot.slane %v2711, %v2719
        %v2787 = vunpack.c.l.b16 %v2647
        %v2788 = vunpack.c.h.b16 %v2647
        %v2789 = vunpack.c.l.b16 %v2648
        %v2790 = vunpack.c.h.b16 %v2648
        %v2791 = vunpack.c.l.b16 %v2649
        %v2792 = vunpack.c.h.b16 %v2649
        %v2793 = vunpack.c.l.b16 %v2650
        %v2794 = vunpack.c.h.b16 %v2650
        %v2795 = vunpack.c.l.b16 %v2651
        %v2796 = vunpack.c.h.b16 %v2651
        %v2797 = vunpack.c.l.b16 %v2652
        %v2798 = vunpack.c.h.b16 %v2652
        %v2799 = vunpack.c.l.b16 %v2653
        %v2800 = vunpack.c.h.b16 %v2653
        %v2801 = vunpack.c.l.b16 %v2654
        %v2802 = vunpack.c.h.b16 %v2654
        %v2803 = vunpack.c.l.b16 %v2655
        %v2804 = vunpack.c.h.b16 %v2655
        %v2805 = vunpack.c.l.b16 %v2656
        %v2806 = vunpack.c.h.b16 %v2656
        %v2807 = vunpack.c.l.b16 %v2657
        %v2808 = vunpack.c.h.b16 %v2657
        %v2809 = vunpack.c.l.b16 %v2658
        %v2810 = vunpack.c.h.b16 %v2658
        %v2811 = vunpack.c.l.b16 %v2659
        %v2812 = vunpack.c.h.b16 %v2659
        %v2813 = vunpack.c.l.b16 %v2660
        %v2814 = vunpack.c.h.b16 %v2660
        %v2815 = vunpack.c.l.b16 %v2661
        %v2816 = vunpack.c.h.b16 %v2661
        %v2817 = vunpack.c.l.b16 %v2662
        %v2818 = vunpack.c.h.b16 %v2662
        %v2819 = vunpack.c.l.b16 %v2663
        %v2820 = vunpack.c.h.b16 %v2663
        %v2821 = vunpack.c.l.b16 %v2664
        %v2822 = vunpack.c.h.b16 %v2664
        %v2823 = vunpack.c.l.b16 %v2665
        %v2824 = vunpack.c.h.b16 %v2665
        %v2825 = vunpack.c.l.b16 %v2666
        %v2826 = vunpack.c.h.b16 %v2666
        %v2827 = vunpack.c.l.b16 %v2667
        %v2828 = vunpack.c.h.b16 %v2667
        %v2829 = vunpack.c.l.b16 %v2668
        %v2830 = vunpack.c.h.b16 %v2668
        %v2831 = vunpack.c.l.b16 %v2669
        %v2832 = vunpack.c.h.b16 %v2669
        %v2833 = vunpack.c.l.b16 %v2670
        %v2834 = vunpack.c.h.b16 %v2670
        %v2835 = vunpack.c.l.b16 %v2671
        %v2836 = vunpack.c.h.b16 %v2671
        %v2837 = vunpack.c.l.b16 %v2672
        %v2838 = vunpack.c.h.b16 %v2672
        %v2839 = vunpack.c.l.b16 %v2673
        %v2840 = vunpack.c.h.b16 %v2673
        %v2841 = vunpack.c.l.b16 %v2674
        %v2842 = vunpack.c.h.b16 %v2674
        %v2843 = vunpack.c.l.b16 %v2675
        %v2844 = vunpack.c.h.b16 %v2675
        %v2845 = vunpack.c.l.b16 %v2676
        %v2846 = vunpack.c.h.b16 %v2676
        %v2847 = vunpack.c.l.b16 %v2677
        %v2848 = vunpack.c.h.b16 %v2677
        %v2849 = vunpack.c.l.b16 %v2678
        %v2850 = vunpack.c.h.b16 %v2678
        %v2851 = vunpack.c.l.b16 %v2679
        %v2852 = vunpack.c.h.b16 %v2679
        %v2853 = vunpack.c.l.b16 %v2680
        %v2854 = vunpack.c.h.b16 %v2680
        %v2855 = vunpack.c.l.b16 %v2681
        %v2856 = vunpack.c.h.b16 %v2681
        %v2857 = vunpack.c.l.b16 %v2682
        %v2858 = vunpack.c.h.b16 %v2682
        %v2859 = vunpack.c.l.b16 %v2683
        %v2860 = vunpack.c.h.b16 %v2683
        %v2861 = vunpack.c.l.b16 %v2684
        %v2862 = vunpack.c.h.b16 %v2684
        %v2863 = vunpack.c.l.b16 %v2685
        %v2864 = vunpack.c.h.b16 %v2685
        %v2865 = vunpack.c.l.b16 %v2686
        %v2866 = vunpack.c.h.b16 %v2686
        %v2867 = vunpack.c.l.b16 %v2687
        %v2868 = vunpack.c.h.b16 %v2687
        %v2869 = vunpack.c.l.b16 %v2688
        %v2870 = vunpack.c.h.b16 %v2688
        %v2871 = vunpack.c.l.b16 %v2689
        %v2872 = vunpack.c.h.b16 %v2689
        %v2873 = vunpack.c.l.b16 %v2690
        %v2874 = vunpack.c.h.b16 %v2690
        %v2875 = vunpack.c.l.b16 %v2691
        %v2876 = vunpack.c.h.b16 %v2691
        %v2877 = vunpack.c.l.b16 %v2692
        %v2878 = vunpack.c.h.b16 %v2692
        %v2879 = vunpack.c.l.b16 %v2693
        %v2880 = vunpack.c.h.b16 %v2693
        %v2881 = vunpack.c.l.b16 %v2694
        %v2882 = vunpack.c.h.b16 %v2694
        %v2883 = vunpack.c.l.b16 %v2695
        %v2884 = vunpack.c.h.b16 %v2695
        %v2885 = vunpack.c.l.b16 %v2696
        %v2886 = vunpack.c.h.b16 %v2696
        %v2887 = vunpack.c.l.b16 %v2697
        %v2888 = vunpack.c.h.b16 %v2697
        %v2889 = vunpack.c.l.b16 %v2698
        %v2890 = vunpack.c.h.b16 %v2698
        %v2891 = vunpack.c.l.b16 %v2699
        %v2892 = vunpack.c.h.b16 %v2699
        %v2893 = vunpack.c.l.b16 %v2700
        %v2894 = vunpack.c.h.b16 %v2700
        %v2895 = vunpack.c.l.b16 %v2701
        %v2896 = vunpack.c.h.b16 %v2701
        %v2897 = vunpack.c.l.b16 %v2702
        %v2898 = vunpack.c.h.b16 %v2702
        %v2899 = vunpack.c.l.b16 %v2703
        %v2900 = vunpack.c.h.b16 %v2703
        %v2901 = vunpack.c.l.b16 %v2704
        %v2902 = vunpack.c.h.b16 %v2704
        %v2903 = vunpack.c.l.b16 %v2705
        %v2904 = vunpack.c.h.b16 %v2705
        %v2905 = vunpack.c.l.b16 %v2706
        %v2906 = vunpack.c.h.b16 %v2706
        %v2907 = vunpack.c.l.b16 %v2707
        %v2908 = vunpack.c.h.b16 %v2707
        %v2909 = vunpack.c.l.b16 %v2708
        %v2910 = vunpack.c.h.b16 %v2708
        %v2911 = vunpack.c.l.b16 %v2709
        %v2912 = vunpack.c.h.b16 %v2709
        %v2913 = vunpack.c.l.b16 %v2710
        %v2914 = vunpack.c.h.b16 %v2710
        %v2915 = vpack.c.b16 %v2789, %v2787
        %v2916 = vpack.c.b16 %v2790, %v2788
        %v2917 = vpack.c.b16 %v2793, %v2791
        %v2918 = vpack.c.b16 %v2794, %v2792
        %v2919 = vpack.c.b16 %v2797, %v2795
        %v2920 = vpack.c.b16 %v2798, %v2796
        %v2921 = vpack.c.b16 %v2801, %v2799
        %v2922 = vpack.c.b16 %v2802, %v2800
        %v2923 = vpack.c.b16 %v2805, %v2803
        %v2924 = vpack.c.b16 %v2806, %v2804
        %v2925 = vpack.c.b16 %v2809, %v2807
        %v2926 = vpack.c.b16 %v2810, %v2808
        %v2927 = vpack.c.b16 %v2813, %v2811
        %v2928 = vpack.c.b16 %v2814, %v2812
        %v2929 = vpack.c.b16 %v2817, %v2815
        %v2930 = vpack.c.b16 %v2818, %v2816
        %v2931 = vpack.c.b16 %v2821, %v2819
        %v2932 = vpack.c.b16 %v2822, %v2820
        %v2933 = vpack.c.b16 %v2825, %v2823
        %v2934 = vpack.c.b16 %v2826, %v2824
        %v2935 = vpack.c.b16 %v2829, %v2827
        %v2936 = vpack.c.b16 %v2830, %v2828
        %v2937 = vpack.c.b16 %v2833, %v2831
        %v2938 = vpack.c.b16 %v2834, %v2832
        %v2939 = vpack.c.b16 %v2837, %v2835
        %v2940 = vpack.c.b16 %v2838, %v2836
        %v2941 = vpack.c.b16 %v2841, %v2839
        %v2942 = vpack.c.b16 %v2842, %v2840
        %v2943 = vpack.c.b16 %v2845, %v2843
        %v2944 = vpack.c.b16 %v2846, %v2844
        %v2945 = vpack.c.b16 %v2849, %v2847
        %v2946 = vpack.c.b16 %v2850, %v2848
        %v2947 = vpack.c.b16 %v2853, %v2851
        %v2948 = vpack.c.b16 %v2854, %v2852
        %v2949 = vpack.c.b16 %v2857, %v2855
        %v2950 = vpack.c.b16 %v2858, %v2856
        %v2951 = vpack.c.b16 %v2861, %v2859
        %v2952 = vpack.c.b16 %v2862, %v2860
        %v2953 = vpack.c.b16 %v2865, %v2863
        %v2954 = vpack.c.b16 %v2866, %v2864
        %v2955 = vpack.c.b16 %v2869, %v2867
        %v2956 = vpack.c.b16 %v2870, %v2868
        %v2957 = vpack.c.b16 %v2873, %v2871
        %v2958 = vpack.c.b16 %v2874, %v2872
        %v2959 = vpack.c.b16 %v2877, %v2875
        %v2960 = vpack.c.b16 %v2878, %v2876
        %v2961 = vpack.c.b16 %v2881, %v2879
        %v2962 = vpack.c.b16 %v2882, %v2880
        %v2963 = vpack.c.b16 %v2885, %v2883
        %v2964 = vpack.c.b16 %v2886, %v2884
        %v2965 = vpack.c.b16 %v2889, %v2887
        %v2966 = vpack.c.b16 %v2890, %v2888
        %v2967 = vpack.c.b16 %v2893, %v2891
        %v2968 = vpack.c.b16 %v2894, %v2892
        %v2969 = vpack.c.b16 %v2897, %v2895
        %v2970 = vpack.c.b16 %v2898, %v2896
        %v2971 = vpack.c.b16 %v2901, %v2899
        %v2972 = vpack.c.b16 %v2902, %v2900
        %v2973 = vpack.c.b16 %v2905, %v2903
        %v2974 = vpack.c.b16 %v2906, %v2904
        %v2975 = vpack.c.b16 %v2909, %v2907
        %v2976 = vpack.c.b16 %v2910, %v2908
        %v2977 = vpack.c.b16 %v2913, %v2911
        %v2978 = vpack.c.b16 %v2914, %v2912
        %3043 = vmatprep.subr.bf16.mxu0 %v2916
        %3044 = vmatpush1.bf16.msra.mxu0 %v2915
        %3045 = vmatprep.subr.bf16.mxu0 %v2918
        %3046 = vmatpush1.bf16.msra.mxu0 %v2917
        %3047 = vmatprep.subr.bf16.mxu0 %v2920
        %3048 = vmatpush1.bf16.msra.mxu0 %v2919
        %3049 = vmatprep.subr.bf16.mxu0 %v2922
        %3050 = vmatpush1.bf16.msra.mxu0 %v2921
        %3051 = vmatprep.subr.bf16.mxu0 %v2924
        %3052 = vmatpush1.bf16.msra.mxu0 %v2923
        %3053 = vmatprep.subr.bf16.mxu0 %v2926
        %3054 = vmatpush1.bf16.msra.mxu0 %v2925
        %3055 = vmatprep.subr.bf16.mxu0 %v2928
        %3056 = vmatpush1.bf16.msra.mxu0 %v2927
        %3057 = vmatprep.subr.bf16.mxu0 %v2930
        %3058 = vmatpush1.bf16.msra.mxu0 %v2929
        %3059 = vmatprep.subr.bf16.mxu0 %v2932
        %3060 = vmatpush1.bf16.msra.mxu0 %v2931
        %3061 = vmatprep.subr.bf16.mxu0 %v2934
        %3062 = vmatpush1.bf16.msra.mxu0 %v2933
        %3063 = vmatprep.subr.bf16.mxu0 %v2936
        %3064 = vmatpush1.bf16.msra.mxu0 %v2935
        %3065 = vmatprep.subr.bf16.mxu0 %v2938
        %3066 = vmatpush1.bf16.msra.mxu0 %v2937
        %3067 = vmatprep.subr.bf16.mxu0 %v2940
        %3068 = vmatpush1.bf16.msra.mxu0 %v2939
        %3069 = vmatprep.subr.bf16.mxu0 %v2942
        %3070 = vmatpush1.bf16.msra.mxu0 %v2941
        %3071 = vmatprep.subr.bf16.mxu0 %v2944
        %3072 = vmatpush1.bf16.msra.mxu0 %v2943
        %3073 = vmatprep.subr.bf16.mxu0 %v2946
        %3074 = vmatpush1.bf16.msra.mxu0 %v2945
        %3075 = vmatprep.mubr.bf16.mxu0 %v2640
        %3076 = vmatmul.mubr.bf16.gmra.mrb[0].mxu0 %v2639
        %v3077 = vpop.f32.mrb[0].mxu0
        %v3078 = vadd.f32 %v2716, %v3077
        %v3079 = vpop.f32.mrb[0].mxu0
        %v3080 = vadd.f32 %v2720, %v3079
        %v3081 = vpop.f32.mrb[0].mxu0
        %v3082 = vadd.f32 %v2716, %v3081
        %v3083 = vpop.f32.mrb[0].mxu0
        %v3084 = vadd.f32 %v2720, %v3083
        %3085 = vmatprep.mubr.bf16.mxu0 %v2644
        %3086 = vmatmul.mubr.bf16.gmra.mrb[0].mxu0 %v2643
        %v3087 = vpop.f32.mrb[0].mxu0
        %v3088 = vadd.f32 %v2716, %v3087
        %v3089 = vpop.f32.mrb[0].mxu0
        %v3090 = vadd.f32 %v2720, %v3089
        %v3091 = vpop.f32.mrb[0].mxu0
        %v3092 = vadd.f32 %v2716, %v3091
        %v3093 = vpop.f32.mrb[0].mxu0
        %v3094 = vadd.f32 %v2720, %v3093
        %3095 = vdwg.mxu0
        %3096 = vmatprep.subr.bf16.mxu0 %v2948
        %3097 = vmatpush1.bf16.msra.mxu0 %v2947
        %3098 = vmatprep.subr.bf16.mxu0 %v2950
        %3099 = vmatpush1.bf16.msra.mxu0 %v2949
        %3100 = vmatprep.subr.bf16.mxu0 %v2952
        %3101 = vmatpush1.bf16.msra.mxu0 %v2951
        %3102 = vmatprep.subr.bf16.mxu0 %v2954
        %3103 = vmatpush1.bf16.msra.mxu0 %v2953
        %3104 = vmatprep.subr.bf16.mxu0 %v2956
        %3105 = vmatpush1.bf16.msra.mxu0 %v2955
        %3106 = vmatprep.subr.bf16.mxu0 %v2958
        %3107 = vmatpush1.bf16.msra.mxu0 %v2957
        %3108 = vmatprep.subr.bf16.mxu0 %v2960
        %3109 = vmatpush1.bf16.msra.mxu0 %v2959
        %3110 = vmatprep.subr.bf16.mxu0 %v2962
        %3111 = vmatpush1.bf16.msra.mxu0 %v2961
        %3112 = vmatprep.subr.bf16.mxu0 %v2964
        %3113 = vmatpush1.bf16.msra.mxu0 %v2963
        %3114 = vmatprep.subr.bf16.mxu0 %v2966
        %3115 = vmatpush1.bf16.msra.mxu0 %v2965
        %3116 = vmatprep.subr.bf16.mxu0 %v2968
        %3117 = vmatpush1.bf16.msra.mxu0 %v2967
        %3118 = vmatprep.subr.bf16.mxu0 %v2970
        %3119 = vmatpush1.bf16.msra.mxu0 %v2969
        %3120 = vmatprep.subr.bf16.mxu0 %v2972
        %3121 = vmatpush1.bf16.msra.mxu0 %v2971
        %3122 = vmatprep.subr.bf16.mxu0 %v2974
        %3123 = vmatpush1.bf16.msra.mxu0 %v2973
        %3124 = vmatprep.subr.bf16.mxu0 %v2976
        %3125 = vmatpush1.bf16.msra.mxu0 %v2975
        %3126 = vmatprep.subr.bf16.mxu0 %v2978
        %3127 = vmatpush1.bf16.msra.mxu0 %v2977
        %3128 = vmatprep.mubr.bf16.mxu0 %v2642
        %3129 = vmatmul.mubr.bf16.gmra.mrb[0].mxu0 %v2641
        %v3130 = vpop.f32.mrb[0].mxu0
        %v3131 = vadd.f32 %v3078, %v3130
        %v3132 = vpop.f32.mrb[0].mxu0
        %v3133 = vadd.f32 %v3080, %v3132
        %v3134 = vpop.f32.mrb[0].mxu0
        %v3135 = vadd.f32 %v3082, %v3134
        %v3136 = vpop.f32.mrb[0].mxu0
        %v3137 = vadd.f32 %v3084, %v3136
        %3138 = vmatprep.mubr.bf16.mxu0 %v2646
        %3139 = vmatmul.mubr.bf16.gmra.mrb[0].mxu0 %v2645
        %v3140 = vpop.f32.mrb[0].mxu0
        %v3141 = vadd.f32 %v3088, %v3140
        %v3142 = vpop.f32.mrb[0].mxu0
        %v3143 = vadd.f32 %v3090, %v3142
        %v3144 = vpop.f32.mrb[0].mxu0
        %v3145 = vadd.f32 %v3092, %v3144
        %v3146 = vpop.f32.mrb[0].mxu0
        %v3147 = vadd.f32 %v3094, %v3146
        %3148 = vdwg.mxu0
        %3149 = vst [vmem:[%s578] sm:$0xff] %v3131
        %3150 = vst [vmem:[%s578 + $0x8] sm:$0xff] %v3133
        %3151 = vst [vmem:[%s578 + $0x10] sm:$0xff] %v3135
        %3152 = vst [vmem:[%s578 + $0x18] sm:$0xff] %v3137
        %3153 = vst [vmem:[%s578 + $0x20] sm:$0xff] %v3141
        %3154 = vst [vmem:[%s578 + $0x28] sm:$0xff] %v3143
        %3155 = vst [vmem:[%s578 + $0x30] sm:$0xff] %v3145
        %3156 = vst [vmem:[%s578 + $0x38] sm:$0xff] %v3147
        %s3157 = sand.u32 %s361, 1
        %s3158 = scalar_lea.sflag [#allocation4], %s3157
        %s3159 = sand.u32 %s361, 1
        %s3160 = smul.addr %s3159, 64
        %s3161 = scalar_lea.vmem [#allocation13], %s3160
        // Predicated region
        $region105: #{_forward_impl.1} parent=79 // pred_check
          %p3162 = pneg %p371
        $region106: #{_forward_impl.1} parent=79 // pred_check_branch
          %3164 = sbr.rel (%p3162) target = $region108
        $region107: #{_forward_impl.1} parent=79 // pred_region
          %s3165 = smul.u32 4, %s33
          %s3167 = ssub.s32 1024, 1024
          %3168 = vsyncadd %s3158, %s3167
          %s3169 = smul.addr %s3165, 2
          %s3170 = smul.addr %s3169, 128
          %s3171 = scalar_lea.hbm %s15, %s3170
          %s3172 = sshll.u32 %s3161, 4
          %s3173 = int_to_ptr.vmem [resolvable:$true] %s3172
          %3178 = dma.vmem_to_hbm [thread:$0]  %s3173, 1024, %s3171, %s3158, 256, 256, 16
        $region108: #{_forward_impl.1} parent=79 // pred_fallthru
          _
      $region80: #{_forward_impl.1} parent=5 // pred_fallthru
        _
      %p3179 = scmp.le.s32.totalorder 2, %s28
      // Predicated region
      $region109: #{_forward_impl.1} parent=5 // pred_check
        %p3180 = pneg %p3179
      $region110: #{_forward_impl.1} parent=5 // pred_check_branch
        %3182 = sbr.rel (%p3180) target = $region112
      $region111: #{_forward_impl.1} parent=5 // pred_region
        %s3183 = ssub.s32 %s28, 2
        // Predicated region
        $region113: #{_forward_impl.1} parent=111 // pred_check
          %p3184 = pneg %p377
        $region114: #{_forward_impl.1} parent=111 // pred_check_branch
          %3186 = sbr.rel (%p3184) target = $region116
        $region115: #{_forward_impl.1} parent=111 // pred_region
          %s3187 = sand.u32 %s362, 1
          %s3188 = scalar_lea.sflag [#allocation4], %s3187
          %s3189 = sand.u32 %s362, 1
          %s3190 = smul.addr %s3189, 64
          %s3191 = scalar_lea.vmem [#allocation13], %s3190
          %3192 = dma.done %s3188, 1024
        $region116: #{_forward_impl.1} parent=111 // pred_fallthru
          _
      $region112: #{_forward_impl.1} parent=5 // pred_fallthru
        _
    $region6: #{_forward_impl.1} parent=1 // loop_footer
      %s32 = sadd.s32 1, %s28
    $region7: #{_forward_impl.1} parent=1 // loop_footer_branch
      %27 = sbr.rel target = $region3
    $region8: #{_forward_impl.1} parent=1 // loop_exit
      _
    %3193 = vsyncpa [#allocation3], 1
    %s3194 = scalar_lea.sflag [#allocation3], 1
    %3195 = vsyncpa %s3194, 1
    %3196 = vsyncpa [#allocation6], 1
    %3197 = vsyncpa [#allocation9], 1
    %3198 = vsyncpa [#allocation12], 1
    %3199 = vsyncpa [#allocation4], 1
    %s3200 = scalar_lea.sflag [#allocation4], 1
    %3201 = vsyncpa %s3200, 1

// kernel: _forward_impl.1
$region0: #{_forward_impl.1}
  #allocation0 [shape = 'u32[]', space=smem, size = 0x4, offset = 0x4, fixed_abs, tag = 'smem constant byte address 0x4 - core index']
  #allocation1 [shape = 'u32[144,128]{1,0:T(1,128)}', space=vmem, size = 0x12000, scoped, tag = 'internal scratch']
  %s0 = inlined_call_operand.vmem [shape: f32[64,256], index: 0, kind: input, shape index: {}]
  %s1 = inlined_call_operand.hbm [shape: bf16[256,512], index: 1, kind: input, shape index: {}]
  %s2 = inlined_call_operand.vmem [shape: f32[1,512], index: 2, kind: input, shape index: {}]
  %s3 = inlined_call_operand.hbm [shape: bf16[512,256], index: 3, kind: input, shape index: {}]
  %s4 = inlined_call_operand.vmem [shape: f32[1,256], index: 4, kind: input, shape index: {}]
  %s5 = inlined_call_operand.hbm [shape: bf16[256,128], index: 5, kind: input, shape index: {}]
  %s6 = inlined_call_operand.vmem [shape: f32[1,128], index: 6, kind: input, shape index: {}]
  %s7 = inlined_call_operand.vmem [shape: bf16[128,128], index: 7, kind: input, shape index: {}]
  %s8 = inlined_call_operand.vmem [shape: f32[1,128], index: 8, kind: input, shape index: {}]
  %s9 = inlined_call_operand.hbm [shape: bf16[128,256], index: 9, kind: input, shape index: {}]
  %s10 = inlined_call_operand.vmem [shape: f32[1,256], index: 10, kind: input, shape index: {}]
  %s11 = inlined_call_operand.hbm [shape: bf16[256,512], index: 11, kind: input, shape index: {}]
  %s12 = inlined_call_operand.vmem [shape: f32[1,512], index: 12, kind: input, shape index: {}]
  %s13 = inlined_call_operand.hbm [shape: bf16[512,256], index: 13, kind: input, shape index: {}]
  %s14 = inlined_call_operand.vmem [shape: f32[1,256], index: 14, kind: input, shape index: {}]
  %s15 = inlined_call_operand.hbm [shape: f32[64,256], index: 15, kind: output, shape index: {}]
  %s16 = sld [smem:[#allocation0]]
  $region117: #{_forward_impl.1} parent=0
    _
  %s18 = ssub.s32 1, %s16
  %s19 = scalar_select 0, %s18, %s16
  $region1: #{_forward_impl.1} parent=0
    #allocation2 [shape = 'u8[262144]{0}', space=vmem, size = 0x40000, scoped, tag = 'input window, operand 1, single buffered']
    #allocation3 [shape = 's32[2]{0}', space=sflag, size = 0x8, scoped, tag = 'scoped memory for _forward_impl.1']
    #allocation4 [shape = 's32[2]{0}', space=sflag, size = 0x8, scoped, tag = 'scoped memory for _forward_impl.1']
    #allocation5 [shape = 'u8[262144]{0}', space=vmem, size = 0x40000, scoped, tag = 'input window, operand 3, single buffered']
    #allocation6 [shape = 's32[1]{0}', space=sflag, size = 0x4, scoped, tag = 'scoped memory for _forward_impl.1']
    #allocation7 [shape = 'u8[65536]{0}', space=vmem, size = 0x10000, scoped, tag = 'input window, operand 5, single buffered']
    #allocation8 [shape = 'u8[65536]{0}', space=vmem, size = 0x10000, scoped, tag = 'input window, operand 9, single buffered']
    #allocation9 [shape = 's32[1]{0}', space=sflag, size = 0x4, scoped, tag = 'scoped memory for _forward_impl.1']
    #allocation10 [shape = 'u8[262144]{0}', space=vmem, size = 0x40000, scoped, tag = 'input window, operand 11, single buffered']
    #allocation11 [shape = 'u8[262144]{0}', space=vmem, size = 0x40000, scoped, tag = 'input window, operand 13, single buffered']
    #allocation12 [shape = 's32[1]{0}', space=sflag, size = 0x4, scoped, tag = 'scoped memory for _forward_impl.1']
    #allocation13 [shape = 'u8[65536]{0}', space=vmem, size = 0x10000, scoped, tag = 'output window, operand 0']
    %20 = vsyncpa [#allocation3], 0
    %21 = vsyncpa [#allocation6], 0
    %22 = vsyncpa [#allocation9], 0
    %23 = vsyncpa [#allocation12], 0
    %24 = vsyncpa [#allocation4], 0
    %s25 = scalar_lea.sflag [#allocation4], 1
    %26 = vsyncpa %s25, 0
    loop: start=0, step=1, limit=4
    $region2: #{_forward_impl.1} parent=1 // loop_pre_header
      _
    $region3: #{_forward_impl.1} parent=1 // loop_header
      %s28 = sphi 0, %s32
      %p29 = scmp.ge.s32.totalorder %s28, 4
      %s38 = sphi 0, %s40
      %s41 = sphi 0, %s38
      %s42 = sphi 0, %s41
      %s58 = sphi 0, %s42
      %s62 = sphi 0, %s62
      %s64 = sphi 0, %s62
      %s65 = sphi 0, %s64
      %s79 = sphi 0, %s65
      %s83 = sphi 0, %s83
      %s85 = sphi 0, %s83
      %s86 = sphi 0, %s85
      %s100 = sphi 0, %s86
      %s104 = sphi 0, %s104
      %s106 = sphi 0, %s104
      %s107 = sphi 0, %s106
      %s121 = sphi 0, %s107
      %s125 = sphi 0, %s125
      %s127 = sphi 0, %s125
      %s128 = sphi 0, %s127
      %s142 = sphi 0, %s128
      %s146 = sphi 0, %s146
      %s148 = sphi 0, %s146
      %s149 = sphi 0, %s148
      %s163 = sphi 0, %s149
      %s167 = sphi 0, %s167
      %s169 = sphi 0, %s167
      %s170 = sphi 0, %s169
      %s184 = sphi 0, %s170
      %s188 = sphi 0, %s188
      %s190 = sphi 0, %s188
      %s191 = sphi 0, %s190
      %s205 = sphi 0, %s191
      %s209 = sphi 0, %s209
      %s211 = sphi 0, %s209
      %s212 = sphi 0, %s211
      %s226 = sphi 0, %s212
      %s230 = sphi 0, %s230
      %s232 = sphi 0, %s230
      %s233 = sphi 0, %s232
      %s247 = sphi 0, %s233
      %s251 = sphi 0, %s251
      %s253 = sphi 0, %s251
      %s254 = sphi 0, %s253
      %s268 = sphi 0, %s254
      %s272 = sphi 0, %s272
      %s274 = sphi 0, %s272
      %s275 = sphi 0, %s274
      %s289 = sphi 0, %s275
      %s293 = sphi 0, %s293
      %s295 = sphi 0, %s293
      %s296 = sphi 0, %s295
      %s310 = sphi 0, %s296
      %s314 = sphi 0, %s314
      %s316 = sphi 0, %s314
      %s317 = sphi 0, %s316
      %s331 = sphi 0, %s317
      %s335 = sphi 0, %s335
      %s337 = sphi 0, %s335
      %s338 = sphi 0, %s337
      %s352 = sphi 0, %s338
      %s358 = sphi 0, %s360
      %s361 = sphi 0, %s358
      %s362 = sphi 0, %s361
      %s378 = sphi 0, %s362
    $region4: #{_forward_impl.1} parent=1 // loop_header_branch
      %31 = sbr.rel (%p29) target = $region8
    $region5: #{_forward_impl.1} parent=1 // loop_body
      %s33 = ssub.s32 %s28, 1
      %s34 = ssub.s32 %s28, 2
      %s35 = sadd.s32 %s28, 1
      %s36 = ssub.s32 %s28, %s35
      %p37 = scmp.eq.s32.totalorder %s36, 0
      %s39 = sadd.s32 %s38, 1
      %s40 = scalar_select %p37, %s38, %s39
      %p43 = pneg %p37
      %p44 = scmp.eq.s32.totalorder %s28, 1
      %p45 = por %p43, %p44
      %p46 = scmp.ne.s32.totalorder %s38, %s41
      %p47 = scmp.eq.s32.totalorder %s28, 0
      %p48 = por %p46, %p47
      %p49 = scmp.ne.s32.totalorder %s38, %s41
      %p50 = scmp.eq.s32.totalorder %s33, 1
      %p51 = por %p49, %p50
      %p52 = scmp.ne.s32.totalorder %s41, %s42
      %p53 = scmp.eq.s32.totalorder %s33, 0
      %p54 = por %p52, %p53
      %p55 = scmp.ne.s32.totalorder %s41, %s42
      %p56 = scmp.eq.s32.totalorder %s34, 1
      %p57 = por %p55, %p56
      %p59 = scmp.ne.s32.totalorder %s42, %s58
      %p60 = scmp.eq.s32.totalorder %s34, 0
      %p61 = por %p59, %p60
      %s63 = sadd.s32 %s62, 1
      %p66 = scmp.eq.s32.totalorder %s28, 1
      %p67 = scmp.ne.s32.totalorder %s62, %s64
      %p68 = scmp.eq.s32.totalorder %s28, 0
      %p69 = por %p67, %p68
      %p70 = scmp.ne.s32.totalorder %s62, %s64
      %p71 = scmp.eq.s32.totalorder %s33, 1
      %p72 = por %p70, %p71
      %p73 = scmp.ne.s32.totalorder %s64, %s65
      %p74 = scmp.eq.s32.totalorder %s33, 0
      %p75 = por %p73, %p74
      %p76 = scmp.ne.s32.totalorder %s64, %s65
      %p77 = scmp.eq.s32.totalorder %s34, 1
      %p78 = por %p76, %p77
      %p80 = scmp.ne.s32.totalorder %s65, %s79
      %p81 = scmp.eq.s32.totalorder %s34, 0
      %p82 = por %p80, %p81
      %s84 = sadd.s32 %s83, 1
      %p87 = scmp.eq.s32.totalorder %s28, 1
      %p88 = scmp.ne.s32.totalorder %s83, %s85
      %p89 = scmp.eq.s32.totalorder %s28, 0
      %p90 = por %p88, %p89
      %p91 = scmp.ne.s32.totalorder %s83, %s85
      %p92 = scmp.eq.s32.totalorder %s33, 1
      %p93 = por %p91, %p92
      %p94 = scmp.ne.s32.totalorder %s85, %s86
      %p95 = scmp.eq.s32.totalorder %s33, 0
      %p96 = por %p94, %p95
      %p97 = scmp.ne.s32.totalorder %s85, %s86
      %p98 = scmp.eq.s32.totalorder %s34, 1
      %p99 = por %p97, %p98
      %p101 = scmp.ne.s32.totalorder %s86, %s100
      %p102 = scmp.eq.s32.totalorder %s34, 0
      %p103 = por %p101, %p102
      %s105 = sadd.s32 %s104, 1
      %p108 = scmp.eq.s32.totalorder %s28, 1
      %p109 = scmp.ne.s32.totalorder %s104, %s106
      %p110 = scmp.eq.s32.totalorder %s28, 0
      %p111 = por %p109, %p110
      %p112 = scmp.ne.s32.totalorder %s104, %s106
      %p113 = scmp.eq.s32.totalorder %s33, 1
      %p114 = por %p112, %p113
      %p115 = scmp.ne.s32.totalorder %s106, %s107
      %p116 = scmp.eq.s32.totalorder %s33, 0
      %p117 = por %p115, %p116
      %p118 = scmp.ne.s32.totalorder %s106, %s107
      %p119 = scmp.eq.s32.totalorder %s34, 1
      %p120 = por %p118, %p119
      %p122 = scmp.ne.s32.totalorder %s107, %s121
      %p123 = scmp.eq.s32.totalorder %s34, 0
      %p124 = por %p122, %p123
      %s126 = sadd.s32 %s125, 1
      %p129 = scmp.eq.s32.totalorder %s28, 1
      %p130 = scmp.ne.s32.totalorder %s125, %s127
      %p131 = scmp.eq.s32.totalorder %s28, 0
      %p132 = por %p130, %p131
      %p133 = scmp.ne.s32.totalorder %s125, %s127
      %p134 = scmp.eq.s32.totalorder %s33, 1
      %p135 = por %p133, %p134
      %p136 = scmp.ne.s32.totalorder %s127, %s128
      %p137 = scmp.eq.s32.totalorder %s33, 0
      %p138 = por %p136, %p137
      %p139 = scmp.ne.s32.totalorder %s127, %s128
      %p140 = scmp.eq.s32.totalorder %s34, 1
      %p141 = por %p139, %p140
      %p143 = scmp.ne.s32.totalorder %s128, %s142
      %p144 = scmp.eq.s32.totalorder %s34, 0
      %p145 = por %p143, %p144
      %s147 = sadd.s32 %s146, 1
      %p150 = scmp.eq.s32.totalorder %s28, 1
      %p151 = scmp.ne.s32.totalorder %s146, %s148
      %p152 = scmp.eq.s32.totalorder %s28, 0
      %p153 = por %p151, %p152
      %p154 = scmp.ne.s32.totalorder %s146, %s148
      %p155 = scmp.eq.s32.totalorder %s33, 1
      %p156 = por %p154, %p155
      %p157 = scmp.ne.s32.totalorder %s148, %s149
      %p158 = scmp.eq.s32.totalorder %s33, 0
      %p159 = por %p157, %p158
      %p160 = scmp.ne.s32.totalorder %s148, %s149
      %p161 = scmp.eq.s32.totalorder %s34, 1
      %p162 = por %p160, %p161
      %p164 = scmp.ne.s32.totalorder %s149, %s163
      %p165 = scmp.eq.s32.totalorder %s34, 0
      %p166 = por %p164, %p165
      %s168 = sadd.s32 %s167, 1
      %p171 = scmp.eq.s32.totalorder %s28, 1
      %p172 = scmp.ne.s32.totalorder %s167, %s169
      %p173 = scmp.eq.s32.totalorder %s28, 0
      %p174 = por %p172, %p173
      %p175 = scmp.ne.s32.totalorder %s167, %s169
      %p176 = scmp.eq.s32.totalorder %s33, 1
      %p177 = por %p175, %p176
      %p178 = scmp.ne.s32.totalorder %s169, %s170
      %p179 = scmp.eq.s32.totalorder %s33, 0
      %p180 = por %p178, %p179
      %p181 = scmp.ne.s32.totalorder %s169, %s170
      %p182 = scmp.eq.s32.totalorder %s34, 1
      %p183 = por %p181, %p182
      %p185 = scmp.ne.s32.totalorder %s170, %s184
      %p186 = scmp.eq.s32.totalorder %s34, 0
      %p187 = por %p185, %p186
      %s189 = sadd.s32 %s188, 1
      %p192 = scmp.eq.s32.totalorder %s28, 1
      %p193 = scmp.ne.s32.totalorder %s188, %s190
      %p194 = scmp.eq.s32.totalorder %s28, 0
      %p195 = por %p193, %p194
      %p196 = scmp.ne.s32.totalorder %s188, %s190
      %p197 = scmp.eq.s32.totalorder %s33, 1
      %p198 = por %p196, %p197
      %p199 = scmp.ne.s32.totalorder %s190, %s191
      %p200 = scmp.eq.s32.totalorder %s33, 0
      %p201 = por %p199, %p200
      %p202 = scmp.ne.s32.totalorder %s190, %s191
      %p203 = scmp.eq.s32.totalorder %s34, 1
      %p204 = por %p202, %p203
      %p206 = scmp.ne.s32.totalorder %s191, %s205
      %p207 = scmp.eq.s32.totalorder %s34, 0
      %p208 = por %p206, %p207
      %s210 = sadd.s32 %s209, 1
      %p213 = scmp.eq.s32.totalorder %s28, 1
      %p214 = scmp.ne.s32.totalorder %s209, %s211
      %p215 = scmp.eq.s32.totalorder %s28, 0
      %p216 = por %p214, %p215
      %p217 = scmp.ne.s32.totalorder %s209, %s211
      %p218 = scmp.eq.s32.totalorder %s33, 1
      %p219 = por %p217, %p218
      %p220 = scmp.ne.s32.totalorder %s211, %s212
      %p221 = scmp.eq.s32.totalorder %s33, 0
      %p222 = por %p220, %p221
      %p223 = scmp.ne.s32.totalorder %s211, %s212
      %p224 = scmp.eq.s32.totalorder %s34, 1
      %p225 = por %p223, %p224
      %p227 = scmp.ne.s32.totalorder %s212, %s226
      %p228 = scmp.eq.s32.totalorder %s34, 0
      %p229 = por %p227, %p228
      %s231 = sadd.s32 %s230, 1
      %p234 = scmp.eq.s32.totalorder %s28, 1
      %p235 = scmp.ne.s32.totalorder %s230, %s232
      %p236 = scmp.eq.s32.totalorder %s28, 0
      %p237 = por %p235, %p236
      %p238 = scmp.ne.s32.totalorder %s230, %s232
      %p239 = scmp.eq.s32.totalorder %s33, 1
      %p240 = por %p238, %p239
      %p241 = scmp.ne.s32.totalorder %s232, %s233
      %p242 = scmp.eq.s32.totalorder %s33, 0
      %p243 = por %p241, %p242
      %p244 = scmp.ne.s32.totalorder %s232, %s233
      %p245 = scmp.eq.s32.totalorder %s34, 1
      %p246 = por %p244, %p245
      %p248 = scmp.ne.s32.totalorder %s233, %s247
      %p249 = scmp.eq.s32.totalorder %s34, 0
      %p250 = por %p248, %p249
      %s252 = sadd.s32 %s251, 1
      %p255 = scmp.eq.s32.totalorder %s28, 1
      %p256 = scmp.ne.s32.totalorder %s251, %s253
      %p257 = scmp.eq.s32.totalorder %s28, 0
      %p258 = por %p256, %p257
      %p259 = scmp.ne.s32.totalorder %s251, %s253
      %p260 = scmp.eq.s32.totalorder %s33, 1
      %p261 = por %p259, %p260
      %p262 = scmp.ne.s32.totalorder %s253, %s254
      %p263 = scmp.eq.s32.totalorder %s33, 0
      %p264 = por %p262, %p263
      %p265 = scmp.ne.s32.totalorder %s253, %s254
      %p266 = scmp.eq.s32.totalorder %s34, 1
      %p267 = por %p265, %p266
      %p269 = scmp.ne.s32.totalorder %s254, %s268
      %p270 = scmp.eq.s32.totalorder %s34, 0
      %p271 = por %p269, %p270
      %s273 = sadd.s32 %s272, 1
      %p276 = scmp.eq.s32.totalorder %s28, 1
      %p277 = scmp.ne.s32.totalorder %s272, %s274
      %p278 = scmp.eq.s32.totalorder %s28, 0
      %p279 = por %p277, %p278
      %p280 = scmp.ne.s32.totalorder %s272, %s274
      %p281 = scmp.eq.s32.totalorder %s33, 1
      %p282 = por %p280, %p281
      %p283 = scmp.ne.s32.totalorder %s274, %s275
      %p284 = scmp.eq.s32.totalorder %s33, 0
      %p285 = por %p283, %p284
      %p286 = scmp.ne.s32.totalorder %s274, %s275
      %p287 = scmp.eq.s32.totalorder %s34, 1
      %p288 = por %p286, %p287
      %p290 = scmp.ne.s32.totalorder %s275, %s289
      %p291 = scmp.eq.s32.totalorder %s34, 0
      %p292 = por %p290, %p291
      %s294 = sadd.s32 %s293, 1
      %p297 = scmp.eq.s32.totalorder %s28, 1
      %p298 = scmp.ne.s32.totalorder %s293, %s295
      %p299 = scmp.eq.s32.totalorder %s28, 0
      %p300 = por %p298, %p299
      %p301 = scmp.ne.s32.totalorder %s293, %s295
      %p302 = scmp.eq.s32.totalorder %s33, 1
      %p303 = por %p301, %p302
      %p304 = scmp.ne.s32.totalorder %s295, %s296
      %p305 = scmp.eq.s32.totalorder %s33, 0
      %p306 = por %p304, %p305
      %p307 = scmp.ne.s32.totalorder %s295, %s296
      %p308 = scmp.eq.s32.totalorder %s34, 1
      %p309 = por %p307, %p308
      %p311 = scmp.ne.s32.totalorder %s296, %s310
      %p312 = scmp.eq.s32.totalorder %s34, 0
      %p313 = por %p311, %p312
      %s315 = sadd.s32 %s314, 1
      %p318 = scmp.eq.s32.totalorder %s28, 1
      %p319 = scmp.ne.s32.totalorder %s314, %s316
      %p320 = scmp.eq.s32.totalorder %s28, 0
      %p321 = por %p319, %p320
      %p322 = scmp.ne.s32.totalorder %s314, %s316
      %p323 = scmp.eq.s32.totalorder %s33, 1
      %p324 = por %p322, %p323
      %p325 = scmp.ne.s32.totalorder %s316, %s317
      %p326 = scmp.eq.s32.totalorder %s33, 0
      %p327 = por %p325, %p326
      %p328 = scmp.ne.s32.totalorder %s316, %s317
      %p329 = scmp.eq.s32.totalorder %s34, 1
      %p330 = por %p328, %p329
      %p332 = scmp.ne.s32.totalorder %s317, %s331
      %p333 = scmp.eq.s32.totalorder %s34, 0
      %p334 = por %p332, %p333
      %s336 = sadd.s32 %s335, 1
      %p339 = scmp.eq.s32.totalorder %s28, 1
      %p340 = scmp.ne.s32.totalorder %s335, %s337
      %p341 = scmp.eq.s32.totalorder %s28, 0
      %p342 = por %p340, %p341
      %p343 = scmp.ne.s32.totalorder %s335, %s337
      %p344 = scmp.eq.s32.totalorder %s33, 1
      %p345 = por %p343, %p344
      %p346 = scmp.ne.s32.totalorder %s337, %s338
      %p347 = scmp.eq.s32.totalorder %s33, 0
      %p348 = por %p346, %p347
      %p349 = scmp.ne.s32.totalorder %s337, %s338
      %p350 = scmp.eq.s32.totalorder %s34, 1
      %p351 = por %p349, %p350
      %p353 = scmp.ne.s32.totalorder %s338, %s352
      %p354 = scmp.eq.s32.totalorder %s34, 0
      %p355 = por %p353, %p354
      %s356 = ssub.s32 %s28, %s35
      %p357 = scmp.eq.s32.totalorder %s356, 0
      %s359 = sadd.s32 %s358, 1
      %s360 = scalar_select %p357, %s358, %s359
      %p363 = pneg %p357
      %p364 = scmp.eq.s32.totalorder %s28, 1
      %p365 = por %p363, %p364
      %p366 = scmp.ne.s32.totalorder %s358, %s361
      %p367 = scmp.eq.s32.totalorder %s28, 0
      %p368 = por %p366, %p367
      %p369 = scmp.ne.s32.totalorder %s358, %s361
      %p370 = scmp.eq.s32.totalorder %s33, 1
      %p371 = por %p369, %p370
      %p372 = scmp.ne.s32.totalorder %s361, %s362
      %p373 = scmp.eq.s32.totalorder %s33, 0
      %p374 = por %p372, %p373
      %p375 = scmp.ne.s32.totalorder %s361, %s362
      %p376 = scmp.eq.s32.totalorder %s34, 1
      %p377 = por %p375, %p376
      %p379 = scmp.ne.s32.totalorder %s362, %s378
      %p380 = scmp.eq.s32.totalorder %s34, 0
      %p381 = por %p379, %p380
      %p382 = scmp.le.s32.totalorder 1, %s28
      %p383 = scmp.lt.s32.totalorder %s28, 3
      %p384 = pnand %p382, %p383
      %p385 = pneg %p384
      // Predicated region
      $region9: #{_forward_impl.1} parent=5 // pred_check
        _
      $region10: #{_forward_impl.1} parent=5 // pred_check_branch
        %387 = sbr.rel (%p384) target = $region12
      $region11: #{_forward_impl.1} parent=5 // pred_region
        %s388 = ssub.s32 %s28, 1
        // Predicated region
        $region13: #{_forward_impl.1} parent=11 // pred_check
          %p389 = pneg %p75
        $region14: #{_forward_impl.1} parent=11 // pred_check_branch
          %391 = sbr.rel (%p389) target = $region16
        $region15: #{_forward_impl.1} parent=11 // pred_region
          %s393 = ssub.s32 8192, 8192
          %394 = vsyncadd [#allocation3], %s393
          %s395 = sshll.u32 [#allocation2], 4
          %s396 = int_to_ptr.vmem [resolvable:$true] %s395
          %401 = dma.hbm_to_vmem [thread:$0]  %s1, 8192, %s396, [#allocation3], 256, 256, 16
        $region16: #{_forward_impl.1} parent=11 // pred_fallthru
          _
        // Predicated region
        $region17: #{_forward_impl.1} parent=11 // pred_check
          %p402 = pneg %p96
        $region18: #{_forward_impl.1} parent=11 // pred_check_branch
          %404 = sbr.rel (%p402) target = $region20
        $region19: #{_forward_impl.1} parent=11 // pred_region
          _
        $region20: #{_forward_impl.1} parent=11 // pred_fallthru
          _
        // Predicated region
        $region21: #{_forward_impl.1} parent=11 // pred_check
          %p405 = pneg %p117
        $region22: #{_forward_impl.1} parent=11 // pred_check_branch
          %407 = sbr.rel (%p405) target = $region24
        $region23: #{_forward_impl.1} parent=11 // pred_region
          %s409 = ssub.s32 8192, 8192
          %410 = vsyncadd [#allocation6], %s409
          %s411 = sshll.u32 [#allocation5], 4
          %s412 = int_to_ptr.vmem [resolvable:$true] %s411
          %417 = dma.hbm_to_vmem [thread:$0]  %s3, 8192, %s412, [#allocation6], 128, 128, 8
        $region24: #{_forward_impl.1} parent=11 // pred_fallthru
          _
        // Predicated region
        $region25: #{_forward_impl.1} parent=11 // pred_check
          %p418 = pneg %p138
        $region26: #{_forward_impl.1} parent=11 // pred_check_branch
          %420 = sbr.rel (%p418) target = $region28
        $region27: #{_forward_impl.1} parent=11 // pred_region
          _
        $region28: #{_forward_impl.1} parent=11 // pred_fallthru
          _
        // Predicated region
        $region29: #{_forward_impl.1} parent=11 // pred_check
          %p421 = pneg %p159
        $region30: #{_forward_impl.1} parent=11 // pred_check_branch
          %423 = sbr.rel (%p421) target = $region32
        $region31: #{_forward_impl.1} parent=11 // pred_region
          %s425 = ssub.s32 2048, 2048
          %426 = vsyncadd [#allocation6], %s425
          %s427 = sshll.u32 [#allocation7], 4
          %s428 = int_to_ptr.vmem [resolvable:$true] %s427
          %433 = dma.hbm_to_vmem [thread:$0]  %s5, 2048, %s428, [#allocation6], 64, 64, 4
        $region32: #{_forward_impl.1} parent=11 // pred_fallthru
          _
        // Predicated region
        $region33: #{_forward_impl.1} parent=11 // pred_check
          %p434 = pneg %p180
        $region34: #{_forward_impl.1} parent=11 // pred_check_branch
          %436 = sbr.rel (%p434) target = $region36
        $region35: #{_forward_impl.1} parent=11 // pred_region
          _
        $region36: #{_forward_impl.1} parent=11 // pred_fallthru
          _
        // Predicated region
        $region37: #{_forward_impl.1} parent=11 // pred_check
          %p437 = pneg %p201
        $region38: #{_forward_impl.1} parent=11 // pred_check_branch
          %439 = sbr.rel (%p437) target = $region40
        $region39: #{_forward_impl.1} parent=11 // pred_region
          _
        $region40: #{_forward_impl.1} parent=11 // pred_fallthru
          _
        // Predicated region
        $region41: #{_forward_impl.1} parent=11 // pred_check
          %p440 = pneg %p222
        $region42: #{_forward_impl.1} parent=11 // pred_check_branch
          %442 = sbr.rel (%p440) target = $region44
        $region43: #{_forward_impl.1} parent=11 // pred_region
          _
        $region44: #{_forward_impl.1} parent=11 // pred_fallthru
          _
        // Predicated region
        $region45: #{_forward_impl.1} parent=11 // pred_check
          %p443 = pneg %p243
        $region46: #{_forward_impl.1} parent=11 // pred_check_branch
          %445 = sbr.rel (%p443) target = $region48
        $region47: #{_forward_impl.1} parent=11 // pred_region
          %s447 = ssub.s32 2048, 2048
          %448 = vsyncadd [#allocation9], %s447
          %s449 = sshll.u32 [#allocation8], 4
          %s450 = int_to_ptr.vmem [resolvable:$true] %s449
          %455 = dma.hbm_to_vmem [thread:$0]  %s9, 2048, %s450, [#allocation9], 128, 128, 8
        $region48: #{_forward_impl.1} parent=11 // pred_fallthru
          _
        // Predicated region
        $region49: #{_forward_impl.1} parent=11 // pred_check
          %p456 = pneg %p264
        $region50: #{_forward_impl.1} parent=11 // pred_check_branch
          %458 = sbr.rel (%p456) target = $region52
        $region51: #{_forward_impl.1} parent=11 // pred_region
          _
        $region52: #{_forward_impl.1} parent=11 // pred_fallthru
          _
        // Predicated region
        $region53: #{_forward_impl.1} parent=11 // pred_check
          %p459 = pneg %p285
        $region54: #{_forward_impl.1} parent=11 // pred_check_branch
          %461 = sbr.rel (%p459) target = $region56
        $region55: #{_forward_impl.1} parent=11 // pred_region
          %s463 = ssub.s32 8192, 8192
          %464 = vsyncadd [#allocation9], %s463
          %s465 = sshll.u32 [#allocation10], 4
          %s466 = int_to_ptr.vmem [resolvable:$true] %s465
          %471 = dma.hbm_to_vmem [thread:$0]  %s11, 8192, %s466, [#allocation9], 256, 256, 16
        $region56: #{_forward_impl.1} parent=11 // pred_fallthru
          _
        // Predicated region
        $region57: #{_forward_impl.1} parent=11 // pred_check
          %p472 = pneg %p306
        $region58: #{_forward_impl.1} parent=11 // pred_check_branch
          %474 = sbr.rel (%p472) target = $region60
        $region59: #{_forward_impl.1} parent=11 // pred_region
          _
        $region60: #{_forward_impl.1} parent=11 // pred_fallthru
          _
        // Predicated region
        $region61: #{_forward_impl.1} parent=11 // pred_check
          %p475 = pneg %p327
        $region62: #{_forward_impl.1} parent=11 // pred_check_branch
          %477 = sbr.rel (%p475) target = $region64
        $region63: #{_forward_impl.1} parent=11 // pred_region
          %s479 = ssub.s32 8192, 8192
          %480 = vsyncadd [#allocation12], %s479
          %s481 = sshll.u32 [#allocation11], 4
          %s482 = int_to_ptr.vmem [resolvable:$true] %s481
          %487 = dma.hbm_to_vmem [thread:$0]  %s13, 8192, %s482, [#allocation12], 128, 128, 8
        $region64: #{_forward_impl.1} parent=11 // pred_fallthru
          _
        // Predicated region
        $region65: #{_forward_impl.1} parent=11 // pred_check
          %p488 = pneg %p348
        $region66: #{_forward_impl.1} parent=11 // pred_check_branch
          %490 = sbr.rel (%p488) target = $region68
        $region67: #{_forward_impl.1} parent=11 // pred_region
          _
        $region68: #{_forward_impl.1} parent=11 // pred_fallthru
          _
      $region12: #{_forward_impl.1} parent=5 // pred_fallthru
        _
      %p491 = scmp.lt.s32.totalorder %s28, 2
      // Predicated region
      $region69: #{_forward_impl.1} parent=5 // pred_check
        %p492 = pneg %p491
      $region70: #{_forward_impl.1} parent=5 // pred_check_branch
        %494 = sbr.rel (%p492) target = $region72
      $region71: #{_forward_impl.1} parent=5 // pred_region
        // Predicated region
        $region73: #{_forward_impl.1} parent=71 // pred_check
          %p495 = pneg %p48
        $region74: #{_forward_impl.1} parent=71 // pred_check_branch
          %497 = sbr.rel (%p495) target = $region76
        $region75: #{_forward_impl.1} parent=71 // pred_region
          %s498 = smul.u32 4, %s28
          %p499 = scmp.lt.s32.totalorder %s498, 7
          %s500 = scalar_select %p499, %s498, 7
          %s501 = smul.addr %s500, 2
          %s502 = smul.addr %s501, 8
          %s503 = scalar_lea.vmem %s0, %s502
          %s504 = smul.u32 4, %s28
        $region76: #{_forward_impl.1} parent=71 // pred_fallthru
          _
      $region72: #{_forward_impl.1} parent=5 // pred_fallthru
        _
      %p505 = scmp.le.s32.totalorder 1, %s28
      %p506 = scmp.lt.s32.totalorder %s28, 3
      %p507 = pnand %p505, %p506
      %p508 = pneg %p507
      // Predicated region
      $region77: #{_forward_impl.1} parent=5 // pred_check
        _
      $region78: #{_forward_impl.1} parent=5 // pred_check_branch
        %510 = sbr.rel (%p507) target = $region80
      $region79: #{_forward_impl.1} parent=5 // pred_region
        %s511 = ssub.s32 %s28, 1
        // Predicated region
        $region81: #{_forward_impl.1} parent=79 // pred_check
          %p512 = pneg %p75
        $region82: #{_forward_impl.1} parent=79 // pred_check_branch
          %514 = sbr.rel (%p512) target = $region84
        $region83: #{_forward_impl.1} parent=79 // pred_region
          %515 = dma.done [#allocation3], 8192
        $region84: #{_forward_impl.1} parent=79 // pred_fallthru
          _
        // Predicated region
        $region85: #{_forward_impl.1} parent=79 // pred_check
          %p516 = pneg %p117
        $region86: #{_forward_impl.1} parent=79 // pred_check_branch
          %518 = sbr.rel (%p516) target = $region88
        $region87: #{_forward_impl.1} parent=79 // pred_region
          %519 = dma.done [#allocation6], 8192
        $region88: #{_forward_impl.1} parent=79 // pred_fallthru
          _
        // Predicated region
        $region89: #{_forward_impl.1} parent=79 // pred_check
          %p520 = pneg %p159
        $region90: #{_forward_impl.1} parent=79 // pred_check_branch
          %522 = sbr.rel (%p520) target = $region92
        $region91: #{_forward_impl.1} parent=79 // pred_region
          %523 = dma.done [#allocation6], 2048
        $region92: #{_forward_impl.1} parent=79 // pred_fallthru
          _
        // Predicated region
        $region93: #{_forward_impl.1} parent=79 // pred_check
          %p524 = pneg %p243
        $region94: #{_forward_impl.1} parent=79 // pred_check_branch
          %526 = sbr.rel (%p524) target = $region96
        $region95: #{_forward_impl.1} parent=79 // pred_region
          %527 = dma.done [#allocation9], 2048
        $region96: #{_forward_impl.1} parent=79 // pred_fallthru
          _
        // Predicated region
        $region97: #{_forward_impl.1} parent=79 // pred_check
          %p528 = pneg %p285
        $region98: #{_forward_impl.1} parent=79 // pred_check_branch
          %530 = sbr.rel (%p528) target = $region100
        $region99: #{_forward_impl.1} parent=79 // pred_region
          %531 = dma.done [#allocation9], 8192
        $region100: #{_forward_impl.1} parent=79 // pred_fallthru
          _
        // Predicated region
        $region101: #{_forward_impl.1} parent=79 // pred_check
          %p532 = pneg %p327
        $region102: #{_forward_impl.1} parent=79 // pred_check_branch
          %534 = sbr.rel (%p532) target = $region104
        $region103: #{_forward_impl.1} parent=79 // pred_region
          %535 = dma.done [#allocation12], 8192
        $region104: #{_forward_impl.1} parent=79 // pred_fallthru
          _
        %s536 = smul.u32 4, %s33
        %p537 = scmp.lt.s32.totalorder %s536, 7
        %s538 = scalar_select %p537, %s536, 7
        %s539 = smul.addr %s538, 2
        %s540 = smul.addr %s539, 8
        %s541 = scalar_lea.vmem %s0, %s540
        %p542 = pneg %p54
        %p543 = pneg %p51
        %p544 = pneg %p75
        %p545 = pneg %p72
        %p546 = pneg %p96
        %p547 = pneg %p93
        %p548 = pneg %p117
        %p549 = pneg %p114
        %p550 = pneg %p138
        %p551 = pneg %p135
        %p552 = pneg %p159
        %p553 = pneg %p156
        %p554 = pneg %p180
        %p555 = pneg %p177
        %p556 = pneg %p201
        %p557 = pneg %p198
        %p558 = pneg %p222
        %p559 = pneg %p219
        %p560 = pneg %p243
        %p561 = pneg %p240
        %p562 = pneg %p264
        %p563 = pneg %p261
        %p564 = pneg %p285
        %p565 = pneg %p282
        %p566 = pneg %p306
        %p567 = pneg %p303
        %p568 = pneg %p327
        %p569 = pneg %p324
        %p570 = pneg %p348
        %p571 = pneg %p345
        %p572 = pneg %p374
        %p573 = pneg %p371
        %s574 = sand.u32 %s361, 1
        %s575 = scalar_lea.sflag [#allocation4], %s574
        %s576 = sand.u32 %s361, 1
        %s577 = smul.addr %s576, 64
        %s578 = scalar_lea.vmem [#allocation13], %s577
        %s579 = smul.u32 4, %s33
        %p580 = scmp.lt.s32.totalorder %s579, 7
        %s581 = scalar_select %p580, %s579, 7
        %s582 = smul.addr %s581, 2
        %s583 = smul.addr %s582, 8
        %s584 = scalar_lea.vmem %s0, %s583
        %s585 = smul.u32 4, %s33
        %s586 = smul.u32 4, %s33
        %v588 = vld [vmem:[%s584] sm:$0xff]
        %v589 = vld [vmem:[%s584 + $0x8] sm:$0xff]
        %v590 = vld [vmem:[%s584 + $0x10] sm:$0xff]
        %v591 = vld [vmem:[%s584 + $0x18] sm:$0xff]
        %v592 = vld [vmem:[%s584 + $0x20] sm:$0xff]
        %v593 = vld [vmem:[%s584 + $0x28] sm:$0xff]
        %v594 = vld [vmem:[%s584 + $0x30] sm:$0xff]
        %v595 = vld [vmem:[%s584 + $0x38] sm:$0xff]
        %v596 = vpack.c.bf16 %v590, %v588
        %v597 = vpack.c.bf16 %v591, %v589
        %v598 = vpack.c.bf16 %v594, %v592
        %v599 = vpack.c.bf16 %v595, %v593
        %v600 = vld [vmem:[#allocation2] sm:$0xff]
        %v601 = vld [vmem:[#allocation2 + $0x8] sm:$0xff]
        %v602 = vld [vmem:[#allocation2 + $0x10] sm:$0xff]
        %v603 = vld [vmem:[#allocation2 + $0x18] sm:$0xff]
        %v604 = vld [vmem:[#allocation2 + $0x20] sm:$0xff]
        %v605 = vld [vmem:[#allocation2 + $0x28] sm:$0xff]
        %v606 = vld [vmem:[#allocation2 + $0x30] sm:$0xff]
        %v607 = vld [vmem:[#allocation2 + $0x38] sm:$0xff]
        %v608 = vld [vmem:[#allocation2 + $0x40] sm:$0xff]
        %v609 = vld [vmem:[#allocation2 + $0x48] sm:$0xff]
        %v610 = vld [vmem:[#allocation2 + $0x50] sm:$0xff]
        %v611 = vld [vmem:[#allocation2 + $0x58] sm:$0xff]
        %v612 = vld [vmem:[#allocation2 + $0x60] sm:$0xff]
        %v613 = vld [vmem:[#allocation2 + $0x68] sm:$0xff]
        %v614 = vld [vmem:[#allocation2 + $0x70] sm:$0xff]
        %v615 = vld [vmem:[#allocation2 + $0x78] sm:$0xff]
        %v616 = vld [vmem:[#allocation2 + $0x80] sm:$0xff]
        %v617 = vld [vmem:[#allocation2 + $0x88] sm:$0xff]
        %v618 = vld [vmem:[#allocation2 + $0x90] sm:$0xff]
        %v619 = vld [vmem:[#allocation2 + $0x98] sm:$0xff]
        %v620 = vld [vmem:[#allocation2 + $0xa0] sm:$0xff]
        %v621 = vld [vmem:[#allocation2 + $0xa8] sm:$0xff]
        %v622 = vld [vmem:[#allocation2 + $0xb0] sm:$0xff]
        %v623 = vld [vmem:[#allocation2 + $0xb8] sm:$0xff]
        %v624 = vld [vmem:[#allocation2 + $0xc0] sm:$0xff]
        %v625 = vld [vmem:[#allocation2 + $0xc8] sm:$0xff]
        %v626 = vld [vmem:[#allocation2 + $0xd0] sm:$0xff]
        %v627 = vld [vmem:[#allocation2 + $0xd8] sm:$0xff]
        %v628 = vld [vmem:[#allocation2 + $0xe0] sm:$0xff]
        %v629 = vld [vmem:[#allocation2 + $0xe8] sm:$0xff]
        %v630 = vld [vmem:[#allocation2 + $0xf0] sm:$0xff]
        %v631 = vld [vmem:[#allocation2 + $0xf8] sm:$0xff]
        %v632 = vld [vmem:[#allocation2 + $0x100] sm:$0xff]
        %v633 = vld [vmem:[#allocation2 + $0x108] sm:$0xff]
        %v634 = vld [vmem:[#allocation2 + $0x110] sm:$0xff]
        %v635 = vld [vmem:[#allocation2 + $0x118] sm:$0xff]
        %v636 = vld [vmem:[#allocation2 + $0x120] sm:$0xff]
        %v637 = vld [vmem:[#allocation2 + $0x128] sm:$0xff]
        %v638 = vld [vmem:[#allocation2 + $0x130] sm:$0xff]
        %v639 = vld [vmem:[#allocation2 + $0x138] sm:$0xff]
        %v640 = vld [vmem:[#allocation2 + $0x140] sm:$0xff]
        %v641 = vld [vmem:[#allocation2 + $0x148] sm:$0xff]
        %v642 = vld [vmem:[#allocation2 + $0x150] sm:$0xff]
        %v643 = vld [vmem:[#allocation2 + $0x158] sm:$0xff]
        %v644 = vld [vmem:[#allocation2 + $0x160] sm:$0xff]
        %v645 = vld [vmem:[#allocation2 + $0x168] sm:$0xff]
        %v646 = vld [vmem:[#allocation2 + $0x170] sm:$0xff]
        %v647 = vld [vmem:[#allocation2 + $0x178] sm:$0xff]
        %v648 = vld [vmem:[#allocation2 + $0x180] sm:$0xff]
        %v649 = vld [vmem:[#allocation2 + $0x188] sm:$0xff]
        %v650 = vld [vmem:[#allocation2 + $0x190] sm:$0xff]
        %v651 = vld [vmem:[#allocation2 + $0x198] sm:$0xff]
        %v652 = vld [vmem:[#allocation2 + $0x1a0] sm:$0xff]
        %v653 = vld [vmem:[#allocation2 + $0x1a8] sm:$0xff]
        %v654 = vld [vmem:[#allocation2 + $0x1b0] sm:$0xff]
        %v655 = vld [vmem:[#allocation2 + $0x1b8] sm:$0xff]
        %v656 = vld [vmem:[#allocation2 + $0x1c0] sm:$0xff]
        %v657 = vld [vmem:[#allocation2 + $0x1c8] sm:$0xff]
        %v658 = vld [vmem:[#allocation2 + $0x1d0] sm:$0xff]
        %v659 = vld [vmem:[#allocation2 + $0x1d8] sm:$0xff]
        %v660 = vld [vmem:[#allocation2 + $0x1e0] sm:$0xff]
        %v661 = vld [vmem:[#allocation2 + $0x1e8] sm:$0xff]
        %v662 = vld [vmem:[#allocation2 + $0x1f0] sm:$0xff]
        %v663 = vld [vmem:[#allocation2 + $0x1f8] sm:$0xff]
        %v664 = vld [vmem:[%s2] sm:$0xf]
        %v666 = vlaneseq
        %v667 = vshrl.u32 %v666, 7
        %v668 = vsub.s32 0, %v667
        %v669 = vrot.slane %v664, %v668
        %v670 = vlaneseq
        %v671 = vshrl.u32 %v670, 7
        %v672 = vsub.s32 1, %v671
        %v673 = vrot.slane %v664, %v672
        %v674 = vlaneseq
        %v675 = vshrl.u32 %v674, 7
        %v676 = vsub.s32 2, %v675
        %v677 = vrot.slane %v664, %v676
        %v678 = vlaneseq
        %v679 = vshrl.u32 %v678, 7
        %v680 = vsub.s32 3, %v679
        %v681 = vrot.slane %v664, %v680
        %v750 = vunpack.c.l.b16 %v600
        %v751 = vunpack.c.h.b16 %v600
        %v752 = vunpack.c.l.b16 %v601
        %v753 = vunpack.c.h.b16 %v601
        %v754 = vunpack.c.l.b16 %v602
        %v755 = vunpack.c.h.b16 %v602
        %v756 = vunpack.c.l.b16 %v603
        %v757 = vunpack.c.h.b16 %v603
        %v758 = vunpack.c.l.b16 %v604
        %v759 = vunpack.c.h.b16 %v604
        %v760 = vunpack.c.l.b16 %v605
        %v761 = vunpack.c.h.b16 %v605
        %v762 = vunpack.c.l.b16 %v606
        %v763 = vunpack.c.h.b16 %v606
        %v764 = vunpack.c.l.b16 %v607
        %v765 = vunpack.c.h.b16 %v607
        %v766 = vunpack.c.l.b16 %v608
        %v767 = vunpack.c.h.b16 %v608
        %v768 = vunpack.c.l.b16 %v609
        %v769 = vunpack.c.h.b16 %v609
        %v770 = vunpack.c.l.b16 %v610
        %v771 = vunpack.c.h.b16 %v610
        %v772 = vunpack.c.l.b16 %v611
        %v773 = vunpack.c.h.b16 %v611
        %v774 = vunpack.c.l.b16 %v612
        %v775 = vunpack.c.h.b16 %v612
        %v776 = vunpack.c.l.b16 %v613
        %v777 = vunpack.c.h.b16 %v613
        %v778 = vunpack.c.l.b16 %v614
        %v779 = vunpack.c.h.b16 %v614
        %v780 = vunpack.c.l.b16 %v615
        %v781 = vunpack.c.h.b16 %v615
        %v782 = vunpack.c.l.b16 %v616
        %v783 = vunpack.c.h.b16 %v616
        %v784 = vunpack.c.l.b16 %v617
        %v785 = vunpack.c.h.b16 %v617
        %v786 = vunpack.c.l.b16 %v618
        %v787 = vunpack.c.h.b16 %v618
        %v788 = vunpack.c.l.b16 %v619
        %v789 = vunpack.c.h.b16 %v619
        %v790 = vunpack.c.l.b16 %v620
        %v791 = vunpack.c.h.b16 %v620
        %v792 = vunpack.c.l.b16 %v621
        %v793 = vunpack.c.h.b16 %v621
        %v794 = vunpack.c.l.b16 %v622
        %v795 = vunpack.c.h.b16 %v622
        %v796 = vunpack.c.l.b16 %v623
        %v797 = vunpack.c.h.b16 %v623
        %v798 = vunpack.c.l.b16 %v624
        %v799 = vunpack.c.h.b16 %v624
        %v800 = vunpack.c.l.b16 %v625
        %v801 = vunpack.c.h.b16 %v625
        %v802 = vunpack.c.l.b16 %v626
        %v803 = vunpack.c.h.b16 %v626
        %v804 = vunpack.c.l.b16 %v627
        %v805 = vunpack.c.h.b16 %v627
        %v806 = vunpack.c.l.b16 %v628
        %v807 = vunpack.c.h.b16 %v628
        %v808 = vunpack.c.l.b16 %v629
        %v809 = vunpack.c.h.b16 %v629
        %v810 = vunpack.c.l.b16 %v630
        %v811 = vunpack.c.h.b16 %v630
        %v812 = vunpack.c.l.b16 %v631
        %v813 = vunpack.c.h.b16 %v631
        %v814 = vunpack.c.l.b16 %v632
        %v815 = vunpack.c.h.b16 %v632
        %v816 = vunpack.c.l.b16 %v633
        %v817 = vunpack.c.h.b16 %v633
        %v818 = vunpack.c.l.b16 %v634
        %v819 = vunpack.c.h.b16 %v634
        %v820 = vunpack.c.l.b16 %v635
        %v821 = vunpack.c.h.b16 %v635
        %v822 = vunpack.c.l.b16 %v636
        %v823 = vunpack.c.h.b16 %v636
        %v824 = vunpack.c.l.b16 %v637
        %v825 = vunpack.c.h.b16 %v637
        %v826 = vunpack.c.l.b16 %v638
        %v827 = vunpack.c.h.b16 %v638
        %v828 = vunpack.c.l.b16 %v639
        %v829 = vunpack.c.h.b16 %v639
        %v830 = vunpack.c.l.b16 %v640
        %v831 = vunpack.c.h.b16 %v640
        %v832 = vunpack.c.l.b16 %v641
        %v833 = vunpack.c.h.b16 %v641
        %v834 = vunpack.c.l.b16 %v642
        %v835 = vunpack.c.h.b16 %v642
        %v836 = vunpack.c.l.b16 %v643
        %v837 = vunpack.c.h.b16 %v643
        %v838 = vunpack.c.l.b16 %v644
        %v839 = vunpack.c.h.b16 %v644
        %v840 = vunpack.c.l.b16 %v645
        %v841 = vunpack.c.h.b16 %v645
        %v842 = vunpack.c.l.b16 %v646
        %v843 = vunpack.c.h.b16 %v646
        %v844 = vunpack.c.l.b16 %v647
        %v845 = vunpack.c.h.b16 %v647
        %v846 = vunpack.c.l.b16 %v648
        %v847 = vunpack.c.h.b16 %v648
        %v848 = vunpack.c.l.b16 %v649
        %v849 = vunpack.c.h.b16 %v649
        %v850 = vunpack.c.l.b16 %v650
        %v851 = vunpack.c.h.b16 %v650
        %v852 = vunpack.c.l.b16 %v651
        %v853 = vunpack.c.h.b16 %v651
        %v854 = vunpack.c.l.b16 %v652
        %v855 = vunpack.c.h.b16 %v652
        %v856 = vunpack.c.l.b16 %v653
        %v857 = vunpack.c.h.b16 %v653
        %v858 = vunpack.c.l.b16 %v654
        %v859 = vunpack.c.h.b16 %v654
        %v860 = vunpack.c.l.b16 %v655
        %v861 = vunpack.c.h.b16 %v655
        %v862 = vunpack.c.l.b16 %v656
        %v863 = vunpack.c.h.b16 %v656
        %v864 = vunpack.c.l.b16 %v657
        %v865 = vunpack.c.h.b16 %v657
        %v866 = vunpack.c.l.b16 %v658
        %v867 = vunpack.c.h.b16 %v658
        %v868 = vunpack.c.l.b16 %v659
        %v869 = vunpack.c.h.b16 %v659
        %v870 = vunpack.c.l.b16 %v660
        %v871 = vunpack.c.h.b16 %v660
        %v872 = vunpack.c.l.b16 %v661
        %v873 = vunpack.c.h.b16 %v661
        %v874 = vunpack.c.l.b16 %v662
        %v875 = vunpack.c.h.b16 %v662
        %v876 = vunpack.c.l.b16 %v663
        %v877 = vunpack.c.h.b16 %v663
        %v878 = vpack.c.b16 %v754, %v750
        %v879 = vpack.c.b16 %v755, %v751
        %v880 = vpack.c.b16 %v756, %v752
        %v881 = vpack.c.b16 %v757, %v753
        %v882 = vpack.c.b16 %v762, %v758
        %v883 = vpack.c.b16 %v763, %v759
        %v884 = vpack.c.b16 %v764, %v760
        %v885 = vpack.c.b16 %v765, %v761
        %v886 = vpack.c.b16 %v770, %v766
        %v887 = vpack.c.b16 %v771, %v767
        %v888 = vpack.c.b16 %v772, %v768
        %v889 = vpack.c.b16 %v773, %v769
        %v890 = vpack.c.b16 %v778, %v774
        %v891 = vpack.c.b16 %v779, %v775
        %v892 = vpack.c.b16 %v780, %v776
        %v893 = vpack.c.b16 %v781, %v777
        %v894 = vpack.c.b16 %v786, %v782
        %v895 = vpack.c.b16 %v787, %v783
        %v896 = vpack.c.b16 %v788, %v784
        %v897 = vpack.c.b16 %v789, %v785
        %v898 = vpack.c.b16 %v794, %v790
        %v899 = vpack.c.b16 %v795, %v791
        %v900 = vpack.c.b16 %v796, %v792
        %v901 = vpack.c.b16 %v797, %v793
        %v902 = vpack.c.b16 %v802, %v798
        %v903 = vpack.c.b16 %v803, %v799
        %v904 = vpack.c.b16 %v804, %v800
        %v905 = vpack.c.b16 %v805, %v801
        %v906 = vpack.c.b16 %v810, %v806
        %v907 = vpack.c.b16 %v811, %v807
        %v908 = vpack.c.b16 %v812, %v808
        %v909 = vpack.c.b16 %v813, %v809
        %v910 = vpack.c.b16 %v818, %v814
        %v911 = vpack.c.b16 %v819, %v815
        %v912 = vpack.c.b16 %v820, %v816
        %v913 = vpack.c.b16 %v821, %v817
        %v914 = vpack.c.b16 %v826, %v822
        %v915 = vpack.c.b16 %v827, %v823
        %v916 = vpack.c.b16 %v828, %v824
        %v917 = vpack.c.b16 %v829, %v825
        %v918 = vpack.c.b16 %v834, %v830
        %v919 = vpack.c.b16 %v835, %v831
        %v920 = vpack.c.b16 %v836, %v832
        %v921 = vpack.c.b16 %v837, %v833
        %v922 = vpack.c.b16 %v842, %v838
        %v923 = vpack.c.b16 %v843, %v839
        %v924 = vpack.c.b16 %v844, %v840
        %v925 = vpack.c.b16 %v845, %v841
        %v926 = vpack.c.b16 %v850, %v846
        %v927 = vpack.c.b16 %v851, %v847
        %v928 = vpack.c.b16 %v852, %v848
        %v929 = vpack.c.b16 %v853, %v849
        %v930 = vpack.c.b16 %v858, %v854
        %v931 = vpack.c.b16 %v859, %v855
        %v932 = vpack.c.b16 %v860, %v856
        %v933 = vpack.c.b16 %v861, %v857
        %v934 = vpack.c.b16 %v866, %v862
        %v935 = vpack.c.b16 %v867, %v863
        %v936 = vpack.c.b16 %v868, %v864
        %v937 = vpack.c.b16 %v869, %v865
        %v938 = vpack.c.b16 %v874, %v870
        %v939 = vpack.c.b16 %v875, %v871
        %v940 = vpack.c.b16 %v876, %v872
        %v941 = vpack.c.b16 %v877, %v873
        %1006 = vmatprep.subr.bf16.mxu0 %v879
        %1007 = vmatpush1.bf16.msra.mxu0 %v878
        %1008 = vmatprep.subr.bf16.mxu0 %v883
        %1009 = vmatpush1.bf16.msra.mxu0 %v882
        %1010 = vmatprep.subr.bf16.mxu0 %v887
        %1011 = vmatpush1.bf16.msra.mxu0 %v886
        %1012 = vmatprep.subr.bf16.mxu0 %v891
        %1013 = vmatpush1.bf16.msra.mxu0 %v890
        %1014 = vmatprep.subr.bf16.mxu0 %v895
        %1015 = vmatpush1.bf16.msra.mxu0 %v894
        %1016 = vmatprep.subr.bf16.mxu0 %v899
        %1017 = vmatpush1.bf16.msra.mxu0 %v898
        %1018 = vmatprep.subr.bf16.mxu0 %v903
        %1019 = vmatpush1.bf16.msra.mxu0 %v902
        %1020 = vmatprep.subr.bf16.mxu0 %v907
        %1021 = vmatpush1.bf16.msra.mxu0 %v906
        %1022 = vmatprep.subr.bf16.mxu0 %v911
        %1023 = vmatpush1.bf16.msra.mxu0 %v910
        %1024 = vmatprep.subr.bf16.mxu0 %v915
        %1025 = vmatpush1.bf16.msra.mxu0 %v914
        %1026 = vmatprep.subr.bf16.mxu0 %v919
        %1027 = vmatpush1.bf16.msra.mxu0 %v918
        %1028 = vmatprep.subr.bf16.mxu0 %v923
        %1029 = vmatpush1.bf16.msra.mxu0 %v922
        %1030 = vmatprep.subr.bf16.mxu0 %v927
        %1031 = vmatpush1.bf16.msra.mxu0 %v926
        %1032 = vmatprep.subr.bf16.mxu0 %v931
        %1033 = vmatpush1.bf16.msra.mxu0 %v930
        %1034 = vmatprep.subr.bf16.mxu0 %v935
        %1035 = vmatpush1.bf16.msra.mxu0 %v934
        %1036 = vmatprep.subr.bf16.mxu0 %v939
        %1037 = vmatpush1.bf16.msra.mxu0 %v938
        %1038 = vmatprep.mubr.bf16.mxu0 %v597
        %1039 = vmatmul.mubr.bf16.gmra.mrb[0].mxu0 %v596
        %v1040 = vpop.f32.mrb[0].mxu0
        %v1041 = vadd.f32 %v669, %v1040
        %v1042 = vpop.f32.mrb[0].mxu0
        %v1043 = vadd.f32 %v673, %v1042
        %v1044 = vpop.f32.mrb[0].mxu0
        %v1045 = vadd.f32 %v669, %v1044
        %v1046 = vpop.f32.mrb[0].mxu0
        %v1047 = vadd.f32 %v673, %v1046
        %1048 = vmatprep.mubr.bf16.mxu0 %v599
        %1049 = vmatmul.mubr.bf16.gmra.mrb[0].mxu0 %v598
        %v1050 = vpop.f32.mrb[0].mxu0
        %v1051 = vadd.f32 %v669, %v1050
        %v1052 = vpop.f32.mrb[0].mxu0
        %v1053 = vadd.f32 %v673, %v1052
        %v1054 = vpop.f32.mrb[0].mxu0
        %v1055 = vadd.f32 %v669, %v1054
        %v1056 = vpop.f32.mrb[0].mxu0
        %v1057 = vadd.f32 %v673, %v1056
        %1058 = vdwg.mxu0
        %1059 = vmatprep.subr.bf16.mxu0 %v881
        %1060 = vmatpush1.bf16.msra.mxu0 %v880
        %1061 = vmatprep.subr.bf16.mxu0 %v885
        %1062 = vmatpush1.bf16.msra.mxu0 %v884
        %1063 = vmatprep.subr.bf16.mxu0 %v889
        %1064 = vmatpush1.bf16.msra.mxu0 %v888
        %1065 = vmatprep.subr.bf16.mxu0 %v893
        %1066 = vmatpush1.bf16.msra.mxu0 %v892
        %1067 = vmatprep.subr.bf16.mxu0 %v897
        %1068 = vmatpush1.bf16.msra.mxu0 %v896
        %1069 = vmatprep.subr.bf16.mxu0 %v901
        %1070 = vmatpush1.bf16.msra.mxu0 %v900
        %1071 = vmatprep.subr.bf16.mxu0 %v905
        %1072 = vmatpush1.bf16.msra.mxu0 %v904
        %1073 = vmatprep.subr.bf16.mxu0 %v909
        %1074 = vmatpush1.bf16.msra.mxu0 %v908
        %1075 = vmatprep.subr.bf16.mxu0 %v913
        %1076 = vmatpush1.bf16.msra.mxu0 %v912
        %1077 = vmatprep.subr.bf16.mxu0 %v917
        %1078 = vmatpush1.bf16.msra.mxu0 %v916
        %1079 = vmatprep.subr.bf16.mxu0 %v921
        %1080 = vmatpush1.bf16.msra.mxu0 %v920
        %1081 = vmatprep.subr.bf16.mxu0 %v925
        %1082 = vmatpush1.bf16.msra.mxu0 %v924
        %1083 = vmatprep.subr.bf16.mxu0 %v929
        %1084 = vmatpush1.bf16.msra.mxu0 %v928
        %1085 = vmatprep.subr.bf16.mxu0 %v933
        %1086 = vmatpush1.bf16.msra.mxu0 %v932
        %1087 = vmatprep.subr.bf16.mxu0 %v937
        %1088 = vmatpush1.bf16.msra.mxu0 %v936
        %1089 = vmatprep.subr.bf16.mxu0 %v941
        %1090 = vmatpush1.bf16.msra.mxu0 %v940
        %1091 = vmatprep.mubr.bf16.mxu0 %v597
        %1092 = vmatmul.mubr.bf16.gmra.mrb[0].mxu0 %v596
        %v1093 = vpop.f32.mrb[0].mxu0
        %v1094 = vadd.f32 %v677, %v1093
        %v1095 = vpop.f32.mrb[0].mxu0
        %v1096 = vadd.f32 %v681, %v1095
        %v1097 = vpop.f32.mrb[0].mxu0
        %v1098 = vadd.f32 %v677, %v1097
        %v1099 = vpop.f32.mrb[0].mxu0
        %v1100 = vadd.f32 %v681, %v1099
        %1101 = vmatprep.mubr.bf16.mxu0 %v599
        %1102 = vmatmul.mubr.bf16.gmra.mrb[0].mxu0 %v598
        %v1103 = vpop.f32.mrb[0].mxu0
        %v1104 = vadd.f32 %v677, %v1103
        %v1105 = vpop.f32.mrb[0].mxu0
        %v1106 = vadd.f32 %v681, %v1105
        %v1107 = vpop.f32.mrb[0].mxu0
        %v1108 = vadd.f32 %v677, %v1107
        %v1109 = vpop.f32.mrb[0].mxu0
        %v1110 = vadd.f32 %v681, %v1109
        %1111 = vdwg.mxu0
        %v1112 = vpack.c.bf16 %v1045, %v1041
        %v1113 = vpack.c.bf16 %v1047, %v1043
        %v1114 = vpack.c.bf16 %v1098, %v1094
        %v1115 = vpack.c.bf16 %v1100, %v1096
        %v1116 = vpack.c.bf16 %v1055, %v1051
        %v1117 = vpack.c.bf16 %v1057, %v1053
        %v1118 = vpack.c.bf16 %v1108, %v1104
        %v1119 = vpack.c.bf16 %v1110, %v1106
        %v1120 = vmax.bf16 %v1112, 0
        %v1121 = vmax.bf16 %v1113, 0
        %v1122 = vmax.bf16 %v1114, 0
        %v1123 = vmax.bf16 %v1115, 0
        %v1124 = vmax.bf16 %v1116, 0
        %v1125 = vmax.bf16 %v1117, 0
        %v1126 = vmax.bf16 %v1118, 0
        %v1127 = vmax.bf16 %v1119, 0
        %v1128 = vld [vmem:[#allocation5] sm:$0xff]
        %v1129 = vld [vmem:[#allocation5 + $0x8] sm:$0xff]
        %v1130 = vld [vmem:[#allocation5 + $0x10] sm:$0xff]
        %v1131 = vld [vmem:[#allocation5 + $0x18] sm:$0xff]
        %v1132 = vld [vmem:[#allocation5 + $0x20] sm:$0xff]
        %v1133 = vld [vmem:[#allocation5 + $0x28] sm:$0xff]
        %v1134 = vld [vmem:[#allocation5 + $0x30] sm:$0xff]
        %v1135 = vld [vmem:[#allocation5 + $0x38] sm:$0xff]
        %v1136 = vld [vmem:[#allocation5 + $0x40] sm:$0xff]
        %v1137 = vld [vmem:[#allocation5 + $0x48] sm:$0xff]
        %v1138 = vld [vmem:[#allocation5 + $0x50] sm:$0xff]
        %v1139 = vld [vmem:[#allocation5 + $0x58] sm:$0xff]
        %v1140 = vld [vmem:[#allocation5 + $0x60] sm:$0xff]
        %v1141 = vld [vmem:[#allocation5 + $0x68] sm:$0xff]
        %v1142 = vld [vmem:[#allocation5 + $0x70] sm:$0xff]
        %v1143 = vld [vmem:[#allocation5 + $0x78] sm:$0xff]
        %v1144 = vld [vmem:[#allocation5 + $0x80] sm:$0xff]
        %v1145 = vld [vmem:[#allocation5 + $0x88] sm:$0xff]
        %v1146 = vld [vmem:[#allocation5 + $0x90] sm:$0xff]
        %v1147 = vld [vmem:[#allocation5 + $0x98] sm:$0xff]
        %v1148 = vld [vmem:[#allocation5 + $0xa0] sm:$0xff]
        %v1149 = vld [vmem:[#allocation5 + $0xa8] sm:$0xff]
        %v1150 = vld [vmem:[#allocation5 + $0xb0] sm:$0xff]
        %v1151 = vld [vmem:[#allocation5 + $0xb8] sm:$0xff]
        %v1152 = vld [vmem:[#allocation5 + $0xc0] sm:$0xff]
        %v1153 = vld [vmem:[#allocation5 + $0xc8] sm:$0xff]
        %v1154 = vld [vmem:[#allocation5 + $0xd0] sm:$0xff]
        %v1155 = vld [vmem:[#allocation5 + $0xd8] sm:$0xff]
        %v1156 = vld [vmem:[#allocation5 + $0xe0] sm:$0xff]
        %v1157 = vld [vmem:[#allocation5 + $0xe8] sm:$0xff]
        %v1158 = vld [vmem:[#allocation5 + $0xf0] sm:$0xff]
        %v1159 = vld [vmem:[#allocation5 + $0xf8] sm:$0xff]
        %v1160 = vld [vmem:[#allocation5 + $0x100] sm:$0xff]
        %v1161 = vld [vmem:[#allocation5 + $0x108] sm:$0xff]
        %v1162 = vld [vmem:[#allocation5 + $0x110] sm:$0xff]
        %v1163 = vld [vmem:[#allocation5 + $0x118] sm:$0xff]
        %v1164 = vld [vmem:[#allocation5 + $0x120] sm:$0xff]
        %v1165 = vld [vmem:[#allocation5 + $0x128] sm:$0xff]
        %v1166 = vld [vmem:[#allocation5 + $0x130] sm:$0xff]
        %v1167 = vld [vmem:[#allocation5 + $0x138] sm:$0xff]
        %v1168 = vld [vmem:[#allocation5 + $0x140] sm:$0xff]
        %v1169 = vld [vmem:[#allocation5 + $0x148] sm:$0xff]
        %v1170 = vld [vmem:[#allocation5 + $0x150] sm:$0xff]
        %v1171 = vld [vmem:[#allocation5 + $0x158] sm:$0xff]
        %v1172 = vld [vmem:[#allocation5 + $0x160] sm:$0xff]
        %v1173 = vld [vmem:[#allocation5 + $0x168] sm:$0xff]
        %v1174 = vld [vmem:[#allocation5 + $0x170] sm:$0xff]
        %v1175 = vld [vmem:[#allocation5 + $0x178] sm:$0xff]
        %v1176 = vld [vmem:[#allocation5 + $0x180] sm:$0xff]
        %v1177 = vld [vmem:[#allocation5 + $0x188] sm:$0xff]
        %v1178 = vld [vmem:[#allocation5 + $0x190] sm:$0xff]
        %v1179 = vld [vmem:[#allocation5 + $0x198] sm:$0xff]
        %v1180 = vld [vmem:[#allocation5 + $0x1a0] sm:$0xff]
        %v1181 = vld [vmem:[#allocation5 + $0x1a8] sm:$0xff]
        %v1182 = vld [vmem:[#allocation5 + $0x1b0] sm:$0xff]
        %v1183 = vld [vmem:[#allocation5 + $0x1b8] sm:$0xff]
        %v1184 = vld [vmem:[#allocation5 + $0x1c0] sm:$0xff]
        %v1185 = vld [vmem:[#allocation5 + $0x1c8] sm:$0xff]
        %v1186 = vld [vmem:[#allocation5 + $0x1d0] sm:$0xff]
        %v1187 = vld [vmem:[#allocation5 + $0x1d8] sm:$0xff]
        %v1188 = vld [vmem:[#allocation5 + $0x1e0] sm:$0xff]
        %v1189 = vld [vmem:[#allocation5 + $0x1e8] sm:$0xff]
        %v1190 = vld [vmem:[#allocation5 + $0x1f0] sm:$0xff]
        %v1191 = vld [vmem:[#allocation5 + $0x1f8] sm:$0xff]
        %v1192 = vld [vmem:[%s4] sm:$0x3]
        %v1194 = vlaneseq
        %v1195 = vshrl.u32 %v1194, 7
        %v1196 = vsub.s32 0, %v1195
        %v1197 = vrot.slane %v1192, %v1196
        %v1198 = vlaneseq
        %v1199 = vshrl.u32 %v1198, 7
        %v1200 = vsub.s32 1, %v1199
        %v1201 = vrot.slane %v1192, %v1200
        %v1268 = vunpack.c.l.b16 %v1128
        %v1269 = vunpack.c.h.b16 %v1128
        %v1270 = vunpack.c.l.b16 %v1129
        %v1271 = vunpack.c.h.b16 %v1129
        %v1272 = vunpack.c.l.b16 %v1130
        %v1273 = vunpack.c.h.b16 %v1130
        %v1274 = vunpack.c.l.b16 %v1131
        %v1275 = vunpack.c.h.b16 %v1131
        %v1276 = vunpack.c.l.b16 %v1132
        %v1277 = vunpack.c.h.b16 %v1132
        %v1278 = vunpack.c.l.b16 %v1133
        %v1279 = vunpack.c.h.b16 %v1133
        %v1280 = vunpack.c.l.b16 %v1134
        %v1281 = vunpack.c.h.b16 %v1134
        %v1282 = vunpack.c.l.b16 %v1135
        %v1283 = vunpack.c.h.b16 %v1135
        %v1284 = vunpack.c.l.b16 %v1136
        %v1285 = vunpack.c.h.b16 %v1136
        %v1286 = vunpack.c.l.b16 %v1137
        %v1287 = vunpack.c.h.b16 %v1137
        %v1288 = vunpack.c.l.b16 %v1138
        %v1289 = vunpack.c.h.b16 %v1138
        %v1290 = vunpack.c.l.b16 %v1139
        %v1291 = vunpack.c.h.b16 %v1139
        %v1292 = vunpack.c.l.b16 %v1140
        %v1293 = vunpack.c.h.b16 %v1140
        %v1294 = vunpack.c.l.b16 %v1141
        %v1295 = vunpack.c.h.b16 %v1141
        %v1296 = vunpack.c.l.b16 %v1142
        %v1297 = vunpack.c.h.b16 %v1142
        %v1298 = vunpack.c.l.b16 %v1143
        %v1299 = vunpack.c.h.b16 %v1143
        %v1300 = vunpack.c.l.b16 %v1144
        %v1301 = vunpack.c.h.b16 %v1144
        %v1302 = vunpack.c.l.b16 %v1145
        %v1303 = vunpack.c.h.b16 %v1145
        %v1304 = vunpack.c.l.b16 %v1146
        %v1305 = vunpack.c.h.b16 %v1146
        %v1306 = vunpack.c.l.b16 %v1147
        %v1307 = vunpack.c.h.b16 %v1147
        %v1308 = vunpack.c.l.b16 %v1148
        %v1309 = vunpack.c.h.b16 %v1148
        %v1310 = vunpack.c.l.b16 %v1149
        %v1311 = vunpack.c.h.b16 %v1149
        %v1312 = vunpack.c.l.b16 %v1150
        %v1313 = vunpack.c.h.b16 %v1150
        %v1314 = vunpack.c.l.b16 %v1151
        %v1315 = vunpack.c.h.b16 %v1151
        %v1316 = vunpack.c.l.b16 %v1152
        %v1317 = vunpack.c.h.b16 %v1152
        %v1318 = vunpack.c.l.b16 %v1153
        %v1319 = vunpack.c.h.b16 %v1153
        %v1320 = vunpack.c.l.b16 %v1154
        %v1321 = vunpack.c.h.b16 %v1154
        %v1322 = vunpack.c.l.b16 %v1155
        %v1323 = vunpack.c.h.b16 %v1155
        %v1324 = vunpack.c.l.b16 %v1156
        %v1325 = vunpack.c.h.b16 %v1156
        %v1326 = vunpack.c.l.b16 %v1157
        %v1327 = vunpack.c.h.b16 %v1157
        %v1328 = vunpack.c.l.b16 %v1158
        %v1329 = vunpack.c.h.b16 %v1158
        %v1330 = vunpack.c.l.b16 %v1159
        %v1331 = vunpack.c.h.b16 %v1159
        %v1332 = vunpack.c.l.b16 %v1160
        %v1333 = vunpack.c.h.b16 %v1160
        %v1334 = vunpack.c.l.b16 %v1161
        %v1335 = vunpack.c.h.b16 %v1161
        %v1336 = vunpack.c.l.b16 %v1162
        %v1337 = vunpack.c.h.b16 %v1162
        %v1338 = vunpack.c.l.b16 %v1163
        %v1339 = vunpack.c.h.b16 %v1163
        %v1340 = vunpack.c.l.b16 %v1164
        %v1341 = vunpack.c.h.b16 %v1164
        %v1342 = vunpack.c.l.b16 %v1165
        %v1343 = vunpack.c.h.b16 %v1165
        %v1344 = vunpack.c.l.b16 %v1166
        %v1345 = vunpack.c.h.b16 %v1166
        %v1346 = vunpack.c.l.b16 %v1167
        %v1347 = vunpack.c.h.b16 %v1167
        %v1348 = vunpack.c.l.b16 %v1168
        %v1349 = vunpack.c.h.b16 %v1168
        %v1350 = vunpack.c.l.b16 %v1169
        %v1351 = vunpack.c.h.b16 %v1169
        %v1352 = vunpack.c.l.b16 %v1170
        %v1353 = vunpack.c.h.b16 %v1170
        %v1354 = vunpack.c.l.b16 %v1171
        %v1355 = vunpack.c.h.b16 %v1171
        %v1356 = vunpack.c.l.b16 %v1172
        %v1357 = vunpack.c.h.b16 %v1172
        %v1358 = vunpack.c.l.b16 %v1173
        %v1359 = vunpack.c.h.b16 %v1173
        %v1360 = vunpack.c.l.b16 %v1174
        %v1361 = vunpack.c.h.b16 %v1174
        %v1362 = vunpack.c.l.b16 %v1175
        %v1363 = vunpack.c.h.b16 %v1175
        %v1364 = vunpack.c.l.b16 %v1176
        %v1365 = vunpack.c.h.b16 %v1176
        %v1366 = vunpack.c.l.b16 %v1177
        %v1367 = vunpack.c.h.b16 %v1177
        %v1368 = vunpack.c.l.b16 %v1178
        %v1369 = vunpack.c.h.b16 %v1178
        %v1370 = vunpack.c.l.b16 %v1179
        %v1371 = vunpack.c.h.b16 %v1179
        %v1372 = vunpack.c.l.b16 %v1180
        %v1373 = vunpack.c.h.b16 %v1180
        %v1374 = vunpack.c.l.b16 %v1181
        %v1375 = vunpack.c.h.b16 %v1181
        %v1376 = vunpack.c.l.b16 %v1182
        %v1377 = vunpack.c.h.b16 %v1182
        %v1378 = vunpack.c.l.b16 %v1183
        %v1379 = vunpack.c.h.b16 %v1183
        %v1380 = vunpack.c.l.b16 %v1184
        %v1381 = vunpack.c.h.b16 %v1184
        %v1382 = vunpack.c.l.b16 %v1185
        %v1383 = vunpack.c.h.b16 %v1185
        %v1384 = vunpack.c.l.b16 %v1186
        %v1385 = vunpack.c.h.b16 %v1186
        %v1386 = vunpack.c.l.b16 %v1187
        %v1387 = vunpack.c.h.b16 %v1187
        %v1388 = vunpack.c.l.b16 %v1188
        %v1389 = vunpack.c.h.b16 %v1188
        %v1390 = vunpack.c.l.b16 %v1189
        %v1391 = vunpack.c.h.b16 %v1189
        %v1392 = vunpack.c.l.b16 %v1190
        %v1393 = vunpack.c.h.b16 %v1190
        %v1394 = vunpack.c.l.b16 %v1191
        %v1395 = vunpack.c.h.b16 %v1191
        %v1396 = vpack.c.b16 %v1270, %v1268
        %v1397 = vpack.c.b16 %v1271, %v1269
        %v1398 = vpack.c.b16 %v1274, %v1272
        %v1399 = vpack.c.b16 %v1275, %v1273
        %v1400 = vpack.c.b16 %v1278, %v1276
        %v1401 = vpack.c.b16 %v1279, %v1277
        %v1402 = vpack.c.b16 %v1282, %v1280
        %v1403 = vpack.c.b16 %v1283, %v1281
        %v1404 = vpack.c.b16 %v1286, %v1284
        %v1405 = vpack.c.b16 %v1287, %v1285
        %v1406 = vpack.c.b16 %v1290, %v1288
        %v1407 = vpack.c.b16 %v1291, %v1289
        %v1408 = vpack.c.b16 %v1294, %v1292
        %v1409 = vpack.c.b16 %v1295, %v1293
        %v1410 = vpack.c.b16 %v1298, %v1296
        %v1411 = vpack.c.b16 %v1299, %v1297
        %v1412 = vpack.c.b16 %v1302, %v1300
        %v1413 = vpack.c.b16 %v1303, %v1301
        %v1414 = vpack.c.b16 %v1306, %v1304
        %v1415 = vpack.c.b16 %v1307, %v1305
        %v1416 = vpack.c.b16 %v1310, %v1308
        %v1417 = vpack.c.b16 %v1311, %v1309
        %v1418 = vpack.c.b16 %v1314, %v1312
        %v1419 = vpack.c.b16 %v1315, %v1313
        %v1420 = vpack.c.b16 %v1318, %v1316
        %v1421 = vpack.c.b16 %v1319, %v1317
        %v1422 = vpack.c.b16 %v1322, %v1320
        %v1423 = vpack.c.b16 %v1323, %v1321
        %v1424 = vpack.c.b16 %v1326, %v1324
        %v1425 = vpack.c.b16 %v1327, %v1325
        %v1426 = vpack.c.b16 %v1330, %v1328
        %v1427 = vpack.c.b16 %v1331, %v1329
        %v1428 = vpack.c.b16 %v1334, %v1332
        %v1429 = vpack.c.b16 %v1335, %v1333
        %v1430 = vpack.c.b16 %v1338, %v1336
        %v1431 = vpack.c.b16 %v1339, %v1337
        %v1432 = vpack.c.b16 %v1342, %v1340
        %v1433 = vpack.c.b16 %v1343, %v1341
        %v1434 = vpack.c.b16 %v1346, %v1344
        %v1435 = vpack.c.b16 %v1347, %v1345
        %v1436 = vpack.c.b16 %v1350, %v1348
        %v1437 = vpack.c.b16 %v1351, %v1349
        %v1438 = vpack.c.b16 %v1354, %v1352
        %v1439 = vpack.c.b16 %v1355, %v1353
        %v1440 = vpack.c.b16 %v1358, %v1356
        %v1441 = vpack.c.b16 %v1359, %v1357
        %v1442 = vpack.c.b16 %v1362, %v1360
        %v1443 = vpack.c.b16 %v1363, %v1361
        %v1444 = vpack.c.b16 %v1366, %v1364
        %v1445 = vpack.c.b16 %v1367, %v1365
        %v1446 = vpack.c.b16 %v1370, %v1368
        %v1447 = vpack.c.b16 %v1371, %v1369
        %v1448 = vpack.c.b16 %v1374, %v1372
        %v1449 = vpack.c.b16 %v1375, %v1373
        %v1450 = vpack.c.b16 %v1378, %v1376
        %v1451 = vpack.c.b16 %v1379, %v1377
        %v1452 = vpack.c.b16 %v1382, %v1380
        %v1453 = vpack.c.b16 %v1383, %v1381
        %v1454 = vpack.c.b16 %v1386, %v1384
        %v1455 = vpack.c.b16 %v1387, %v1385
        %v1456 = vpack.c.b16 %v1390, %v1388
        %v1457 = vpack.c.b16 %v1391, %v1389
        %v1458 = vpack.c.b16 %v1394, %v1392
        %v1459 = vpack.c.b16 %v1395, %v1393
        %1524 = vmatprep.subr.bf16.mxu0 %v1397
        %1525 = vmatpush1.bf16.msra.mxu0 %v1396
        %1526 = vmatprep.subr.bf16.mxu0 %v1399
        %1527 = vmatpush1.bf16.msra.mxu0 %v1398
        %1528 = vmatprep.subr.bf16.mxu0 %v1401
        %1529 = vmatpush1.bf16.msra.mxu0 %v1400
        %1530 = vmatprep.subr.bf16.mxu0 %v1403
        %1531 = vmatpush1.bf16.msra.mxu0 %v1402
        %1532 = vmatprep.subr.bf16.mxu0 %v1405
        %1533 = vmatpush1.bf16.msra.mxu0 %v1404
        %1534 = vmatprep.subr.bf16.mxu0 %v1407
        %1535 = vmatpush1.bf16.msra.mxu0 %v1406
        %1536 = vmatprep.subr.bf16.mxu0 %v1409
        %1537 = vmatpush1.bf16.msra.mxu0 %v1408
        %1538 = vmatprep.subr.bf16.mxu0 %v1411
        %1539 = vmatpush1.bf16.msra.mxu0 %v1410
        %1540 = vmatprep.subr.bf16.mxu0 %v1413
        %1541 = vmatpush1.bf16.msra.mxu0 %v1412
        %1542 = vmatprep.subr.bf16.mxu0 %v1415
        %1543 = vmatpush1.bf16.msra.mxu0 %v1414
        %1544 = vmatprep.subr.bf16.mxu0 %v1417
        %1545 = vmatpush1.bf16.msra.mxu0 %v1416
        %1546 = vmatprep.subr.bf16.mxu0 %v1419
        %1547 = vmatpush1.bf16.msra.mxu0 %v1418
        %1548 = vmatprep.subr.bf16.mxu0 %v1421
        %1549 = vmatpush1.bf16.msra.mxu0 %v1420
        %1550 = vmatprep.subr.bf16.mxu0 %v1423
        %1551 = vmatpush1.bf16.msra.mxu0 %v1422
        %1552 = vmatprep.subr.bf16.mxu0 %v1425
        %1553 = vmatpush1.bf16.msra.mxu0 %v1424
        %1554 = vmatprep.subr.bf16.mxu0 %v1427
        %1555 = vmatpush1.bf16.msra.mxu0 %v1426
        %1556 = vmatprep.mubr.bf16.mxu0 %v1121
        %1557 = vmatmul.mubr.bf16.gmra.mrb[0].mxu0 %v1120
        %v1558 = vpop.f32.mrb[0].mxu0
        %v1559 = vadd.f32 %v1197, %v1558
        %v1560 = vpop.f32.mrb[0].mxu0
        %v1561 = vadd.f32 %v1201, %v1560
        %v1562 = vpop.f32.mrb[0].mxu0
        %v1563 = vadd.f32 %v1197, %v1562
        %v1564 = vpop.f32.mrb[0].mxu0
        %v1565 = vadd.f32 %v1201, %v1564
        %1566 = vmatprep.mubr.bf16.mxu0 %v1125
        %1567 = vmatmul.mubr.bf16.gmra.mrb[0].mxu0 %v1124
        %v1568 = vpop.f32.mrb[0].mxu0
        %v1569 = vadd.f32 %v1197, %v1568
        %v1570 = vpop.f32.mrb[0].mxu0
        %v1571 = vadd.f32 %v1201, %v1570
        %v1572 = vpop.f32.mrb[0].mxu0
        %v1573 = vadd.f32 %v1197, %v1572
        %v1574 = vpop.f32.mrb[0].mxu0
        %v1575 = vadd.f32 %v1201, %v1574
        %1576 = vdwg.mxu0
        %1577 = vmatprep.subr.bf16.mxu0 %v1429
        %1578 = vmatpush1.bf16.msra.mxu0 %v1428
        %1579 = vmatprep.subr.bf16.mxu0 %v1431
        %1580 = vmatpush1.bf16.msra.mxu0 %v1430
        %1581 = vmatprep.subr.bf16.mxu0 %v1433
        %1582 = vmatpush1.bf16.msra.mxu0 %v1432
        %1583 = vmatprep.subr.bf16.mxu0 %v1435
        %1584 = vmatpush1.bf16.msra.mxu0 %v1434
        %1585 = vmatprep.subr.bf16.mxu0 %v1437
        %1586 = vmatpush1.bf16.msra.mxu0 %v1436
        %1587 = vmatprep.subr.bf16.mxu0 %v1439
        %1588 = vmatpush1.bf16.msra.mxu0 %v1438
        %1589 = vmatprep.subr.bf16.mxu0 %v1441
        %1590 = vmatpush1.bf16.msra.mxu0 %v1440
        %1591 = vmatprep.subr.bf16.mxu0 %v1443
        %1592 = vmatpush1.bf16.msra.mxu0 %v1442
        %1593 = vmatprep.subr.bf16.mxu0 %v1445
        %1594 = vmatpush1.bf16.msra.mxu0 %v1444
        %1595 = vmatprep.subr.bf16.mxu0 %v1447
        %1596 = vmatpush1.bf16.msra.mxu0 %v1446
        %1597 = vmatprep.subr.bf16.mxu0 %v1449
        %1598 = vmatpush1.bf16.msra.mxu0 %v1448
        %1599 = vmatprep.subr.bf16.mxu0 %v1451
        %1600 = vmatpush1.bf16.msra.mxu0 %v1450
        %1601 = vmatprep.subr.bf16.mxu0 %v1453
        %1602 = vmatpush1.bf16.msra.mxu0 %v1452
        %1603 = vmatprep.subr.bf16.mxu0 %v1455
        %1604 = vmatpush1.bf16.msra.mxu0 %v1454
        %1605 = vmatprep.subr.bf16.mxu0 %v1457
        %1606 = vmatpush1.bf16.msra.mxu0 %v1456
        %1607 = vmatprep.subr.bf16.mxu0 %v1459
        %1608 = vmatpush1.bf16.msra.mxu0 %v1458
        %1609 = vmatprep.mubr.bf16.mxu0 %v1123
        %1610 = vmatmul.mubr.bf16.gmra.mrb[0].mxu0 %v1122
        %v1611 = vpop.f32.mrb[0].mxu0
        %v1612 = vadd.f32 %v1559, %v1611
        %v1613 = vpop.f32.mrb[0].mxu0
        %v1614 = vadd.f32 %v1561, %v1613
        %v1615 = vpop.f32.mrb[0].mxu0
        %v1616 = vadd.f32 %v1563, %v1615
        %v1617 = vpop.f32.mrb[0].mxu0
        %v1618 = vadd.f32 %v1565, %v1617
        %1619 = vmatprep.mubr.bf16.mxu0 %v1127
        %1620 = vmatmul.mubr.bf16.gmra.mrb[0].mxu0 %v1126
        %v1621 = vpop.f32.mrb[0].mxu0
        %v1622 = vadd.f32 %v1569, %v1621
        %v1623 = vpop.f32.mrb[0].mxu0
        %v1624 = vadd.f32 %v1571, %v1623
        %v1625 = vpop.f32.mrb[0].mxu0
        %v1626 = vadd.f32 %v1573, %v1625
        %v1627 = vpop.f32.mrb[0].mxu0
        %v1628 = vadd.f32 %v1575, %v1627
        %1629 = vdwg.mxu0
        %v1630 = vpack.c.bf16 %v1616, %v1612
        %v1631 = vpack.c.bf16 %v1618, %v1614
        %v1632 = vpack.c.bf16 %v1626, %v1622
        %v1633 = vpack.c.bf16 %v1628, %v1624
        %v1634 = vmax.bf16 %v1630, 0
        %v1635 = vmax.bf16 %v1631, 0
        %v1636 = vmax.bf16 %v1632, 0
        %v1637 = vmax.bf16 %v1633, 0
        %v1638 = vld [vmem:[#allocation7] sm:$0xf]
        %v1639 = vld [vmem:[#allocation7 + $0x4] sm:$0xf]
        %v1640 = vld [vmem:[#allocation7 + $0x8] sm:$0xf]
        %v1641 = vld [vmem:[#allocation7 + $0xc] sm:$0xf]
        %v1642 = vld [vmem:[#allocation7 + $0x10] sm:$0xf]
        %v1643 = vld [vmem:[#allocation7 + $0x14] sm:$0xf]
        %v1644 = vld [vmem:[#allocation7 + $0x18] sm:$0xf]
        %v1645 = vld [vmem:[#allocation7 + $0x1c] sm:$0xf]
        %v1646 = vld [vmem:[#allocation7 + $0x20] sm:$0xf]
        %v1647 = vld [vmem:[#allocation7 + $0x24] sm:$0xf]
        %v1648 = vld [vmem:[#allocation7 + $0x28] sm:$0xf]
        %v1649 = vld [vmem:[#allocation7 + $0x2c] sm:$0xf]
        %v1650 = vld [vmem:[#allocation7 + $0x30] sm:$0xf]
        %v1651 = vld [vmem:[#allocation7 + $0x34] sm:$0xf]
        %v1652 = vld [vmem:[#allocation7 + $0x38] sm:$0xf]
        %v1653 = vld [vmem:[#allocation7 + $0x3c] sm:$0xf]
        %v1654 = vld [vmem:[#allocation7 + $0x40] sm:$0xf]
        %v1655 = vld [vmem:[#allocation7 + $0x44] sm:$0xf]
        %v1656 = vld [vmem:[#allocation7 + $0x48] sm:$0xf]
        %v1657 = vld [vmem:[#allocation7 + $0x4c] sm:$0xf]
        %v1658 = vld [vmem:[#allocation7 + $0x50] sm:$0xf]
        %v1659 = vld [vmem:[#allocation7 + $0x54] sm:$0xf]
        %v1660 = vld [vmem:[#allocation7 + $0x58] sm:$0xf]
        %v1661 = vld [vmem:[#allocation7 + $0x5c] sm:$0xf]
        %v1662 = vld [vmem:[#allocation7 + $0x60] sm:$0xf]
        %v1663 = vld [vmem:[#allocation7 + $0x64] sm:$0xf]
        %v1664 = vld [vmem:[#allocation7 + $0x68] sm:$0xf]
        %v1665 = vld [vmem:[#allocation7 + $0x6c] sm:$0xf]
        %v1666 = vld [vmem:[#allocation7 + $0x70] sm:$0xf]
        %v1667 = vld [vmem:[#allocation7 + $0x74] sm:$0xf]
        %v1668 = vld [vmem:[#allocation7 + $0x78] sm:$0xf]
        %v1669 = vld [vmem:[#allocation7 + $0x7c] sm:$0xf]
        %v1670 = vld [vmem:[%s6] sm:$0x1]
        %v1672 = vlaneseq
        %v1673 = vshrl.u32 %v1672, 7
        %v1674 = vsub.s32 0, %v1673
        %v1675 = vrot.slane %v1670, %v1674
        %v1709 = vunpack.c.l.b16 %v1638
        %v1710 = vunpack.c.l.b16 %v1639
        %v1711 = vunpack.c.l.b16 %v1640
        %v1712 = vunpack.c.l.b16 %v1641
        %v1713 = vunpack.c.l.b16 %v1642
        %v1714 = vunpack.c.l.b16 %v1643
        %v1715 = vunpack.c.l.b16 %v1644
        %v1716 = vunpack.c.l.b16 %v1645
        %v1717 = vunpack.c.l.b16 %v1646
        %v1718 = vunpack.c.l.b16 %v1647
        %v1719 = vunpack.c.l.b16 %v1648
        %v1720 = vunpack.c.l.b16 %v1649
        %v1721 = vunpack.c.l.b16 %v1650
        %v1722 = vunpack.c.l.b16 %v1651
        %v1723 = vunpack.c.l.b16 %v1652
        %v1724 = vunpack.c.l.b16 %v1653
        %v1725 = vunpack.c.l.b16 %v1654
        %v1726 = vunpack.c.l.b16 %v1655
        %v1727 = vunpack.c.l.b16 %v1656
        %v1728 = vunpack.c.l.b16 %v1657
        %v1729 = vunpack.c.l.b16 %v1658
        %v1730 = vunpack.c.l.b16 %v1659
        %v1731 = vunpack.c.l.b16 %v1660
        %v1732 = vunpack.c.l.b16 %v1661
        %v1733 = vunpack.c.l.b16 %v1662
        %v1734 = vunpack.c.l.b16 %v1663
        %v1735 = vunpack.c.l.b16 %v1664
        %v1736 = vunpack.c.l.b16 %v1665
        %v1737 = vunpack.c.l.b16 %v1666
        %v1738 = vunpack.c.l.b16 %v1667
        %v1739 = vunpack.c.l.b16 %v1668
        %v1740 = vunpack.c.l.b16 %v1669
        %v1741 = vpack.c.b16 %v1710, %v1709
        %v1742 = vpack.c.b16 %v1712, %v1711
        %v1743 = vpack.c.b16 %v1714, %v1713
        %v1744 = vpack.c.b16 %v1716, %v1715
        %v1745 = vpack.c.b16 %v1718, %v1717
        %v1746 = vpack.c.b16 %v1720, %v1719
        %v1747 = vpack.c.b16 %v1722, %v1721
        %v1748 = vpack.c.b16 %v1724, %v1723
        %v1749 = vpack.c.b16 %v1726, %v1725
        %v1750 = vpack.c.b16 %v1728, %v1727
        %v1751 = vpack.c.b16 %v1730, %v1729
        %v1752 = vpack.c.b16 %v1732, %v1731
        %v1753 = vpack.c.b16 %v1734, %v1733
        %v1754 = vpack.c.b16 %v1736, %v1735
        %v1755 = vpack.c.b16 %v1738, %v1737
        %v1756 = vpack.c.b16 %v1740, %v1739
        %1773 = vmatprep.subr.bf16.mxu0 0
        %1774 = vmatpush1.bf16.msra.mxu0 %v1741
        %1775 = vmatprep.subr.bf16.mxu0 0
        %1776 = vmatpush1.bf16.msra.mxu0 %v1742
        %1777 = vmatprep.subr.bf16.mxu0 0
        %1778 = vmatpush1.bf16.msra.mxu0 %v1743
        %1779 = vmatprep.subr.bf16.mxu0 0
        %1780 = vmatpush1.bf16.msra.mxu0 %v1744
        %1781 = vmatprep.subr.bf16.mxu0 0
        %1782 = vmatpush1.bf16.msra.mxu0 %v1745
        %1783 = vmatprep.subr.bf16.mxu0 0
        %1784 = vmatpush1.bf16.msra.mxu0 %v1746
        %1785 = vmatprep.subr.bf16.mxu0 0
        %1786 = vmatpush1.bf16.msra.mxu0 %v1747
        %1787 = vmatprep.subr.bf16.mxu0 0
        %1788 = vmatpush1.bf16.msra.mxu0 %v1748
        %1789 = vmatprep.subr.bf16.mxu0 0
        %1790 = vmatpush1.bf16.msra.mxu0 %v1749
        %1791 = vmatprep.subr.bf16.mxu0 0
        %1792 = vmatpush1.bf16.msra.mxu0 %v1750
        %1793 = vmatprep.subr.bf16.mxu0 0
        %1794 = vmatpush1.bf16.msra.mxu0 %v1751
        %1795 = vmatprep.subr.bf16.mxu0 0
        %1796 = vmatpush1.bf16.msra.mxu0 %v1752
        %1797 = vmatprep.subr.bf16.mxu0 0
        %1798 = vmatpush1.bf16.msra.mxu0 %v1753
        %1799 = vmatprep.subr.bf16.mxu0 0
        %1800 = vmatpush1.bf16.msra.mxu0 %v1754
        %1801 = vmatprep.subr.bf16.mxu0 0
        %1802 = vmatpush1.bf16.msra.mxu0 %v1755
        %1803 = vmatprep.subr.bf16.mxu0 0
        %1804 = vmatpush1.bf16.msra.mxu0 %v1756
        %1805 = vmatprep.mubr.bf16.mxu0 %v1635
        %1806 = vmatmul.mubr.bf16.gmra.mrb[0].mxu0 %v1634
        %v1807 = vpop.f32.mrb[0].mxu0
        %v1808 = vadd.f32 %v1675, %v1807
        %v1809 = vpop.f32.mrb[0].mxu0
        %v1810 = vpop.f32.mrb[0].mxu0
        %v1811 = vadd.f32 %v1675, %v1810
        %v1812 = vpop.f32.mrb[0].mxu0
        %1813 = vmatprep.mubr.bf16.mxu0 %v1637
        %1814 = vmatmul.mubr.bf16.gmra.mrb[0].mxu0 %v1636
        %v1815 = vpop.f32.mrb[0].mxu0
        %v1816 = vadd.f32 %v1675, %v1815
        %v1817 = vpop.f32.mrb[0].mxu0
        %v1818 = vpop.f32.mrb[0].mxu0
        %v1819 = vadd.f32 %v1675, %v1818
        %v1820 = vpop.f32.mrb[0].mxu0
        %1821 = vdwg.mxu0
        %v1822 = vpack.c.bf16 %v1811, %v1808
        %v1823 = vpack.c.bf16 %v1819, %v1816
        %v1824 = vmax.bf16 %v1822, 0
        %v1825 = vmax.bf16 %v1823, 0
        %v1826 = vld [vmem:[%s7] sm:$0xf]
        %v1827 = vld [vmem:[%s7 + $0x4] sm:$0xf]
        %v1828 = vld [vmem:[%s7 + $0x8] sm:$0xf]
        %v1829 = vld [vmem:[%s7 + $0xc] sm:$0xf]
        %v1830 = vld [vmem:[%s7 + $0x10] sm:$0xf]
        %v1831 = vld [vmem:[%s7 + $0x14] sm:$0xf]
        %v1832 = vld [vmem:[%s7 + $0x18] sm:$0xf]
        %v1833 = vld [vmem:[%s7 + $0x1c] sm:$0xf]
        %v1834 = vld [vmem:[%s7 + $0x20] sm:$0xf]
        %v1835 = vld [vmem:[%s7 + $0x24] sm:$0xf]
        %v1836 = vld [vmem:[%s7 + $0x28] sm:$0xf]
        %v1837 = vld [vmem:[%s7 + $0x2c] sm:$0xf]
        %v1838 = vld [vmem:[%s7 + $0x30] sm:$0xf]
        %v1839 = vld [vmem:[%s7 + $0x34] sm:$0xf]
        %v1840 = vld [vmem:[%s7 + $0x38] sm:$0xf]
        %v1841 = vld [vmem:[%s7 + $0x3c] sm:$0xf]
        %v1842 = vld [vmem:[%s8] sm:$0x1]
        %v1844 = vlaneseq
        %v1845 = vshrl.u32 %v1844, 7
        %v1846 = vsub.s32 0, %v1845
        %v1847 = vrot.slane %v1842, %v1846
        %v1865 = vunpack.c.l.b16 %v1826
        %v1866 = vunpack.c.l.b16 %v1827
        %v1867 = vunpack.c.l.b16 %v1828
        %v1868 = vunpack.c.l.b16 %v1829
        %v1869 = vunpack.c.l.b16 %v1830
        %v1870 = vunpack.c.l.b16 %v1831
        %v1871 = vunpack.c.l.b16 %v1832
        %v1872 = vunpack.c.l.b16 %v1833
        %v1873 = vunpack.c.l.b16 %v1834
        %v1874 = vunpack.c.l.b16 %v1835
        %v1875 = vunpack.c.l.b16 %v1836
        %v1876 = vunpack.c.l.b16 %v1837
        %v1877 = vunpack.c.l.b16 %v1838
        %v1878 = vunpack.c.l.b16 %v1839
        %v1879 = vunpack.c.l.b16 %v1840
        %v1880 = vunpack.c.l.b16 %v1841
        %v1881 = vpack.c.b16 %v1866, %v1865
        %v1882 = vpack.c.b16 %v1868, %v1867
        %v1883 = vpack.c.b16 %v1870, %v1869
        %v1884 = vpack.c.b16 %v1872, %v1871
        %v1885 = vpack.c.b16 %v1874, %v1873
        %v1886 = vpack.c.b16 %v1876, %v1875
        %v1887 = vpack.c.b16 %v1878, %v1877
        %v1888 = vpack.c.b16 %v1880, %v1879
        %1897 = vmatprep.subr.bf16.mxu0 0
        %1898 = vmatpush1.bf16.msra.mxu0 %v1881
        %1899 = vmatprep.subr.bf16.mxu0 0
        %1900 = vmatpush1.bf16.msra.mxu0 %v1882
        %1901 = vmatprep.subr.bf16.mxu0 0
        %1902 = vmatpush1.bf16.msra.mxu0 %v1883
        %1903 = vmatprep.subr.bf16.mxu0 0
        %1904 = vmatpush1.bf16.msra.mxu0 %v1884
        %1905 = vmatprep.subr.bf16.mxu0 0
        %1906 = vmatpush1.bf16.msra.mxu0 %v1885
        %1907 = vmatprep.subr.bf16.mxu0 0
        %1908 = vmatpush1.bf16.msra.mxu0 %v1886
        %1909 = vmatprep.subr.bf16.mxu0 0
        %1910 = vmatpush1.bf16.msra.mxu0 %v1887
        %1911 = vmatprep.subr.bf16.mxu0 0
        %1912 = vmatpush1.bf16.msra.mxu0 %v1888
        %1913 = vmatprep.subr.bf16.mxu0 0
        %1914 = vmatpush1.bf16.msra.mxu0 0
        %1915 = vmatprep.subr.bf16.mxu0 0
        %1916 = vmatpush1.bf16.msra.mxu0 0
        %1917 = vmatprep.subr.bf16.mxu0 0
        %1918 = vmatpush1.bf16.msra.mxu0 0
        %1919 = vmatprep.subr.bf16.mxu0 0
        %1920 = vmatpush1.bf16.msra.mxu0 0
        %1921 = vmatprep.subr.bf16.mxu0 0
        %1922 = vmatpush1.bf16.msra.mxu0 0
        %1923 = vmatprep.subr.bf16.mxu0 0
        %1924 = vmatpush1.bf16.msra.mxu0 0
        %1925 = vmatprep.subr.bf16.mxu0 0
        %1926 = vmatpush1.bf16.msra.mxu0 0
        %1927 = vmatprep.subr.bf16.mxu0 0
        %1928 = vmatpush1.bf16.msra.mxu0 0
        %1929 = vmatprep.mubr.bf16.mxu0 0
        %1930 = vmatmul.mubr.bf16.gmra.mrb[0].mxu0 %v1824
        %v1931 = vpop.f32.mrb[0].mxu0
        %v1932 = vadd.f32 %v1847, %v1931
        %v1933 = vpop.f32.mrb[0].mxu0
        %v1934 = vpop.f32.mrb[0].mxu0
        %v1935 = vadd.f32 %v1847, %v1934
        %v1936 = vpop.f32.mrb[0].mxu0
        %1937 = vmatprep.mubr.bf16.mxu0 0
        %1938 = vmatmul.mubr.bf16.gmra.mrb[0].mxu0 %v1825
        %v1939 = vpop.f32.mrb[0].mxu0
        %v1940 = vadd.f32 %v1847, %v1939
        %v1941 = vpop.f32.mrb[0].mxu0
        %v1942 = vpop.f32.mrb[0].mxu0
        %v1943 = vadd.f32 %v1847, %v1942
        %v1944 = vpop.f32.mrb[0].mxu0
        %1945 = vdwg.mxu0
        %v1946 = vpack.c.bf16 %v1935, %v1932
        %v1947 = vpack.c.bf16 %v1943, %v1940
        %v1948 = vmax.bf16 %v1946, 0
        %v1949 = vmax.bf16 %v1947, 0
        %v1950 = vld [vmem:[#allocation8] sm:$0xff]
        %v1951 = vld [vmem:[#allocation8 + $0x8] sm:$0xff]
        %v1952 = vld [vmem:[#allocation8 + $0x10] sm:$0xff]
        %v1953 = vld [vmem:[#allocation8 + $0x18] sm:$0xff]
        %v1954 = vld [vmem:[#allocation8 + $0x20] sm:$0xff]
        %v1955 = vld [vmem:[#allocation8 + $0x28] sm:$0xff]
        %v1956 = vld [vmem:[#allocation8 + $0x30] sm:$0xff]
        %v1957 = vld [vmem:[#allocation8 + $0x38] sm:$0xff]
        %v1958 = vld [vmem:[#allocation8 + $0x40] sm:$0xff]
        %v1959 = vld [vmem:[#allocation8 + $0x48] sm:$0xff]
        %v1960 = vld [vmem:[#allocation8 + $0x50] sm:$0xff]
        %v1961 = vld [vmem:[#allocation8 + $0x58] sm:$0xff]
        %v1962 = vld [vmem:[#allocation8 + $0x60] sm:$0xff]
        %v1963 = vld [vmem:[#allocation8 + $0x68] sm:$0xff]
        %v1964 = vld [vmem:[#allocation8 + $0x70] sm:$0xff]
        %v1965 = vld [vmem:[#allocation8 + $0x78] sm:$0xff]
        %v1966 = vld [vmem:[%s10] sm:$0x3]
        %v1968 = vlaneseq
        %v1969 = vshrl.u32 %v1968, 7
        %v1970 = vsub.s32 0, %v1969
        %v1971 = vrot.slane %v1966, %v1970
        %v1972 = vlaneseq
        %v1973 = vshrl.u32 %v1972, 7
        %v1974 = vsub.s32 1, %v1973
        %v1975 = vrot.slane %v1966, %v1974
        %v1994 = vunpack.c.l.b16 %v1950
        %v1995 = vunpack.c.h.b16 %v1950
        %v1996 = vunpack.c.l.b16 %v1951
        %v1997 = vunpack.c.h.b16 %v1951
        %v1998 = vunpack.c.l.b16 %v1952
        %v1999 = vunpack.c.h.b16 %v1952
        %v2000 = vunpack.c.l.b16 %v1953
        %v2001 = vunpack.c.h.b16 %v1953
        %v2002 = vunpack.c.l.b16 %v1954
        %v2003 = vunpack.c.h.b16 %v1954
        %v2004 = vunpack.c.l.b16 %v1955
        %v2005 = vunpack.c.h.b16 %v1955
        %v2006 = vunpack.c.l.b16 %v1956
        %v2007 = vunpack.c.h.b16 %v1956
        %v2008 = vunpack.c.l.b16 %v1957
        %v2009 = vunpack.c.h.b16 %v1957
        %v2010 = vunpack.c.l.b16 %v1958
        %v2011 = vunpack.c.h.b16 %v1958
        %v2012 = vunpack.c.l.b16 %v1959
        %v2013 = vunpack.c.h.b16 %v1959
        %v2014 = vunpack.c.l.b16 %v1960
        %v2015 = vunpack.c.h.b16 %v1960
        %v2016 = vunpack.c.l.b16 %v1961
        %v2017 = vunpack.c.h.b16 %v1961
        %v2018 = vunpack.c.l.b16 %v1962
        %v2019 = vunpack.c.h.b16 %v1962
        %v2020 = vunpack.c.l.b16 %v1963
        %v2021 = vunpack.c.h.b16 %v1963
        %v2022 = vunpack.c.l.b16 %v1964
        %v2023 = vunpack.c.h.b16 %v1964
        %v2024 = vunpack.c.l.b16 %v1965
        %v2025 = vunpack.c.h.b16 %v1965
        %v2026 = vpack.c.b16 %v1996, %v1994
        %v2027 = vpack.c.b16 %v1997, %v1995
        %v2028 = vpack.c.b16 %v2000, %v1998
        %v2029 = vpack.c.b16 %v2001, %v1999
        %v2030 = vpack.c.b16 %v2004, %v2002
        %v2031 = vpack.c.b16 %v2005, %v2003
        %v2032 = vpack.c.b16 %v2008, %v2006
        %v2033 = vpack.c.b16 %v2009, %v2007
        %v2034 = vpack.c.b16 %v2012, %v2010
        %v2035 = vpack.c.b16 %v2013, %v2011
        %v2036 = vpack.c.b16 %v2016, %v2014
        %v2037 = vpack.c.b16 %v2017, %v2015
        %v2038 = vpack.c.b16 %v2020, %v2018
        %v2039 = vpack.c.b16 %v2021, %v2019
        %v2040 = vpack.c.b16 %v2024, %v2022
        %v2041 = vpack.c.b16 %v2025, %v2023
        %2058 = vmatprep.subr.bf16.mxu0 %v2027
        %2059 = vmatpush1.bf16.msra.mxu0 %v2026
        %2060 = vmatprep.subr.bf16.mxu0 %v2029
        %2061 = vmatpush1.bf16.msra.mxu0 %v2028
        %2062 = vmatprep.subr.bf16.mxu0 %v2031
        %2063 = vmatpush1.bf16.msra.mxu0 %v2030
        %2064 = vmatprep.subr.bf16.mxu0 %v2033
        %2065 = vmatpush1.bf16.msra.mxu0 %v2032
        %2066 = vmatprep.subr.bf16.mxu0 %v2035
        %2067 = vmatpush1.bf16.msra.mxu0 %v2034
        %2068 = vmatprep.subr.bf16.mxu0 %v2037
        %2069 = vmatpush1.bf16.msra.mxu0 %v2036
        %2070 = vmatprep.subr.bf16.mxu0 %v2039
        %2071 = vmatpush1.bf16.msra.mxu0 %v2038
        %2072 = vmatprep.subr.bf16.mxu0 %v2041
        %2073 = vmatpush1.bf16.msra.mxu0 %v2040
        %2074 = vmatprep.subr.bf16.mxu0 0
        %2075 = vmatpush1.bf16.msra.mxu0 0
        %2076 = vmatprep.subr.bf16.mxu0 0
        %2077 = vmatpush1.bf16.msra.mxu0 0
        %2078 = vmatprep.subr.bf16.mxu0 0
        %2079 = vmatpush1.bf16.msra.mxu0 0
        %2080 = vmatprep.subr.bf16.mxu0 0
        %2081 = vmatpush1.bf16.msra.mxu0 0
        %2082 = vmatprep.subr.bf16.mxu0 0
        %2083 = vmatpush1.bf16.msra.mxu0 0
        %2084 = vmatprep.subr.bf16.mxu0 0
        %2085 = vmatpush1.bf16.msra.mxu0 0
        %2086 = vmatprep.subr.bf16.mxu0 0
        %2087 = vmatpush1.bf16.msra.mxu0 0
        %2088 = vmatprep.subr.bf16.mxu0 0
        %2089 = vmatpush1.bf16.msra.mxu0 0
        %2090 = vmatprep.mubr.bf16.mxu0 0
        %2091 = vmatmul.mubr.bf16.gmra.mrb[0].mxu0 %v1948
        %v2092 = vpop.f32.mrb[0].mxu0
        %v2093 = vadd.f32 %v1971, %v2092
        %v2094 = vpop.f32.mrb[0].mxu0
        %v2095 = vadd.f32 %v1975, %v2094
        %v2096 = vpop.f32.mrb[0].mxu0
        %v2097 = vadd.f32 %v1971, %v2096
        %v2098 = vpop.f32.mrb[0].mxu0
        %v2099 = vadd.f32 %v1975, %v2098
        %2100 = vmatprep.mubr.bf16.mxu0 0
        %2101 = vmatmul.mubr.bf16.gmra.mrb[0].mxu0 %v1949
        %v2102 = vpop.f32.mrb[0].mxu0
        %v2103 = vadd.f32 %v1971, %v2102
        %v2104 = vpop.f32.mrb[0].mxu0
        %v2105 = vadd.f32 %v1975, %v2104
        %v2106 = vpop.f32.mrb[0].mxu0
        %v2107 = vadd.f32 %v1971, %v2106
        %v2108 = vpop.f32.mrb[0].mxu0
        %v2109 = vadd.f32 %v1975, %v2108
        %2110 = vdwg.mxu0
        %v2111 = vpack.c.bf16 %v2097, %v2093
        %v2112 = vpack.c.bf16 %v2099, %v2095
        %v2113 = vpack.c.bf16 %v2107, %v2103
        %v2114 = vpack.c.bf16 %v2109, %v2105
        %v2115 = vmax.bf16 %v2111, 0
        %v2116 = vmax.bf16 %v2112, 0
        %v2117 = vmax.bf16 %v2113, 0
        %v2118 = vmax.bf16 %v2114, 0
        %v2119 = vld [vmem:[#allocation10] sm:$0xff]
        %v2120 = vld [vmem:[#allocation10 + $0x8] sm:$0xff]
        %v2121 = vld [vmem:[#allocation10 + $0x10] sm:$0xff]
        %v2122 = vld [vmem:[#allocation10 + $0x18] sm:$0xff]
        %v2123 = vld [vmem:[#allocation10 + $0x20] sm:$0xff]
        %v2124 = vld [vmem:[#allocation10 + $0x28] sm:$0xff]
        %v2125 = vld [vmem:[#allocation10 + $0x30] sm:$0xff]
        %v2126 = vld [vmem:[#allocation10 + $0x38] sm:$0xff]
        %v2127 = vld [vmem:[#allocation10 + $0x40] sm:$0xff]
        %v2128 = vld [vmem:[#allocation10 + $0x48] sm:$0xff]
        %v2129 = vld [vmem:[#allocation10 + $0x50] sm:$0xff]
        %v2130 = vld [vmem:[#allocation10 + $0x58] sm:$0xff]
        %v2131 = vld [vmem:[#allocation10 + $0x60] sm:$0xff]
        %v2132 = vld [vmem:[#allocation10 + $0x68] sm:$0xff]
        %v2133 = vld [vmem:[#allocation10 + $0x70] sm:$0xff]
        %v2134 = vld [vmem:[#allocation10 + $0x78] sm:$0xff]
        %v2135 = vld [vmem:[#allocation10 + $0x80] sm:$0xff]
        %v2136 = vld [vmem:[#allocation10 + $0x88] sm:$0xff]
        %v2137 = vld [vmem:[#allocation10 + $0x90] sm:$0xff]
        %v2138 = vld [vmem:[#allocation10 + $0x98] sm:$0xff]
        %v2139 = vld [vmem:[#allocation10 + $0xa0] sm:$0xff]
        %v2140 = vld [vmem:[#allocation10 + $0xa8] sm:$0xff]
        %v2141 = vld [vmem:[#allocation10 + $0xb0] sm:$0xff]
        %v2142 = vld [vmem:[#allocation10 + $0xb8] sm:$0xff]
        %v2143 = vld [vmem:[#allocation10 + $0xc0] sm:$0xff]
        %v2144 = vld [vmem:[#allocation10 + $0xc8] sm:$0xff]
        %v2145 = vld [vmem:[#allocation10 + $0xd0] sm:$0xff]
        %v2146 = vld [vmem:[#allocation10 + $0xd8] sm:$0xff]
        %v2147 = vld [vmem:[#allocation10 + $0xe0] sm:$0xff]
        %v2148 = vld [vmem:[#allocation10 + $0xe8] sm:$0xff]
        %v2149 = vld [vmem:[#allocation10 + $0xf0] sm:$0xff]
        %v2150 = vld [vmem:[#allocation10 + $0xf8] sm:$0xff]
        %v2151 = vld [vmem:[#allocation10 + $0x100] sm:$0xff]
        %v2152 = vld [vmem:[#allocation10 + $0x108] sm:$0xff]
        %v2153 = vld [vmem:[#allocation10 + $0x110] sm:$0xff]
        %v2154 = vld [vmem:[#allocation10 + $0x118] sm:$0xff]
        %v2155 = vld [vmem:[#allocation10 + $0x120] sm:$0xff]
        %v2156 = vld [vmem:[#allocation10 + $0x128] sm:$0xff]
        %v2157 = vld [vmem:[#allocation10 + $0x130] sm:$0xff]
        %v2158 = vld [vmem:[#allocation10 + $0x138] sm:$0xff]
        %v2159 = vld [vmem:[#allocation10 + $0x140] sm:$0xff]
        %v2160 = vld [vmem:[#allocation10 + $0x148] sm:$0xff]
        %v2161 = vld [vmem:[#allocation10 + $0x150] sm:$0xff]
        %v2162 = vld [vmem:[#allocation10 + $0x158] sm:$0xff]
        %v2163 = vld [vmem:[#allocation10 + $0x160] sm:$0xff]
        %v2164 = vld [vmem:[#allocation10 + $0x168] sm:$0xff]
        %v2165 = vld [vmem:[#allocation10 + $0x170] sm:$0xff]
        %v2166 = vld [vmem:[#allocation10 + $0x178] sm:$0xff]
        %v2167 = vld [vmem:[#allocation10 + $0x180] sm:$0xff]
        %v2168 = vld [vmem:[#allocation10 + $0x188] sm:$0xff]
        %v2169 = vld [vmem:[#allocation10 + $0x190] sm:$0xff]
        %v2170 = vld [vmem:[#allocation10 + $0x198] sm:$0xff]
        %v2171 = vld [vmem:[#allocation10 + $0x1a0] sm:$0xff]
        %v2172 = vld [vmem:[#allocation10 + $0x1a8] sm:$0xff]
        %v2173 = vld [vmem:[#allocation10 + $0x1b0] sm:$0xff]
        %v2174 = vld [vmem:[#allocation10 + $0x1b8] sm:$0xff]
        %v2175 = vld [vmem:[#allocation10 + $0x1c0] sm:$0xff]
        %v2176 = vld [vmem:[#allocation10 + $0x1c8] sm:$0xff]
        %v2177 = vld [vmem:[#allocation10 + $0x1d0] sm:$0xff]
        %v2178 = vld [vmem:[#allocation10 + $0x1d8] sm:$0xff]
        %v2179 = vld [vmem:[#allocation10 + $0x1e0] sm:$0xff]
        %v2180 = vld [vmem:[#allocation10 + $0x1e8] sm:$0xff]
        %v2181 = vld [vmem:[#allocation10 + $0x1f0] sm:$0xff]
        %v2182 = vld [vmem:[#allocation10 + $0x1f8] sm:$0xff]
        %v2183 = vld [vmem:[%s12] sm:$0xf]
        %v2185 = vlaneseq
        %v2186 = vshrl.u32 %v2185, 7
        %v2187 = vsub.s32 0, %v2186
        %v2188 = vrot.slane %v2183, %v2187
        %v2189 = vlaneseq
        %v2190 = vshrl.u32 %v2189, 7
        %v2191 = vsub.s32 1, %v2190
        %v2192 = vrot.slane %v2183, %v2191
        %v2193 = vlaneseq
        %v2194 = vshrl.u32 %v2193, 7
        %v2195 = vsub.s32 2, %v2194
        %v2196 = vrot.slane %v2183, %v2195
        %v2197 = vlaneseq
        %v2198 = vshrl.u32 %v2197, 7
        %v2199 = vsub.s32 3, %v2198
        %v2200 = vrot.slane %v2183, %v2199
        %v2269 = vunpack.c.l.b16 %v2119
        %v2270 = vunpack.c.h.b16 %v2119
        %v2271 = vunpack.c.l.b16 %v2120
        %v2272 = vunpack.c.h.b16 %v2120
        %v2273 = vunpack.c.l.b16 %v2121
        %v2274 = vunpack.c.h.b16 %v2121
        %v2275 = vunpack.c.l.b16 %v2122
        %v2276 = vunpack.c.h.b16 %v2122
        %v2277 = vunpack.c.l.b16 %v2123
        %v2278 = vunpack.c.h.b16 %v2123
        %v2279 = vunpack.c.l.b16 %v2124
        %v2280 = vunpack.c.h.b16 %v2124
        %v2281 = vunpack.c.l.b16 %v2125
        %v2282 = vunpack.c.h.b16 %v2125
        %v2283 = vunpack.c.l.b16 %v2126
        %v2284 = vunpack.c.h.b16 %v2126
        %v2285 = vunpack.c.l.b16 %v2127
        %v2286 = vunpack.c.h.b16 %v2127
        %v2287 = vunpack.c.l.b16 %v2128
        %v2288 = vunpack.c.h.b16 %v2128
        %v2289 = vunpack.c.l.b16 %v2129
        %v2290 = vunpack.c.h.b16 %v2129
        %v2291 = vunpack.c.l.b16 %v2130
        %v2292 = vunpack.c.h.b16 %v2130
        %v2293 = vunpack.c.l.b16 %v2131
        %v2294 = vunpack.c.h.b16 %v2131
        %v2295 = vunpack.c.l.b16 %v2132
        %v2296 = vunpack.c.h.b16 %v2132
        %v2297 = vunpack.c.l.b16 %v2133
        %v2298 = vunpack.c.h.b16 %v2133
        %v2299 = vunpack.c.l.b16 %v2134
        %v2300 = vunpack.c.h.b16 %v2134
        %v2301 = vunpack.c.l.b16 %v2135
        %v2302 = vunpack.c.h.b16 %v2135
        %v2303 = vunpack.c.l.b16 %v2136
        %v2304 = vunpack.c.h.b16 %v2136
        %v2305 = vunpack.c.l.b16 %v2137
        %v2306 = vunpack.c.h.b16 %v2137
        %v2307 = vunpack.c.l.b16 %v2138
        %v2308 = vunpack.c.h.b16 %v2138
        %v2309 = vunpack.c.l.b16 %v2139
        %v2310 = vunpack.c.h.b16 %v2139
        %v2311 = vunpack.c.l.b16 %v2140
        %v2312 = vunpack.c.h.b16 %v2140
        %v2313 = vunpack.c.l.b16 %v2141
        %v2314 = vunpack.c.h.b16 %v2141
        %v2315 = vunpack.c.l.b16 %v2142
        %v2316 = vunpack.c.h.b16 %v2142
        %v2317 = vunpack.c.l.b16 %v2143
        %v2318 = vunpack.c.h.b16 %v2143
        %v2319 = vunpack.c.l.b16 %v2144
        %v2320 = vunpack.c.h.b16 %v2144
        %v2321 = vunpack.c.l.b16 %v2145
        %v2322 = vunpack.c.h.b16 %v2145
        %v2323 = vunpack.c.l.b16 %v2146
        %v2324 = vunpack.c.h.b16 %v2146
        %v2325 = vunpack.c.l.b16 %v2147
        %v2326 = vunpack.c.h.b16 %v2147
        %v2327 = vunpack.c.l.b16 %v2148
        %v2328 = vunpack.c.h.b16 %v2148
        %v2329 = vunpack.c.l.b16 %v2149
        %v2330 = vunpack.c.h.b16 %v2149
        %v2331 = vunpack.c.l.b16 %v2150
        %v2332 = vunpack.c.h.b16 %v2150
        %v2333 = vunpack.c.l.b16 %v2151
        %v2334 = vunpack.c.h.b16 %v2151
        %v2335 = vunpack.c.l.b16 %v2152
        %v2336 = vunpack.c.h.b16 %v2152
        %v2337 = vunpack.c.l.b16 %v2153
        %v2338 = vunpack.c.h.b16 %v2153
        %v2339 = vunpack.c.l.b16 %v2154
        %v2340 = vunpack.c.h.b16 %v2154
        %v2341 = vunpack.c.l.b16 %v2155
        %v2342 = vunpack.c.h.b16 %v2155
        %v2343 = vunpack.c.l.b16 %v2156
        %v2344 = vunpack.c.h.b16 %v2156
        %v2345 = vunpack.c.l.b16 %v2157
        %v2346 = vunpack.c.h.b16 %v2157
        %v2347 = vunpack.c.l.b16 %v2158
        %v2348 = vunpack.c.h.b16 %v2158
        %v2349 = vunpack.c.l.b16 %v2159
        %v2350 = vunpack.c.h.b16 %v2159
        %v2351 = vunpack.c.l.b16 %v2160
        %v2352 = vunpack.c.h.b16 %v2160
        %v2353 = vunpack.c.l.b16 %v2161
        %v2354 = vunpack.c.h.b16 %v2161
        %v2355 = vunpack.c.l.b16 %v2162
        %v2356 = vunpack.c.h.b16 %v2162
        %v2357 = vunpack.c.l.b16 %v2163
        %v2358 = vunpack.c.h.b16 %v2163
        %v2359 = vunpack.c.l.b16 %v2164
        %v2360 = vunpack.c.h.b16 %v2164
        %v2361 = vunpack.c.l.b16 %v2165
        %v2362 = vunpack.c.h.b16 %v2165
        %v2363 = vunpack.c.l.b16 %v2166
        %v2364 = vunpack.c.h.b16 %v2166
        %v2365 = vunpack.c.l.b16 %v2167
        %v2366 = vunpack.c.h.b16 %v2167
        %v2367 = vunpack.c.l.b16 %v2168
        %v2368 = vunpack.c.h.b16 %v2168
        %v2369 = vunpack.c.l.b16 %v2169
        %v2370 = vunpack.c.h.b16 %v2169
        %v2371 = vunpack.c.l.b16 %v2170
        %v2372 = vunpack.c.h.b16 %v2170
        %v2373 = vunpack.c.l.b16 %v2171
        %v2374 = vunpack.c.h.b16 %v2171
        %v2375 = vunpack.c.l.b16 %v2172
        %v2376 = vunpack.c.h.b16 %v2172
        %v2377 = vunpack.c.l.b16 %v2173
        %v2378 = vunpack.c.h.b16 %v2173
        %v2379 = vunpack.c.l.b16 %v2174
        %v2380 = vunpack.c.h.b16 %v2174
        %v2381 = vunpack.c.l.b16 %v2175
        %v2382 = vunpack.c.h.b16 %v2175
        %v2383 = vunpack.c.l.b16 %v2176
        %v2384 = vunpack.c.h.b16 %v2176
        %v2385 = vunpack.c.l.b16 %v2177
        %v2386 = vunpack.c.h.b16 %v2177
        %v2387 = vunpack.c.l.b16 %v2178
        %v2388 = vunpack.c.h.b16 %v2178
        %v2389 = vunpack.c.l.b16 %v2179
        %v2390 = vunpack.c.h.b16 %v2179
        %v2391 = vunpack.c.l.b16 %v2180
        %v2392 = vunpack.c.h.b16 %v2180
        %v2393 = vunpack.c.l.b16 %v2181
        %v2394 = vunpack.c.h.b16 %v2181
        %v2395 = vunpack.c.l.b16 %v2182
        %v2396 = vunpack.c.h.b16 %v2182
        %v2397 = vpack.c.b16 %v2273, %v2269
        %v2398 = vpack.c.b16 %v2274, %v2270
        %v2399 = vpack.c.b16 %v2275, %v2271
        %v2400 = vpack.c.b16 %v2276, %v2272
        %v2401 = vpack.c.b16 %v2281, %v2277
        %v2402 = vpack.c.b16 %v2282, %v2278
        %v2403 = vpack.c.b16 %v2283, %v2279
        %v2404 = vpack.c.b16 %v2284, %v2280
        %v2405 = vpack.c.b16 %v2289, %v2285
        %v2406 = vpack.c.b16 %v2290, %v2286
        %v2407 = vpack.c.b16 %v2291, %v2287
        %v2408 = vpack.c.b16 %v2292, %v2288
        %v2409 = vpack.c.b16 %v2297, %v2293
        %v2410 = vpack.c.b16 %v2298, %v2294
        %v2411 = vpack.c.b16 %v2299, %v2295
        %v2412 = vpack.c.b16 %v2300, %v2296
        %v2413 = vpack.c.b16 %v2305, %v2301
        %v2414 = vpack.c.b16 %v2306, %v2302
        %v2415 = vpack.c.b16 %v2307, %v2303
        %v2416 = vpack.c.b16 %v2308, %v2304
        %v2417 = vpack.c.b16 %v2313, %v2309
        %v2418 = vpack.c.b16 %v2314, %v2310
        %v2419 = vpack.c.b16 %v2315, %v2311
        %v2420 = vpack.c.b16 %v2316, %v2312
        %v2421 = vpack.c.b16 %v2321, %v2317
        %v2422 = vpack.c.b16 %v2322, %v2318
        %v2423 = vpack.c.b16 %v2323, %v2319
        %v2424 = vpack.c.b16 %v2324, %v2320
        %v2425 = vpack.c.b16 %v2329, %v2325
        %v2426 = vpack.c.b16 %v2330, %v2326
        %v2427 = vpack.c.b16 %v2331, %v2327
        %v2428 = vpack.c.b16 %v2332, %v2328
        %v2429 = vpack.c.b16 %v2337, %v2333
        %v2430 = vpack.c.b16 %v2338, %v2334
        %v2431 = vpack.c.b16 %v2339, %v2335
        %v2432 = vpack.c.b16 %v2340, %v2336
        %v2433 = vpack.c.b16 %v2345, %v2341
        %v2434 = vpack.c.b16 %v2346, %v2342
        %v2435 = vpack.c.b16 %v2347, %v2343
        %v2436 = vpack.c.b16 %v2348, %v2344
        %v2437 = vpack.c.b16 %v2353, %v2349
        %v2438 = vpack.c.b16 %v2354, %v2350
        %v2439 = vpack.c.b16 %v2355, %v2351
        %v2440 = vpack.c.b16 %v2356, %v2352
        %v2441 = vpack.c.b16 %v2361, %v2357
        %v2442 = vpack.c.b16 %v2362, %v2358
        %v2443 = vpack.c.b16 %v2363, %v2359
        %v2444 = vpack.c.b16 %v2364, %v2360
        %v2445 = vpack.c.b16 %v2369, %v2365
        %v2446 = vpack.c.b16 %v2370, %v2366
        %v2447 = vpack.c.b16 %v2371, %v2367
        %v2448 = vpack.c.b16 %v2372, %v2368
        %v2449 = vpack.c.b16 %v2377, %v2373
        %v2450 = vpack.c.b16 %v2378, %v2374
        %v2451 = vpack.c.b16 %v2379, %v2375
        %v2452 = vpack.c.b16 %v2380, %v2376
        %v2453 = vpack.c.b16 %v2385, %v2381
        %v2454 = vpack.c.b16 %v2386, %v2382
        %v2455 = vpack.c.b16 %v2387, %v2383
        %v2456 = vpack.c.b16 %v2388, %v2384
        %v2457 = vpack.c.b16 %v2393, %v2389
        %v2458 = vpack.c.b16 %v2394, %v2390
        %v2459 = vpack.c.b16 %v2395, %v2391
        %v2460 = vpack.c.b16 %v2396, %v2392
        %2525 = vmatprep.subr.bf16.mxu0 %v2398
        %2526 = vmatpush1.bf16.msra.mxu0 %v2397
        %2527 = vmatprep.subr.bf16.mxu0 %v2402
        %2528 = vmatpush1.bf16.msra.mxu0 %v2401
        %2529 = vmatprep.subr.bf16.mxu0 %v2406
        %2530 = vmatpush1.bf16.msra.mxu0 %v2405
        %2531 = vmatprep.subr.bf16.mxu0 %v2410
        %2532 = vmatpush1.bf16.msra.mxu0 %v2409
        %2533 = vmatprep.subr.bf16.mxu0 %v2414
        %2534 = vmatpush1.bf16.msra.mxu0 %v2413
        %2535 = vmatprep.subr.bf16.mxu0 %v2418
        %2536 = vmatpush1.bf16.msra.mxu0 %v2417
        %2537 = vmatprep.subr.bf16.mxu0 %v2422
        %2538 = vmatpush1.bf16.msra.mxu0 %v2421
        %2539 = vmatprep.subr.bf16.mxu0 %v2426
        %2540 = vmatpush1.bf16.msra.mxu0 %v2425
        %2541 = vmatprep.subr.bf16.mxu0 %v2430
        %2542 = vmatpush1.bf16.msra.mxu0 %v2429
        %2543 = vmatprep.subr.bf16.mxu0 %v2434
        %2544 = vmatpush1.bf16.msra.mxu0 %v2433
        %2545 = vmatprep.subr.bf16.mxu0 %v2438
        %2546 = vmatpush1.bf16.msra.mxu0 %v2437
        %2547 = vmatprep.subr.bf16.mxu0 %v2442
        %2548 = vmatpush1.bf16.msra.mxu0 %v2441
        %2549 = vmatprep.subr.bf16.mxu0 %v2446
        %2550 = vmatpush1.bf16.msra.mxu0 %v2445
        %2551 = vmatprep.subr.bf16.mxu0 %v2450
        %2552 = vmatpush1.bf16.msra.mxu0 %v2449
        %2553 = vmatprep.subr.bf16.mxu0 %v2454
        %2554 = vmatpush1.bf16.msra.mxu0 %v2453
        %2555 = vmatprep.subr.bf16.mxu0 %v2458
        %2556 = vmatpush1.bf16.msra.mxu0 %v2457
        %2557 = vmatprep.mubr.bf16.mxu0 %v2116
        %2558 = vmatmul.mubr.bf16.gmra.mrb[0].mxu0 %v2115
        %v2559 = vpop.f32.mrb[0].mxu0
        %v2560 = vadd.f32 %v2188, %v2559
        %v2561 = vpop.f32.mrb[0].mxu0
        %v2562 = vadd.f32 %v2192, %v2561
        %v2563 = vpop.f32.mrb[0].mxu0
        %v2564 = vadd.f32 %v2188, %v2563
        %v2565 = vpop.f32.mrb[0].mxu0
        %v2566 = vadd.f32 %v2192, %v2565
        %2567 = vmatprep.mubr.bf16.mxu0 %v2118
        %2568 = vmatmul.mubr.bf16.gmra.mrb[0].mxu0 %v2117
        %v2569 = vpop.f32.mrb[0].mxu0
        %v2570 = vadd.f32 %v2188, %v2569
        %v2571 = vpop.f32.mrb[0].mxu0
        %v2572 = vadd.f32 %v2192, %v2571
        %v2573 = vpop.f32.mrb[0].mxu0
        %v2574 = vadd.f32 %v2188, %v2573
        %v2575 = vpop.f32.mrb[0].mxu0
        %v2576 = vadd.f32 %v2192, %v2575
        %2577 = vdwg.mxu0
        %2578 = vmatprep.subr.bf16.mxu0 %v2400
        %2579 = vmatpush1.bf16.msra.mxu0 %v2399
        %2580 = vmatprep.subr.bf16.mxu0 %v2404
        %2581 = vmatpush1.bf16.msra.mxu0 %v2403
        %2582 = vmatprep.subr.bf16.mxu0 %v2408
        %2583 = vmatpush1.bf16.msra.mxu0 %v2407
        %2584 = vmatprep.subr.bf16.mxu0 %v2412
        %2585 = vmatpush1.bf16.msra.mxu0 %v2411
        %2586 = vmatprep.subr.bf16.mxu0 %v2416
        %2587 = vmatpush1.bf16.msra.mxu0 %v2415
        %2588 = vmatprep.subr.bf16.mxu0 %v2420
        %2589 = vmatpush1.bf16.msra.mxu0 %v2419
        %2590 = vmatprep.subr.bf16.mxu0 %v2424
        %2591 = vmatpush1.bf16.msra.mxu0 %v2423
        %2592 = vmatprep.subr.bf16.mxu0 %v2428
        %2593 = vmatpush1.bf16.msra.mxu0 %v2427
        %2594 = vmatprep.subr.bf16.mxu0 %v2432
        %2595 = vmatpush1.bf16.msra.mxu0 %v2431
        %2596 = vmatprep.subr.bf16.mxu0 %v2436
        %2597 = vmatpush1.bf16.msra.mxu0 %v2435
        %2598 = vmatprep.subr.bf16.mxu0 %v2440
        %2599 = vmatpush1.bf16.msra.mxu0 %v2439
        %2600 = vmatprep.subr.bf16.mxu0 %v2444
        %2601 = vmatpush1.bf16.msra.mxu0 %v2443
        %2602 = vmatprep.subr.bf16.mxu0 %v2448
        %2603 = vmatpush1.bf16.msra.mxu0 %v2447
        %2604 = vmatprep.subr.bf16.mxu0 %v2452
        %2605 = vmatpush1.bf16.msra.mxu0 %v2451
        %2606 = vmatprep.subr.bf16.mxu0 %v2456
        %2607 = vmatpush1.bf16.msra.mxu0 %v2455
        %2608 = vmatprep.subr.bf16.mxu0 %v2460
        %2609 = vmatpush1.bf16.msra.mxu0 %v2459
        %2610 = vmatprep.mubr.bf16.mxu0 %v2116
        %2611 = vmatmul.mubr.bf16.gmra.mrb[0].mxu0 %v2115
        %v2612 = vpop.f32.mrb[0].mxu0
        %v2613 = vadd.f32 %v2196, %v2612
        %v2614 = vpop.f32.mrb[0].mxu0
        %v2615 = vadd.f32 %v2200, %v2614
        %v2616 = vpop.f32.mrb[0].mxu0
        %v2617 = vadd.f32 %v2196, %v2616
        %v2618 = vpop.f32.mrb[0].mxu0
        %v2619 = vadd.f32 %v2200, %v2618
        %2620 = vmatprep.mubr.bf16.mxu0 %v2118
        %2621 = vmatmul.mubr.bf16.gmra.mrb[0].mxu0 %v2117
        %v2622 = vpop.f32.mrb[0].mxu0
        %v2623 = vadd.f32 %v2196, %v2622
        %v2624 = vpop.f32.mrb[0].mxu0
        %v2625 = vadd.f32 %v2200, %v2624
        %v2626 = vpop.f32.mrb[0].mxu0
        %v2627 = vadd.f32 %v2196, %v2626
        %v2628 = vpop.f32.mrb[0].mxu0
        %v2629 = vadd.f32 %v2200, %v2628
        %2630 = vdwg.mxu0
        %v2631 = vpack.c.bf16 %v2564, %v2560
        %v2632 = vpack.c.bf16 %v2566, %v2562
        %v2633 = vpack.c.bf16 %v2617, %v2613
        %v2634 = vpack.c.bf16 %v2619, %v2615
        %v2635 = vpack.c.bf16 %v2574, %v2570
        %v2636 = vpack.c.bf16 %v2576, %v2572
        %v2637 = vpack.c.bf16 %v2627, %v2623
        %v2638 = vpack.c.bf16 %v2629, %v2625
        %v2639 = vmax.bf16 %v2631, 0
        %v2640 = vmax.bf16 %v2632, 0
        %v2641 = vmax.bf16 %v2633, 0
        %v2642 = vmax.bf16 %v2634, 0
        %v2643 = vmax.bf16 %v2635, 0
        %v2644 = vmax.bf16 %v2636, 0
        %v2645 = vmax.bf16 %v2637, 0
        %v2646 = vmax.bf16 %v2638, 0
        %v2647 = vld [vmem:[#allocation11] sm:$0xff]
        %v2648 = vld [vmem:[#allocation11 + $0x8] sm:$0xff]
        %v2649 = vld [vmem:[#allocation11 + $0x10] sm:$0xff]
        %v2650 = vld [vmem:[#allocation11 + $0x18] sm:$0xff]
        %v2651 = vld [vmem:[#allocation11 + $0x20] sm:$0xff]
        %v2652 = vld [vmem:[#allocation11 + $0x28] sm:$0xff]
        %v2653 = vld [vmem:[#allocation11 + $0x30] sm:$0xff]
        %v2654 = vld [vmem:[#allocation11 + $0x38] sm:$0xff]
        %v2655 = vld [vmem:[#allocation11 + $0x40] sm:$0xff]
        %v2656 = vld [vmem:[#allocation11 + $0x48] sm:$0xff]
        %v2657 = vld [vmem:[#allocation11 + $0x50] sm:$0xff]
        %v2658 = vld [vmem:[#allocation11 + $0x58] sm:$0xff]
        %v2659 = vld [vmem:[#allocation11 + $0x60] sm:$0xff]
        %v2660 = vld [vmem:[#allocation11 + $0x68] sm:$0xff]
        %v2661 = vld [vmem:[#allocation11 + $0x70] sm:$0xff]
        %v2662 = vld [vmem:[#allocation11 + $0x78] sm:$0xff]
        %v2663 = vld [vmem:[#allocation11 + $0x80] sm:$0xff]
        %v2664 = vld [vmem:[#allocation11 + $0x88] sm:$0xff]
        %v2665 = vld [vmem:[#allocation11 + $0x90] sm:$0xff]
        %v2666 = vld [vmem:[#allocation11 + $0x98] sm:$0xff]
        %v2667 = vld [vmem:[#allocation11 + $0xa0] sm:$0xff]
        %v2668 = vld [vmem:[#allocation11 + $0xa8] sm:$0xff]
        %v2669 = vld [vmem:[#allocation11 + $0xb0] sm:$0xff]
        %v2670 = vld [vmem:[#allocation11 + $0xb8] sm:$0xff]
        %v2671 = vld [vmem:[#allocation11 + $0xc0] sm:$0xff]
        %v2672 = vld [vmem:[#allocation11 + $0xc8] sm:$0xff]
        %v2673 = vld [vmem:[#allocation11 + $0xd0] sm:$0xff]
        %v2674 = vld [vmem:[#allocation11 + $0xd8] sm:$0xff]
        %v2675 = vld [vmem:[#allocation11 + $0xe0] sm:$0xff]
        %v2676 = vld [vmem:[#allocation11 + $0xe8] sm:$0xff]
        %v2677 = vld [vmem:[#allocation11 + $0xf0] sm:$0xff]
        %v2678 = vld [vmem:[#allocation11 + $0xf8] sm:$0xff]
        %v2679 = vld [vmem:[#allocation11 + $0x100] sm:$0xff]
        %v2680 = vld [vmem:[#allocation11 + $0x108] sm:$0xff]
        %v2681 = vld [vmem:[#allocation11 + $0x110] sm:$0xff]
        %v2682 = vld [vmem:[#allocation11 + $0x118] sm:$0xff]
        %v2683 = vld [vmem:[#allocation11 + $0x120] sm:$0xff]
        %v2684 = vld [vmem:[#allocation11 + $0x128] sm:$0xff]
        %v2685 = vld [vmem:[#allocation11 + $0x130] sm:$0xff]
        %v2686 = vld [vmem:[#allocation11 + $0x138] sm:$0xff]
        %v2687 = vld [vmem:[#allocation11 + $0x140] sm:$0xff]
        %v2688 = vld [vmem:[#allocation11 + $0x148] sm:$0xff]
        %v2689 = vld [vmem:[#allocation11 + $0x150] sm:$0xff]
        %v2690 = vld [vmem:[#allocation11 + $0x158] sm:$0xff]
        %v2691 = vld [vmem:[#allocation11 + $0x160] sm:$0xff]
        %v2692 = vld [vmem:[#allocation11 + $0x168] sm:$0xff]
        %v2693 = vld [vmem:[#allocation11 + $0x170] sm:$0xff]
        %v2694 = vld [vmem:[#allocation11 + $0x178] sm:$0xff]
        %v2695 = vld [vmem:[#allocation11 + $0x180] sm:$0xff]
        %v2696 = vld [vmem:[#allocation11 + $0x188] sm:$0xff]
        %v2697 = vld [vmem:[#allocation11 + $0x190] sm:$0xff]
        %v2698 = vld [vmem:[#allocation11 + $0x198] sm:$0xff]
        %v2699 = vld [vmem:[#allocation11 + $0x1a0] sm:$0xff]
        %v2700 = vld [vmem:[#allocation11 + $0x1a8] sm:$0xff]
        %v2701 = vld [vmem:[#allocation11 + $0x1b0] sm:$0xff]
        %v2702 = vld [vmem:[#allocation11 + $0x1b8] sm:$0xff]
        %v2703 = vld [vmem:[#allocation11 + $0x1c0] sm:$0xff]
        %v2704 = vld [vmem:[#allocation11 + $0x1c8] sm:$0xff]
        %v2705 = vld [vmem:[#allocation11 + $0x1d0] sm:$0xff]
        %v2706 = vld [vmem:[#allocation11 + $0x1d8] sm:$0xff]
        %v2707 = vld [vmem:[#allocation11 + $0x1e0] sm:$0xff]
        %v2708 = vld [vmem:[#allocation11 + $0x1e8] sm:$0xff]
        %v2709 = vld [vmem:[#allocation11 + $0x1f0] sm:$0xff]
        %v2710 = vld [vmem:[#allocation11 + $0x1f8] sm:$0xff]
        %v2711 = vld [vmem:[%s14] sm:$0x3]
        %v2713 = vlaneseq
        %v2714 = vshrl.u32 %v2713, 7
        %v2715 = vsub.s32 0, %v2714
        %v2716 = vrot.slane %v2711, %v2715
        %v2717 = vlaneseq
        %v2718 = vshrl.u32 %v2717, 7
        %v2719 = vsub.s32 1, %v2718
        %v2720 = vrot.slane %v2711, %v2719
        %v2787 = vunpack.c.l.b16 %v2647
        %v2788 = vunpack.c.h.b16 %v2647
        %v2789 = vunpack.c.l.b16 %v2648
        %v2790 = vunpack.c.h.b16 %v2648
        %v2791 = vunpack.c.l.b16 %v2649
        %v2792 = vunpack.c.h.b16 %v2649
        %v2793 = vunpack.c.l.b16 %v2650
        %v2794 = vunpack.c.h.b16 %v2650
        %v2795 = vunpack.c.l.b16 %v2651
        %v2796 = vunpack.c.h.b16 %v2651
        %v2797 = vunpack.c.l.b16 %v2652
        %v2798 = vunpack.c.h.b16 %v2652
        %v2799 = vunpack.c.l.b16 %v2653
        %v2800 = vunpack.c.h.b16 %v2653
        %v2801 = vunpack.c.l.b16 %v2654
        %v2802 = vunpack.c.h.b16 %v2654
        %v2803 = vunpack.c.l.b16 %v2655
        %v2804 = vunpack.c.h.b16 %v2655
        %v2805 = vunpack.c.l.b16 %v2656
        %v2806 = vunpack.c.h.b16 %v2656
        %v2807 = vunpack.c.l.b16 %v2657
        %v2808 = vunpack.c.h.b16 %v2657
        %v2809 = vunpack.c.l.b16 %v2658
        %v2810 = vunpack.c.h.b16 %v2658
        %v2811 = vunpack.c.l.b16 %v2659
        %v2812 = vunpack.c.h.b16 %v2659
        %v2813 = vunpack.c.l.b16 %v2660
        %v2814 = vunpack.c.h.b16 %v2660
        %v2815 = vunpack.c.l.b16 %v2661
        %v2816 = vunpack.c.h.b16 %v2661
        %v2817 = vunpack.c.l.b16 %v2662
        %v2818 = vunpack.c.h.b16 %v2662
        %v2819 = vunpack.c.l.b16 %v2663
        %v2820 = vunpack.c.h.b16 %v2663
        %v2821 = vunpack.c.l.b16 %v2664
        %v2822 = vunpack.c.h.b16 %v2664
        %v2823 = vunpack.c.l.b16 %v2665
        %v2824 = vunpack.c.h.b16 %v2665
        %v2825 = vunpack.c.l.b16 %v2666
        %v2826 = vunpack.c.h.b16 %v2666
        %v2827 = vunpack.c.l.b16 %v2667
        %v2828 = vunpack.c.h.b16 %v2667
        %v2829 = vunpack.c.l.b16 %v2668
        %v2830 = vunpack.c.h.b16 %v2668
        %v2831 = vunpack.c.l.b16 %v2669
        %v2832 = vunpack.c.h.b16 %v2669
        %v2833 = vunpack.c.l.b16 %v2670
        %v2834 = vunpack.c.h.b16 %v2670
        %v2835 = vunpack.c.l.b16 %v2671
        %v2836 = vunpack.c.h.b16 %v2671
        %v2837 = vunpack.c.l.b16 %v2672
        %v2838 = vunpack.c.h.b16 %v2672
        %v2839 = vunpack.c.l.b16 %v2673
        %v2840 = vunpack.c.h.b16 %v2673
        %v2841 = vunpack.c.l.b16 %v2674
        %v2842 = vunpack.c.h.b16 %v2674
        %v2843 = vunpack.c.l.b16 %v2675
        %v2844 = vunpack.c.h.b16 %v2675
        %v2845 = vunpack.c.l.b16 %v2676
        %v2846 = vunpack.c.h.b16 %v2676
        %v2847 = vunpack.c.l.b16 %v2677
        %v2848 = vunpack.c.h.b16 %v2677
        %v2849 = vunpack.c.l.b16 %v2678
        %v2850 = vunpack.c.h.b16 %v2678
        %v2851 = vunpack.c.l.b16 %v2679
        %v2852 = vunpack.c.h.b16 %v2679
        %v2853 = vunpack.c.l.b16 %v2680
        %v2854 = vunpack.c.h.b16 %v2680
        %v2855 = vunpack.c.l.b16 %v2681
        %v2856 = vunpack.c.h.b16 %v2681
        %v2857 = vunpack.c.l.b16 %v2682
        %v2858 = vunpack.c.h.b16 %v2682
        %v2859 = vunpack.c.l.b16 %v2683
        %v2860 = vunpack.c.h.b16 %v2683
        %v2861 = vunpack.c.l.b16 %v2684
        %v2862 = vunpack.c.h.b16 %v2684
        %v2863 = vunpack.c.l.b16 %v2685
        %v2864 = vunpack.c.h.b16 %v2685
        %v2865 = vunpack.c.l.b16 %v2686
        %v2866 = vunpack.c.h.b16 %v2686
        %v2867 = vunpack.c.l.b16 %v2687
        %v2868 = vunpack.c.h.b16 %v2687
        %v2869 = vunpack.c.l.b16 %v2688
        %v2870 = vunpack.c.h.b16 %v2688
        %v2871 = vunpack.c.l.b16 %v2689
        %v2872 = vunpack.c.h.b16 %v2689
        %v2873 = vunpack.c.l.b16 %v2690
        %v2874 = vunpack.c.h.b16 %v2690
        %v2875 = vunpack.c.l.b16 %v2691
        %v2876 = vunpack.c.h.b16 %v2691
        %v2877 = vunpack.c.l.b16 %v2692
        %v2878 = vunpack.c.h.b16 %v2692
        %v2879 = vunpack.c.l.b16 %v2693
        %v2880 = vunpack.c.h.b16 %v2693
        %v2881 = vunpack.c.l.b16 %v2694
        %v2882 = vunpack.c.h.b16 %v2694
        %v2883 = vunpack.c.l.b16 %v2695
        %v2884 = vunpack.c.h.b16 %v2695
        %v2885 = vunpack.c.l.b16 %v2696
        %v2886 = vunpack.c.h.b16 %v2696
        %v2887 = vunpack.c.l.b16 %v2697
        %v2888 = vunpack.c.h.b16 %v2697
        %v2889 = vunpack.c.l.b16 %v2698
        %v2890 = vunpack.c.h.b16 %v2698
        %v2891 = vunpack.c.l.b16 %v2699
        %v2892 = vunpack.c.h.b16 %v2699
        %v2893 = vunpack.c.l.b16 %v2700
        %v2894 = vunpack.c.h.b16 %v2700
        %v2895 = vunpack.c.l.b16 %v2701
        %v2896 = vunpack.c.h.b16 %v2701
        %v2897 = vunpack.c.l.b16 %v2702
        %v2898 = vunpack.c.h.b16 %v2702
        %v2899 = vunpack.c.l.b16 %v2703
        %v2900 = vunpack.c.h.b16 %v2703
        %v2901 = vunpack.c.l.b16 %v2704
        %v2902 = vunpack.c.h.b16 %v2704
        %v2903 = vunpack.c.l.b16 %v2705
        %v2904 = vunpack.c.h.b16 %v2705
        %v2905 = vunpack.c.l.b16 %v2706
        %v2906 = vunpack.c.h.b16 %v2706
        %v2907 = vunpack.c.l.b16 %v2707
        %v2908 = vunpack.c.h.b16 %v2707
        %v2909 = vunpack.c.l.b16 %v2708
        %v2910 = vunpack.c.h.b16 %v2708
        %v2911 = vunpack.c.l.b16 %v2709
        %v2912 = vunpack.c.h.b16 %v2709
        %v2913 = vunpack.c.l.b16 %v2710
        %v2914 = vunpack.c.h.b16 %v2710
        %v2915 = vpack.c.b16 %v2789, %v2787
        %v2916 = vpack.c.b16 %v2790, %v2788
        %v2917 = vpack.c.b16 %v2793, %v2791
        %v2918 = vpack.c.b16 %v2794, %v2792
        %v2919 = vpack.c.b16 %v2797, %v2795
        %v2920 = vpack.c.b16 %v2798, %v2796
        %v2921 = vpack.c.b16 %v2801, %v2799
        %v2922 = vpack.c.b16 %v2802, %v2800
        %v2923 = vpack.c.b16 %v2805, %v2803
        %v2924 = vpack.c.b16 %v2806, %v2804
        %v2925 = vpack.c.b16 %v2809, %v2807
        %v2926 = vpack.c.b16 %v2810, %v2808
        %v2927 = vpack.c.b16 %v2813, %v2811
        %v2928 = vpack.c.b16 %v2814, %v2812
        %v2929 = vpack.c.b16 %v2817, %v2815
        %v2930 = vpack.c.b16 %v2818, %v2816
        %v2931 = vpack.c.b16 %v2821, %v2819
        %v2932 = vpack.c.b16 %v2822, %v2820
        %v2933 = vpack.c.b16 %v2825, %v2823
        %v2934 = vpack.c.b16 %v2826, %v2824
        %v2935 = vpack.c.b16 %v2829, %v2827
        %v2936 = vpack.c.b16 %v2830, %v2828
        %v2937 = vpack.c.b16 %v2833, %v2831
        %v2938 = vpack.c.b16 %v2834, %v2832
        %v2939 = vpack.c.b16 %v2837, %v2835
        %v2940 = vpack.c.b16 %v2838, %v2836
        %v2941 = vpack.c.b16 %v2841, %v2839
        %v2942 = vpack.c.b16 %v2842, %v2840
        %v2943 = vpack.c.b16 %v2845, %v2843
        %v2944 = vpack.c.b16 %v2846, %v2844
        %v2945 = vpack.c.b16 %v2849, %v2847
        %v2946 = vpack.c.b16 %v2850, %v2848
        %v2947 = vpack.c.b16 %v2853, %v2851
        %v2948 = vpack.c.b16 %v2854, %v2852
        %v2949 = vpack.c.b16 %v2857, %v2855
        %v2950 = vpack.c.b16 %v2858, %v2856
        %v2951 = vpack.c.b16 %v2861, %v2859
        %v2952 = vpack.c.b16 %v2862, %v2860
        %v2953 = vpack.c.b16 %v2865, %v2863
        %v2954 = vpack.c.b16 %v2866, %v2864
        %v2955 = vpack.c.b16 %v2869, %v2867
        %v2956 = vpack.c.b16 %v2870, %v2868
        %v2957 = vpack.c.b16 %v2873, %v2871
        %v2958 = vpack.c.b16 %v2874, %v2872
        %v2959 = vpack.c.b16 %v2877, %v2875
        %v2960 = vpack.c.b16 %v2878, %v2876
        %v2961 = vpack.c.b16 %v2881, %v2879
        %v2962 = vpack.c.b16 %v2882, %v2880
        %v2963 = vpack.c.b16 %v2885, %v2883
        %v2964 = vpack.c.b16 %v2886, %v2884
        %v2965 = vpack.c.b16 %v2889, %v2887
        %v2966 = vpack.c.b16 %v2890, %v2888
        %v2967 = vpack.c.b16 %v2893, %v2891
        %v2968 = vpack.c.b16 %v2894, %v2892
        %v2969 = vpack.c.b16 %v2897, %v2895
        %v2970 = vpack.c.b16 %v2898, %v2896
        %v2971 = vpack.c.b16 %v2901, %v2899
        %v2972 = vpack.c.b16 %v2902, %v2900
        %v2973 = vpack.c.b16 %v2905, %v2903
        %v2974 = vpack.c.b16 %v2906, %v2904
        %v2975 = vpack.c.b16 %v2909, %v2907
        %v2976 = vpack.c.b16 %v2910, %v2908
        %v2977 = vpack.c.b16 %v2913, %v2911
        %v2978 = vpack.c.b16 %v2914, %v2912
        %3043 = vmatprep.subr.bf16.mxu0 %v2916
        %3044 = vmatpush1.bf16.msra.mxu0 %v2915
        %3045 = vmatprep.subr.bf16.mxu0 %v2918
        %3046 = vmatpush1.bf16.msra.mxu0 %v2917
        %3047 = vmatprep.subr.bf16.mxu0 %v2920
        %3048 = vmatpush1.bf16.msra.mxu0 %v2919
        %3049 = vmatprep.subr.bf16.mxu0 %v2922
        %3050 = vmatpush1.bf16.msra.mxu0 %v2921
        %3051 = vmatprep.subr.bf16.mxu0 %v2924
        %3052 = vmatpush1.bf16.msra.mxu0 %v2923
        %3053 = vmatprep.subr.bf16.mxu0 %v2926
        %3054 = vmatpush1.bf16.msra.mxu0 %v2925
        %3055 = vmatprep.subr.bf16.mxu0 %v2928
        %3056 = vmatpush1.bf16.msra.mxu0 %v2927
        %3057 = vmatprep.subr.bf16.mxu0 %v2930
        %3058 = vmatpush1.bf16.msra.mxu0 %v2929
        %3059 = vmatprep.subr.bf16.mxu0 %v2932
        %3060 = vmatpush1.bf16.msra.mxu0 %v2931
        %3061 = vmatprep.subr.bf16.mxu0 %v2934
        %3062 = vmatpush1.bf16.msra.mxu0 %v2933
        %3063 = vmatprep.subr.bf16.mxu0 %v2936
        %3064 = vmatpush1.bf16.msra.mxu0 %v2935
        %3065 = vmatprep.subr.bf16.mxu0 %v2938
        %3066 = vmatpush1.bf16.msra.mxu0 %v2937
        %3067 = vmatprep.subr.bf16.mxu0 %v2940
        %3068 = vmatpush1.bf16.msra.mxu0 %v2939
        %3069 = vmatprep.subr.bf16.mxu0 %v2942
        %3070 = vmatpush1.bf16.msra.mxu0 %v2941
        %3071 = vmatprep.subr.bf16.mxu0 %v2944
        %3072 = vmatpush1.bf16.msra.mxu0 %v2943
        %3073 = vmatprep.subr.bf16.mxu0 %v2946
        %3074 = vmatpush1.bf16.msra.mxu0 %v2945
        %3075 = vmatprep.mubr.bf16.mxu0 %v2640
        %3076 = vmatmul.mubr.bf16.gmra.mrb[0].mxu0 %v2639
        %v3077 = vpop.f32.mrb[0].mxu0
        %v3078 = vadd.f32 %v2716, %v3077
        %v3079 = vpop.f32.mrb[0].mxu0
        %v3080 = vadd.f32 %v2720, %v3079
        %v3081 = vpop.f32.mrb[0].mxu0
        %v3082 = vadd.f32 %v2716, %v3081
        %v3083 = vpop.f32.mrb[0].mxu0
        %v3084 = vadd.f32 %v2720, %v3083
        %3085 = vmatprep.mubr.bf16.mxu0 %v2644
        %3086 = vmatmul.mubr.bf16.gmra.mrb[0].mxu0 %v2643
        %v3087 = vpop.f32.mrb[0].mxu0
        %v3088 = vadd.f32 %v2716, %v3087
        %v3089 = vpop.f32.mrb[0].mxu0
        %v3090 = vadd.f32 %v2720, %v3089
        %v3091 = vpop.f32.mrb[0].mxu0
        %v3092 = vadd.f32 %v2716, %v3091
        %v3093 = vpop.f32.mrb[0].mxu0
        %v3094 = vadd.f32 %v2720, %v3093
        %3095 = vdwg.mxu0
        %3096 = vmatprep.subr.bf16.mxu0 %v2948
        %3097 = vmatpush1.bf16.msra.mxu0 %v2947
        %3098 = vmatprep.subr.bf16.mxu0 %v2950
        %3099 = vmatpush1.bf16.msra.mxu0 %v2949
        %3100 = vmatprep.subr.bf16.mxu0 %v2952
        %3101 = vmatpush1.bf16.msra.mxu0 %v2951
        %3102 = vmatprep.subr.bf16.mxu0 %v2954
        %3103 = vmatpush1.bf16.msra.mxu0 %v2953
        %3104 = vmatprep.subr.bf16.mxu0 %v2956
        %3105 = vmatpush1.bf16.msra.mxu0 %v2955
        %3106 = vmatprep.subr.bf16.mxu0 %v2958
        %3107 = vmatpush1.bf16.msra.mxu0 %v2957
        %3108 = vmatprep.subr.bf16.mxu0 %v2960
        %3109 = vmatpush1.bf16.msra.mxu0 %v2959
        %3110 = vmatprep.subr.bf16.mxu0 %v2962
        %3111 = vmatpush1.bf16.msra.mxu0 %v2961
        %3112 = vmatprep.subr.bf16.mxu0 %v2964
        %3113 = vmatpush1.bf16.msra.mxu0 %v2963
        %3114 = vmatprep.subr.bf16.mxu0 %v2966
        %3115 = vmatpush1.bf16.msra.mxu0 %v2965
        %3116 = vmatprep.subr.bf16.mxu0 %v2968
        %3117 = vmatpush1.bf16.msra.mxu0 %v2967
        %3118 = vmatprep.subr.bf16.mxu0 %v2970
        %3119 = vmatpush1.bf16.msra.mxu0 %v2969
        %3120 = vmatprep.subr.bf16.mxu0 %v2972
        %3121 = vmatpush1.bf16.msra.mxu0 %v2971
        %3122 = vmatprep.subr.bf16.mxu0 %v2974
        %3123 = vmatpush1.bf16.msra.mxu0 %v2973
        %3124 = vmatprep.subr.bf16.mxu0 %v2976
        %3125 = vmatpush1.bf16.msra.mxu0 %v2975
        %3126 = vmatprep.subr.bf16.mxu0 %v2978
        %3127 = vmatpush1.bf16.msra.mxu0 %v2977
        %3128 = vmatprep.mubr.bf16.mxu0 %v2642
        %3129 = vmatmul.mubr.bf16.gmra.mrb[0].mxu0 %v2641
        %v3130 = vpop.f32.mrb[0].mxu0
        %v3131 = vadd.f32 %v3078, %v3130
        %v3132 = vpop.f32.mrb[0].mxu0
        %v3133 = vadd.f32 %v3080, %v3132
        %v3134 = vpop.f32.mrb[0].mxu0
        %v3135 = vadd.f32 %v3082, %v3134
        %v3136 = vpop.f32.mrb[0].mxu0
        %v3137 = vadd.f32 %v3084, %v3136
        %3138 = vmatprep.mubr.bf16.mxu0 %v2646
        %3139 = vmatmul.mubr.bf16.gmra.mrb[0].mxu0 %v2645
        %v3140 = vpop.f32.mrb[0].mxu0
        %v3141 = vadd.f32 %v3088, %v3140
        %v3142 = vpop.f32.mrb[0].mxu0
        %v3143 = vadd.f32 %v3090, %v3142
        %v3144 = vpop.f32.mrb[0].mxu0
        %v3145 = vadd.f32 %v3092, %v3144
        %v3146 = vpop.f32.mrb[0].mxu0
        %v3147 = vadd.f32 %v3094, %v3146
        %3148 = vdwg.mxu0
        %3149 = vst [vmem:[%s578] sm:$0xff] %v3131
        %3150 = vst [vmem:[%s578 + $0x8] sm:$0xff] %v3133
        %3151 = vst [vmem:[%s578 + $0x10] sm:$0xff] %v3135
        %3152 = vst [vmem:[%s578 + $0x18] sm:$0xff] %v3137
        %3153 = vst [vmem:[%s578 + $0x20] sm:$0xff] %v3141
        %3154 = vst [vmem:[%s578 + $0x28] sm:$0xff] %v3143
        %3155 = vst [vmem:[%s578 + $0x30] sm:$0xff] %v3145
        %3156 = vst [vmem:[%s578 + $0x38] sm:$0xff] %v3147
        %s3157 = sand.u32 %s361, 1
        %s3158 = scalar_lea.sflag [#allocation4], %s3157
        %s3159 = sand.u32 %s361, 1
        %s3160 = smul.addr %s3159, 64
        %s3161 = scalar_lea.vmem [#allocation13], %s3160
        // Predicated region
        $region105: #{_forward_impl.1} parent=79 // pred_check
          %p3162 = pneg %p371
        $region106: #{_forward_impl.1} parent=79 // pred_check_branch
          %3164 = sbr.rel (%p3162) target = $region108
        $region107: #{_forward_impl.1} parent=79 // pred_region
          %s3165 = smul.u32 4, %s33
          %s3167 = ssub.s32 1024, 1024
          %3168 = vsyncadd %s3158, %s3167
          %s3169 = smul.addr %s3165, 2
          %s3170 = smul.addr %s3169, 128
          %s3171 = scalar_lea.hbm %s15, %s3170
          %s3172 = sshll.u32 %s3161, 4
          %s3173 = int_to_ptr.vmem [resolvable:$true] %s3172
          %3178 = dma.vmem_to_hbm [thread:$0]  %s3173, 1024, %s3171, %s3158, 256, 256, 16
        $region108: #{_forward_impl.1} parent=79 // pred_fallthru
          _
      $region80: #{_forward_impl.1} parent=5 // pred_fallthru
        _
      %p3179 = scmp.le.s32.totalorder 2, %s28
      // Predicated region
      $region109: #{_forward_impl.1} parent=5 // pred_check
        %p3180 = pneg %p3179
      $region110: #{_forward_impl.1} parent=5 // pred_check_branch
        %3182 = sbr.rel (%p3180) target = $region112
      $region111: #{_forward_impl.1} parent=5 // pred_region
        %s3183 = ssub.s32 %s28, 2
        // Predicated region
        $region113: #{_forward_impl.1} parent=111 // pred_check
          %p3184 = pneg %p377
        $region114: #{_forward_impl.1} parent=111 // pred_check_branch
          %3186 = sbr.rel (%p3184) target = $region116
        $region115: #{_forward_impl.1} parent=111 // pred_region
          %s3187 = sand.u32 %s362, 1
          %s3188 = scalar_lea.sflag [#allocation4], %s3187
          %s3189 = sand.u32 %s362, 1
          %s3190 = smul.addr %s3189, 64
          %s3191 = scalar_lea.vmem [#allocation13], %s3190
          %3192 = dma.done %s3188, 1024
        $region116: #{_forward_impl.1} parent=111 // pred_fallthru
          _
      $region112: #{_forward_impl.1} parent=5 // pred_fallthru
        _
    $region6: #{_forward_impl.1} parent=1 // loop_footer
      %s32 = sadd.s32 1, %s28
    $region7: #{_forward_impl.1} parent=1 // loop_footer_branch
      %27 = sbr.rel target = $region3
    $region8: #{_forward_impl.1} parent=1 // loop_exit
      _
    %3193 = vsyncpa [#allocation3], 1
    %s3194 = scalar_lea.sflag [#allocation3], 1
    %3195 = vsyncpa %s3194, 1
    %3196 = vsyncpa [#allocation6], 1
    %3197 = vsyncpa [#allocation9], 1
    %3198 = vsyncpa [#allocation12], 1
    %3199 = vsyncpa [#allocation4], 1
    %s3200 = scalar_lea.sflag [#allocation4], 1
    %3201 = vsyncpa %s3200, 1

</llo_original>
